<compile_context>
chip_gen: v7x
topology: tpu7x:2x2x1
jax: 0.10.0
libtpu: 0.0.40
codegen_flags: <defaults>
</compile_context>

<pallas_src>
import functools

import jax
import jax.numpy as jnp
import numpy as np
from jax.experimental import pallas as pl
from jax.experimental.pallas import tpu as pltpu


# ----------------------------------------------------------------------------
# Small helpers: padding, tiling, per-generation VMEM budget, resident blocks.
# ----------------------------------------------------------------------------
def _round_up(n, m):
    return ((n + m - 1) // m) * m


def _pick_tile(total, cap):
    """Largest multiple-of-8 divisor of `total` (itself a multiple of 8) not above `cap`."""
    if total <= cap:
        return total
    for cand in range(cap - cap % 8, 7, -8):
        if total % cand == 0:
            return cand
    return 8


def _derive_vmem_limit():
    """~3/4 of physical VMEM, capped at 96 MiB (v5e/v6e -> 96 MiB, v7x -> 48 MiB)."""
    try:
        cap = int(pltpu.get_tpu_info().vmem_capacity_bytes)
    except Exception:  # conservative, v7x-safe fallback
        cap = 64 * 1024 * 1024
    return min((cap * 3) // 4, 96 * 1024 * 1024)


def _probe_resident_pipeline_mode():
    """Probe pl.Buffered(1) (single-buffered resident blocks); fall back if unsupported."""
    try:
        mode = pl.Buffered(1)

        def _copy(x_ref, o_ref):
            o_ref[...] = x_ref[...]

        out = pl.pallas_call(
            _copy,
            out_shape=jax.ShapeDtypeStruct((16, 128), jnp.float32),
            grid=(2,),
            in_specs=[pl.BlockSpec((8, 128), lambda i: (0, 0), pipeline_mode=mode)],
            out_specs=pl.BlockSpec((8, 128), lambda i: (i, 0)),
        )(jnp.zeros((8, 128), jnp.float32))
        jax.block_until_ready(out)
        return mode
    except Exception:
        return None  # older jax: keep default (double) buffering for resident weights


_VMEM_LIMIT = _derive_vmem_limit()
_RESIDENT_MODE = _probe_resident_pipeline_mode()


def _resident_spec(block_shape, index_map):
    """Constant-index block revisited every grid step: single-buffer it when supported."""
    if _RESIDENT_MODE is None:
        return pl.BlockSpec(block_shape, index_map)
    return pl.BlockSpec(block_shape, index_map, pipeline_mode=_RESIDENT_MODE)


# ----------------------------------------------------------------------------
# Kernel 1: one LSTM layer.
#   Grid = (batch_blocks [parallel], time_blocks [arbitrary]).
#   x_ref   : (t_blk, b_blk, Din)  bf16   time-major block
#   wih_ref : (Din, 4*H) bf16   fused gate-packed input weights   (i|f|g|o, lane aligned)
#   whh_ref : (H,   4*H) bf16   fused gate-packed recurrent weights
#   b_ref   : (1,   4*H) f32    bias_ih + bias_hh, gate packed
#   out_ref : (t_blk, b_blk, H) bf16
#   gx_sc   : (t_blk, b_blk, 4*H) f32   hoisted input projections (scratch)
#   h_sc/c_sc : (b_blk, H) f32   recurrent carry (scratch, persists across time blocks)
# ----------------------------------------------------------------------------
def _lstm_layer_kernel(x_ref, wih_ref, whh_ref, b_ref, out_ref, gx_sc, h_sc, c_sc):
    # Reset the carry at the first time block of every batch block (time axis is the
    # innermost grid dim, so this also resets when moving to the next batch block).
    @pl.when(pl.program_id(1) == 0)
    def _():
        h_sc[...] = jnp.zeros_like(h_sc)
        c_sc[...] = jnp.zeros_like(c_sc)

    T, Bb, Din = x_ref.shape
    H = h_sc.shape[1]

    # Hoisted input projection: ONE wide (T*Bb, Din) @ (Din, 4H) MXU matmul (+bias) for the
    # whole time block, staged in VMEM scratch so no large f32 value lives across the
    # unrolled recurrence.
    x_blk = x_ref[...].reshape(T * Bb, Din)
    gx_sc[...] = (
        jnp.dot(x_blk, wih_ref[...], preferred_element_type=jnp.float32) + b_ref[...]
    ).reshape(T, Bb, 4 * H)

    whh = whh_ref[...]  # (H, 4H) bf16, resident for the whole block
    # TODO(synk): if bundle dumps show the MXU push slot binding, hold whh in MXU staging
    #             via pltpu.matmul_push_rhs once per time block.
    h = h_sc[...]
    c = c_sc[...]
    # Recurrence: per step a single fused (Bb, H) @ (H, 4H) MXU matmul + f32 gate math.
    # Gate blocks sit at lane-aligned offsets (H is a multiple of 128) -> free slices;
    # leading-axis indexing of gx_sc/out_ref keeps stores sublane aligned (unmasked).
    for t in range(T):
        gates = gx_sc[t, :, :] + jnp.dot(
            h.astype(jnp.bfloat16), whh, preferred_element_type=jnp.float32)
        i = jax.nn.sigmoid(gates[:, 0 * H:1 * H])
        f = jax.nn.sigmoid(gates[:, 1 * H:2 * H])
        g = jnp.tanh(gates[:, 2 * H:3 * H])
        o = jax.nn.sigmoid(gates[:, 3 * H:4 * H])
        c = f * c + i * g
        h = o * jnp.tanh(c)
        out_ref[t, :, :] = h.astype(out_ref.dtype)
    h_sc[...] = h
    c_sc[...] = c


def lstm_layer(x_sbd, wih_p, whh_p, b_p, *, t_blk, b_blk=None):
    """x_sbd: (S, B_pad, Din_pad) bf16, time-major -> (S, B_pad, H_pad) bf16."""
    S, Bp, Din = x_sbd.shape
    Hp, H4 = whh_p.shape
    assert wih_p.shape[0] == Din and wih_p.shape[1] == H4
    if S % t_blk != 0:
        raise ValueError("seq_len must be divisible by t_blk")  # TODO(synk): remainder path
    if b_blk is None:
        b_blk = _pick_tile(Bp, 256)
    grid = (Bp // b_blk, S // t_blk)
    return pl.pallas_call(
        _lstm_layer_kernel,
        out_shape=jax.ShapeDtypeStruct((S, Bp, Hp), jnp.bfloat16),
        grid=grid,
        in_specs=[
            pl.BlockSpec((t_blk, b_blk, Din), lambda b, t: (t, b, 0)),
            # Resident weights: constant index, single-buffered when supported.
            _resident_spec((Din, H4), lambda b, t: (0, 0)),
            _resident_spec((Hp, H4), lambda b, t: (0, 0)),
            _resident_spec((1, H4), lambda b, t: (0, 0)),
        ],
        out_specs=pl.BlockSpec((t_blk, b_blk, Hp), lambda b, t: (t, b, 0)),
        scratch_shapes=[
            pltpu.VMEM((t_blk, b_blk, H4), jnp.float32),  # hoisted gate projections
            pltpu.VMEM((b_blk, Hp), jnp.float32),         # h carry
            pltpu.VMEM((b_blk, Hp), jnp.float32),         # c carry
        ],
        compiler_params=pltpu.CompilerParams(
            # batch blocks parallel (v7x megacore); time recurrence must stay sequential.
            dimension_semantics=("parallel", "arbitrary"),
            # Per-generation budget (see _derive_vmem_limit); sweep t_blk upward on
            # v5e/v6e (128 MiB physical) and re-derive it for v7x (64 MiB physical).
            vmem_limit_bytes=_VMEM_LIMIT,
        ),
    )(x_sbd, wih_p, whh_p, b_p)


# ----------------------------------------------------------------------------
# Kernel 2: fused Attention + fcn(Linear+ReLU) + final Linear, tiled over batch blocks.
#   lo_ref : (S, B_tile, H) bf16   LSTM output (time-major; no HBM transpose, stays bf16)
#   wa_ref : (H, 128) bf16   attention weight broadcast across all 128 output lanes
#   w1_ref : (H, 128) bf16, b1_ref : (1, 128) f32   fcn Linear
#   w2_ref : (128, 128) bf16 (zero-padded cols), b2_ref : (1, 128) f32   final Linear
#   out_ref: (B_tile, 128) f32   lane-dense; sliced back to lstm_output_dim in the wrapper
# ----------------------------------------------------------------------------
def _attn_head_kernel(lo_ref, wa_ref, w1_ref, b1_ref, w2_ref, b2_ref, out_ref):
    S, Bt, H = lo_ref.shape
    reps = H // 128
    # Attention scores on the MXU (bf16 operands, f32 accumulate); att_w is replicated
    # across all 128 output lanes so the softmax weights stay lane dense (no lane-0
    # extraction / relayout).  linear_out.bias is constant along the softmax axis and
    # cancels exactly, so it is dropped.
    sc = jnp.dot(lo_ref[...].reshape(S * Bt, H), wa_ref[...],
                 preferred_element_type=jnp.float32).reshape(S, Bt, 128)
    sc = sc - jnp.max(sc, axis=0, keepdims=True)
    e = jnp.exp(sc)
    attn = e * pl.reciprocal(jnp.sum(e, axis=0, keepdims=True), approx=True)  # (S, Bt, 128)

    # Weighted sum over the sequence axis: per-timestep (Bt, H) f32 working set; the
    # (S, Bt, H) block stays bf16 in VMEM (no full f32 copy is materialized).
    acc = jnp.zeros((Bt, H), jnp.float32)
    for s in range(S):
        a_s = attn[s]
        if reps > 1:
            a_s = jnp.tile(a_s, (1, reps))
        acc = acc + lo_ref[s, :, :].astype(jnp.float32) * a_s

    # fcn: Linear(H, 128) + ReLU  (bf16 MXU operands, f32 accumulate/elementwise)
    h1 = jnp.maximum(
        jnp.dot(acc.astype(jnp.bfloat16), w1_ref[...],
                preferred_element_type=jnp.float32) + b1_ref[...], 0.0)
    # final Linear(128, O) padded to 128 output lanes (lane-dense, unmasked store)
    out_ref[...] = (
        jnp.dot(h1.astype(jnp.bfloat16), w2_ref[...],
                preferred_element_type=jnp.float32) + b2_ref[...]).astype(out_ref.dtype)


def attn_head(lo_sbh, wa_bc, w1, b1, w2, b2, *, b_tile=None):
    S, Bp, Hp = lo_sbh.shape
    NPAD = w2.shape[1]
    if b_tile is None:
        # Cap the batch tile so S*b_tile*Hp (bf16) + working set fits VMEM at real sizes.
        b_tile = _pick_tile(Bp, 128)
    return pl.pallas_call(
        _attn_head_kernel,
        out_shape=jax.ShapeDtypeStruct((Bp, NPAD), jnp.float32),
        grid=(Bp // b_tile,),
        in_specs=[
            pl.BlockSpec((S, b_tile, Hp), lambda b: (0, b, 0)),
            _resident_spec((Hp, 128), lambda b: (0, 0)),
            _resident_spec((Hp, 128), lambda b: (0, 0)),
            _resident_spec((1, 128), lambda b: (0, 0)),
            _resident_spec((128, NPAD), lambda b: (0, 0)),
            _resident_spec((1, NPAD), lambda b: (0, 0)),
        ],
        out_specs=pl.BlockSpec((b_tile, NPAD), lambda b: (b, 0)),
        compiler_params=pltpu.CompilerParams(
            dimension_semantics=("parallel",),
            vmem_limit_bytes=_VMEM_LIMIT,
        ),
    )(lo_sbh, wa_bc, w1, b1, w2, b2)


# ----------------------------------------------------------------------------
# One-time parameter packing/padding (done OUTSIDE the jitted forward).
# PyTorch LSTM gate order (i, f, g, o); each gate placed at a lane-aligned column block.
# Padded hidden lanes carry zero weights+bias, so padded h/c lanes stay exactly zero.
# ----------------------------------------------------------------------------
def prepare_params(params):
    hidden = params["lstm"][0][1].shape[1]
    Hp = _round_up(hidden, 128)
    lstm_packed = []
    for (wih, whh, bih, bhh) in params["lstm"]:
        din = wih.shape[1]
        dinp = _round_up(din, 128)
        wih_g = wih.reshape(4, hidden, din)
        whh_g = whh.reshape(4, hidden, hidden)
        b_g = (bih + bhh).reshape(4, hidden)
        wih_p = jnp.zeros((4, Hp, dinp), jnp.float32).at[:, :hidden, :din].set(wih_g)
        whh_p = jnp.zeros((4, Hp, Hp), jnp.float32).at[:, :hidden, :hidden].set(whh_g)
        b_p = jnp.zeros((4, Hp), jnp.float32).at[:, :hidden].set(b_g)
        # (Din_pad, 4*H_pad): gate k occupies lane block [k*Hp, (k+1)*Hp).
        wih_packed = jnp.transpose(wih_p, (2, 0, 1)).reshape(dinp, 4 * Hp).astype(jnp.bfloat16)
        whh_packed = jnp.transpose(whh_p, (2, 0, 1)).reshape(Hp, 4 * Hp).astype(jnp.bfloat16)
        b_packed = b_p.reshape(1, 4 * Hp)
        lstm_packed.append((wih_packed, whh_packed, b_packed))

    # Attention weight broadcast across all 128 MXU output lanes; bias dropped (cancels
    # in the softmax over the sequence axis).
    att_w = params["att_w"].reshape(hidden)
    wa_bc = jnp.zeros((Hp, 128), jnp.float32).at[:hidden, :].set(
        jnp.broadcast_to(att_w[:, None], (hidden, 128)))

    O = params["lin_w"].shape[0]
    NPAD = 128  # lane-dense final output width (sliced back to O in the wrapper)
    fcn_w_t = jnp.zeros((Hp, 128), jnp.float32).at[:hidden, :].set(params["fcn_w"].T)
    lin_w_t = jnp.zeros((128, NPAD), jnp.float32).at[:, :O].set(params["lin_w"].T)
    lin_b = jnp.zeros((1, NPAD), jnp.float32).at[0, :O].set(params["lin_b"])
    return {
        "lstm": lstm_packed,
        "att_w_bc": wa_bc.astype(jnp.bfloat16),                     # (Hp, 128)
        "fcn_w_t": fcn_w_t.astype(jnp.bfloat16),                    # (Hp, 128)
        "fcn_b": params["fcn_b"][None, :].astype(jnp.float32),      # (1, 128)
        "lin_w_t": lin_w_t.astype(jnp.bfloat16),                    # (128, 128)
        "lin_b": lin_b,                                             # (1, 128)
    }


# ----------------------------------------------------------------------------
# Full forward (glue in plain JAX; hot path in the two Pallas kernels above).
# ----------------------------------------------------------------------------
@functools.partial(jax.jit, static_argnames=("t_blk", "out_dim"))
def lstm_atten_emb_forward(x, packed, *, t_blk, out_dim):
    B, S, Din = x.shape
    Bp = _round_up(max(B, 8), 8)       # sublane-aligned batch
    Dinp = _round_up(Din, 128)         # lane-aligned features
    # (B, S, Din) -> padded time-major (S, B_pad, Din_pad) bf16; padded rows/cols are zero.
    xt = jnp.transpose(x, (1, 0, 2)).astype(jnp.bfloat16)
    h = jnp.zeros((S, Bp, Dinp), jnp.bfloat16).at[:, :B, :Din].set(xt)
    for (wih_p, whh_p, b_p) in packed["lstm"]:
        h = lstm_layer(h, wih_p, whh_p, b_p, t_blk=t_blk)          # (S, Bp, Hp) bf16
        # TODO(synk): training-mode inter-layer dropout (nn.LSTM dropout) not implemented.
    out_pad = attn_head(h, packed["att_w_bc"], packed["fcn_w_t"], packed["fcn_b"],
                        packed["lin_w_t"], packed["lin_b"])
    return out_pad[:B, :out_dim]


# ----------------------------------------------------------------------------
# Pure-JAX f32 reference (same math, lax.scan recurrence) for correctness check.
# ----------------------------------------------------------------------------
def reference_forward(x, params):
    h_seq = x
    for (wih, whh, bih, bhh) in params["lstm"]:
        B, S, _ = h_seq.shape
        H = whh.shape[1]

        def step(carry, x_t):
            h, c = carry
            gates = x_t @ wih.T + bih + h @ whh.T + bhh
            i, f, g, o = jnp.split(gates, 4, axis=1)
            i = jax.nn.sigmoid(i)
            f = jax.nn.sigmoid(f)
            g = jnp.tanh(g)
            o = jax.nn.sigmoid(o)
            c = f * c + i * g
            h = o * jnp.tanh(c)
            return (h, c), h

        init = (jnp.zeros((B, H), jnp.float32), jnp.zeros((B, H), jnp.float32))
        _, hs = jax.lax.scan(step, init, jnp.swapaxes(h_seq, 0, 1))
        h_seq = jnp.swapaxes(hs, 0, 1)

    scores = jnp.einsum("bsh,h->bs", h_seq, params["att_w"][0]) + params["att_b"][0]
    attn = jax.nn.softmax(scores, axis=1)
    weighted = jnp.sum(h_seq * attn[:, :, None], axis=1)
    hid = jnp.maximum(weighted @ params["fcn_w"].T + params["fcn_b"], 0.0)
    return hid @ params["lin_w"].T + params["lin_b"]


# ----------------------------------------------------------------------------
# Deterministic parameter init (PyTorch shapes).
# ----------------------------------------------------------------------------
def make_params(key, input_dim, hidden_dim, num_layers, lstm_output_dim):
    keys = jax.random.split(key, 4 * num_layers + 6)
    ki = iter(keys)
    k = 1.0 / np.sqrt(hidden_dim)
    lstm = []
    for layer in range(num_layers):
        din = input_dim if layer == 0 else hidden_dim
        wih = jax.random.uniform(next(ki), (4 * hidden_dim, din), jnp.float32, -k, k)
        whh = jax.random.uniform(next(ki), (4 * hidden_dim, hidden_dim), jnp.float32, -k, k)
        bih = jax.random.uniform(next(ki), (4 * hidden_dim,), jnp.float32, -k, k)
        bhh = jax.random.uniform(next(ki), (4 * hidden_dim,), jnp.float32, -k, k)
        lstm.append((wih, whh, bih, bhh))
    params = {
        "lstm": lstm,
        "att_w": jax.random.uniform(next(ki), (1, hidden_dim), jnp.float32, -k, k),
        "att_b": jax.random.uniform(next(ki), (1,), jnp.float32, -k, k),
        "fcn_w": jax.random.uniform(next(ki), (128, hidden_dim), jnp.float32, -0.1, 0.1),
        "fcn_b": jax.random.uniform(next(ki), (128,), jnp.float32, -0.1, 0.1),
        "lin_w": jax.random.uniform(next(ki), (lstm_output_dim, 128), jnp.float32, -0.1, 0.1),
        "lin_b": jax.random.uniform(next(ki), (lstm_output_dim,), jnp.float32, -0.1, 0.1),
    }
    return params


if __name__ == "__main__":
    B, S = 2, 8
    input_dim, hidden_dim, num_layers, lstm_output_dim = 16, 32, 2, 8

    key = jax.random.PRNGKey(0)
    k_x, k_p = jax.random.split(key)
    x = jax.random.normal(k_x, (B, S, input_dim), jnp.float32)
    params = make_params(k_p, input_dim, hidden_dim, num_layers, lstm_output_dim)
    packed = prepare_params(params)   # one-time pre-pack, outside the jitted forward

    out = lstm_atten_emb_forward(x, packed, t_blk=4, out_dim=lstm_output_dim)
    out = jax.block_until_ready(out)

    ref = reference_forward(x, params)
    # bf16 MXU operands / bf16 inter-layer activations vs f32 reference -> loose tolerance.
    np.testing.assert_allclose(np.asarray(out), np.asarray(ref), rtol=5e-2, atol=2e-2)

    assert out.shape == (B, lstm_output_dim)
    print("KERNEL_OK")
</pallas_src>

<mosaic_0001>
module attributes {stable_mosaic.version = 11 : i64} {
  func.func @_copy(%arg0: i32, %arg1: memref<8x128xf32, #tpu.memory_space<vmem>>, %arg2: memref<8x128xf32, #tpu.memory_space<vmem>>) attributes {dimension_semantics = [#tpu.dimension_semantics<arbitrary>], iteration_bounds = array<i64: 2>, scalar_prefetch = 0 : i64, scratch_operands = 0 : i64, tpu.core_type = #tpu.core_type<tc>, window_params = [{pipeline_mode = #tpu.pipeline_mode<synchronous>, transform_indices = @transform_0, window_bounds = array<i64: 8, 128>}, {transform_indices = @transform_1, window_bounds = array<i64: 8, 128>}]} {
    %c0 = arith.constant 0 : index
    %c0_0 = arith.constant 0 : index
    %0 = vector.load %arg1[%c0, %c0_0] : memref<8x128xf32, #tpu.memory_space<vmem>>, vector<8x128xf32>
    %c0_1 = arith.constant 0 : index
    %c0_2 = arith.constant 0 : index
    %1 = vector.load %arg2[%c0_1, %c0_2] : memref<8x128xf32, #tpu.memory_space<vmem>>, vector<8x128xf32>
    tpu.vector_store %arg2[%c0_1, %c0_2], %0 {strides = array<i32>} : memref<8x128xf32, #tpu.memory_space<vmem>>, vector<8x128xf32>,
    return
  }
  func.func @transform_0(%arg0: i32) -> (i32, i32) {
    %c0_i32 = arith.constant 0 : i32
    %c0_i32_0 = arith.constant 0 : i32
    %c0_i32_1 = arith.constant 0 : i32
    return %c0_i32, %c0_i32_0 : i32, i32
  }
  func.func @transform_1(%arg0: i32) -> (i32, i32) {
    %c0_i32 = arith.constant 0 : i32
    %c0_i32_0 = arith.constant 0 : i32
    return %arg0, %c0_i32 : i32, i32
  }
}

module attributes {stable_mosaic.version = 11 : i64} {
  func.func @_lstm_layer_kernel(%arg0: i32, %arg1: i32, %arg2: memref<4x8x128xbf16, #tpu.memory_space<vmem>>, %arg3: memref<128x512xbf16, #tpu.memory_space<vmem>>, %arg4: memref<128x512xbf16, #tpu.memory_space<vmem>>, %arg5: memref<1x512xf32, #tpu.memory_space<vmem>>, %arg6: memref<4x8x128xbf16, #tpu.memory_space<vmem>>, %arg7: memref<4x8x512xf32, #tpu.memory_space<vmem>>, %arg8: memref<8x128xf32, #tpu.memory_space<vmem>>, %arg9: memref<8x128xf32, #tpu.memory_space<vmem>>) attributes {dimension_semantics = [#tpu.dimension_semantics<parallel>, #tpu.dimension_semantics<arbitrary>], iteration_bounds = array<i64: 1, 2>, scalar_prefetch = 0 : i64, scratch_operands = 3 : i64, tpu.core_type = #tpu.core_type<tc>, window_params = [{transform_indices = @transform_0, window_bounds = array<i64: 4, 8, 128>}, {pipeline_mode = #tpu.pipeline_mode<synchronous>, transform_indices = @transform_1, window_bounds = array<i64: 128, 512>}, {pipeline_mode = #tpu.pipeline_mode<synchronous>, transform_indices = @transform_2, window_bounds = array<i64: 128, 512>}, {pipeline_mode = #tpu.pipeline_mode<synchronous>, transform_indices = @transform_3, window_bounds = array<i64: 1, 512>}, {transform_indices = @transform_4, window_bounds = array<i64: 4, 8, 128>}]} {
    %c0_i32 = arith.constant 0 : i32
    %0 = arith.cmpi eq, %arg1, %c0_i32 : i32
    %1 = arith.extui %0 : i1 to i32
    %c0_i32_0 = arith.constant 0 : i32
    %2 = arith.cmpi ne, %1, %c0_i32_0 : i32
    scf.if %2 {
      %cst_57 = arith.constant 0.000000e+00 : f32
      %153 = vector.broadcast %cst_57 : f32 to vector<8x128xf32>
      %c0_58 = arith.constant 0 : index
      %c0_59 = arith.constant 0 : index
      %154 = vector.load %arg8[%c0_58, %c0_59] : memref<8x128xf32, #tpu.memory_space<vmem>>, vector<8x128xf32>
      tpu.vector_store %arg8[%c0_58, %c0_59], %153 {strides = array<i32>} : memref<8x128xf32, #tpu.memory_space<vmem>>, vector<8x128xf32>,
      %cst_60 = arith.constant 0.000000e+00 : f32
      %155 = vector.broadcast %cst_60 : f32 to vector<8x128xf32>
      %c0_61 = arith.constant 0 : index
      %c0_62 = arith.constant 0 : index
      %156 = vector.load %arg9[%c0_61, %c0_62] : memref<8x128xf32, #tpu.memory_space<vmem>>, vector<8x128xf32>
      tpu.vector_store %arg9[%c0_61, %c0_62], %155 {strides = array<i32>} : memref<8x128xf32, #tpu.memory_space<vmem>>, vector<8x128xf32>,
    } else {
    }
    %c0 = arith.constant 0 : index
    %c0_1 = arith.constant 0 : index
    %c0_2 = arith.constant 0 : index
    %3 = vector.load %arg2[%c0, %c0_1, %c0_2] : memref<4x8x128xbf16, #tpu.memory_space<vmem>>, vector<4x8x128xbf16>
    %4 = vector.shape_cast %3 : vector<4x8x128xbf16> to vector<32x128xbf16>
    %c0_3 = arith.constant 0 : index
    %c0_4 = arith.constant 0 : index
    %5 = vector.load %arg3[%c0_3, %c0_4] : memref<128x512xbf16, #tpu.memory_space<vmem>>, vector<128x512xbf16>
    %cst = arith.constant dense<0.000000e+00> : vector<32x512xf32>
    %6 = tpu.matmul %4, %5, %cst {dimension_numbers = #tpu.dot_dimension_numbers<[1], [0], [0], [1], [0, 0, 1, 1], [], []>} : vector<32x128xbf16>, vector<128x512xbf16>, vector<32x512xf32> -> vector<32x512xf32>
    %c0_5 = arith.constant 0 : index
    %c0_6 = arith.constant 0 : index
    %7 = vector.load %arg5[%c0_5, %c0_6] : memref<1x512xf32, #tpu.memory_space<vmem>>, vector<1x512xf32>
    %8 = vector.broadcast %7 : vector<1x512xf32> to vector<32x512xf32>
    %9 = arith.addf %6, %8 : vector<32x512xf32>
    %10 = vector.shape_cast %9 : vector<32x512xf32> to vector<4x8x512xf32>
    %c0_7 = arith.constant 0 : index
    %c0_8 = arith.constant 0 : index
    %c0_9 = arith.constant 0 : index
    %11 = vector.load %arg7[%c0_7, %c0_8, %c0_9] : memref<4x8x512xf32, #tpu.memory_space<vmem>>, vector<4x8x512xf32>
    tpu.vector_store %arg7[%c0_7, %c0_8, %c0_9], %10 {strides = array<i32>} : memref<4x8x512xf32, #tpu.memory_space<vmem>>, vector<4x8x512xf32>,
    %c0_10 = arith.constant 0 : index
    %c0_11 = arith.constant 0 : index
    %12 = vector.load %arg4[%c0_10, %c0_11] : memref<128x512xbf16, #tpu.memory_space<vmem>>, vector<128x512xbf16>
    %c0_12 = arith.constant 0 : index
    %c0_13 = arith.constant 0 : index
    %13 = vector.load %arg8[%c0_12, %c0_13] : memref<8x128xf32, #tpu.memory_space<vmem>>, vector<8x128xf32>
    %c0_14 = arith.constant 0 : index
    %c0_15 = arith.constant 0 : index
    %14 = vector.load %arg9[%c0_14, %c0_15] : memref<8x128xf32, #tpu.memory_space<vmem>>, vector<8x128xf32>
    %c0_16 = arith.constant 0 : index
    %c0_17 = arith.constant 0 : index
    %c0_18 = arith.constant 0 : index
    %15 = vector.load %arg7[%c0_16, %c0_17, %c0_18] : memref<4x8x512xf32, #tpu.memory_space<vmem>>, vector<1x8x512xf32>
    %16 = vector.shape_cast %15 : vector<1x8x512xf32> to vector<8x512xf32>
    %17 = arith.truncf %13 : vector<8x128xf32> to vector<8x128xbf16>
    %cst_19 = arith.constant dense<0.000000e+00> : vector<8x512xf32>
    %18 = tpu.matmul %17, %12, %cst_19 {dimension_numbers = #tpu.dot_dimension_numbers<[1], [0], [0], [1], [0, 0, 1, 1], [], []>} : vector<8x128xbf16>, vector<128x512xbf16>, vector<8x512xf32> -> vector<8x512xf32>
    %19 = arith.addf %16, %18 : vector<8x512xf32>
    %20 = vector.extract_strided_slice %19 {offsets = [0, 0], sizes = [8, 128], strides = [1, 1]} : vector<8x512xf32> to vector<8x128xf32>
    %21 = arith.negf %20 : vector<8x128xf32>
    %22 = math.exp %21 : vector<8x128xf32>
    %cst_20 = arith.constant 1.000000e+00 : f32
    %23 = vector.broadcast %cst_20 : f32 to vector<8x128xf32>
    %24 = arith.addf %23, %22 : vector<8x128xf32>
    %25 = arith.divf %23, %24 : vector<8x128xf32>
    %26 = vector.extract_strided_slice %19 {offsets = [0, 128], sizes = [8, 128], strides = [1, 1]} : vector<8x512xf32> to vector<8x128xf32>
    %27 = arith.negf %26 : vector<8x128xf32>
    %28 = math.exp %27 : vector<8x128xf32>
    %cst_21 = arith.constant 1.000000e+00 : f32
    %29 = vector.broadcast %cst_21 : f32 to vector<8x128xf32>
    %30 = arith.addf %29, %28 : vector<8x128xf32>
    %31 = arith.divf %29, %30 : vector<8x128xf32>
    %32 = vector.extract_strided_slice %19 {offsets = [0, 256], sizes = [8, 128], strides = [1, 1]} : vector<8x512xf32> to vector<8x128xf32>
    %33 = math.tanh %32 : vector<8x128xf32>
    %34 = vector.extract_strided_slice %19 {offsets = [0, 384], sizes = [8, 128], strides = [1, 1]} : vector<8x512xf32> to vector<8x128xf32>
    %35 = arith.negf %34 : vector<8x128xf32>
    %36 = math.exp %35 : vector<8x128xf32>
    %cst_22 = arith.constant 1.000000e+00 : f32
    %37 = vector.broadcast %cst_22 : f32 to vector<8x128xf32>
    %38 = arith.addf %37, %36 : vector<8x128xf32>
    %39 = arith.divf %37, %38 : vector<8x128xf32>
    %40 = arith.mulf %31, %14 : vector<8x128xf32>
    %41 = arith.mulf %25, %33 : vector<8x128xf32>
    %42 = arith.addf %40, %41 : vector<8x128xf32>
    %43 = math.tanh %42 : vector<8x128xf32>
    %44 = arith.mulf %39, %43 : vector<8x128xf32>
    %45 = arith.truncf %44 : vector<8x128xf32> to vector<8x128xbf16>
    %c0_23 = arith.constant 0 : index
    %c0_24 = arith.constant 0 : index
    %c0_25 = arith.constant 0 : index
    %46 = vector.load %arg6[%c0_23, %c0_24, %c0_25] : memref<4x8x128xbf16, #tpu.memory_space<vmem>>, vector<1x8x128xbf16>
    %47 = vector.shape_cast %46 : vector<1x8x128xbf16> to vector<8x128xbf16>
    %48 = vector.shape_cast %45 : vector<8x128xbf16> to vector<1x8x128xbf16>
    tpu.vector_store %arg6[%c0_23, %c0_24, %c0_25], %48 {strides = array<i32>} : memref<4x8x128xbf16, #tpu.memory_space<vmem>>, vector<1x8x128xbf16>,
    %c1 = arith.constant 1 : index
    %c0_26 = arith.constant 0 : index
    %c0_27 = arith.constant 0 : index
    %49 = vector.load %arg7[%c1, %c0_26, %c0_27] : memref<4x8x512xf32, #tpu.memory_space<vmem>>, vector<1x8x512xf32>
    %50 = vector.shape_cast %49 : vector<1x8x512xf32> to vector<8x512xf32>
    %51 = arith.truncf %44 : vector<8x128xf32> to vector<8x128xbf16>
    %cst_28 = arith.constant dense<0.000000e+00> : vector<8x512xf32>
    %52 = tpu.matmul %51, %12, %cst_28 {dimension_numbers = #tpu.dot_dimension_numbers<[1], [0], [0], [1], [0, 0, 1, 1], [], []>} : vector<8x128xbf16>, vector<128x512xbf16>, vector<8x512xf32> -> vector<8x512xf32>
    %53 = arith.addf %50, %52 : vector<8x512xf32>
    %54 = vector.extract_strided_slice %53 {offsets = [0, 0], sizes = [8, 128], strides = [1, 1]} : vector<8x512xf32> to vector<8x128xf32>
    %55 = arith.negf %54 : vector<8x128xf32>
    %56 = math.exp %55 : vector<8x128xf32>
    %cst_29 = arith.constant 1.000000e+00 : f32
    %57 = vector.broadcast %cst_29 : f32 to vector<8x128xf32>
    %58 = arith.addf %57, %56 : vector<8x128xf32>
    %59 = arith.divf %57, %58 : vector<8x128xf32>
    %60 = vector.extract_strided_slice %53 {offsets = [0, 128], sizes = [8, 128], strides = [1, 1]} : vector<8x512xf32> to vector<8x128xf32>
    %61 = arith.negf %60 : vector<8x128xf32>
    %62 = math.exp %61 : vector<8x128xf32>
    %cst_30 = arith.constant 1.000000e+00 : f32
    %63 = vector.broadcast %cst_30 : f32 to vector<8x128xf32>
    %64 = arith.addf %63, %62 : vector<8x128xf32>
    %65 = arith.divf %63, %64 : vector<8x128xf32>
    %66 = vector.extract_strided_slice %53 {offsets = [0, 256], sizes = [8, 128], strides = [1, 1]} : vector<8x512xf32> to vector<8x128xf32>
    %67 = math.tanh %66 : vector<8x128xf32>
    %68 = vector.extract_strided_slice %53 {offsets = [0, 384], sizes = [8, 128], strides = [1, 1]} : vector<8x512xf32> to vector<8x128xf32>
    %69 = arith.negf %68 : vector<8x128xf32>
    %70 = math.exp %69 : vector<8x128xf32>
    %cst_31 = arith.constant 1.000000e+00 : f32
    %71 = vector.broadcast %cst_31 : f32 to vector<8x128xf32>
    %72 = arith.addf %71, %70 : vector<8x128xf32>
    %73 = arith.divf %71, %72 : vector<8x128xf32>
    %74 = arith.mulf %65, %42 : vector<8x128xf32>
    %75 = arith.mulf %59, %67 : vector<8x128xf32>
    %76 = arith.addf %74, %75 : vector<8x128xf32>
    %77 = math.tanh %76 : vector<8x128xf32>
    %78 = arith.mulf %73, %77 : vector<8x128xf32>
    %79 = arith.truncf %78 : vector<8x128xf32> to vector<8x128xbf16>
    %c1_32 = arith.constant 1 : index
    %c0_33 = arith.constant 0 : index
    %c0_34 = arith.constant 0 : index
    %80 = vector.load %arg6[%c1_32, %c0_33, %c0_34] : memref<4x8x128xbf16, #tpu.memory_space<vmem>>, vector<1x8x128xbf16>
    %81 = vector.shape_cast %80 : vector<1x8x128xbf16> to vector<8x128xbf16>
    %82 = vector.shape_cast %79 : vector<8x128xbf16> to vector<1x8x128xbf16>
    tpu.vector_store %arg6[%c1_32, %c0_33, %c0_34], %82 {strides = array<i32>} : memref<4x8x128xbf16, #tpu.memory_space<vmem>>, vector<1x8x128xbf16>,
    %c2 = arith.constant 2 : index
    %c0_35 = arith.constant 0 : index
    %c0_36 = arith.constant 0 : index
    %83 = vector.load %arg7[%c2, %c0_35, %c0_36] : memref<4x8x512xf32, #tpu.memory_space<vmem>>, vector<1x8x512xf32>
    %84 = vector.shape_cast %83 : vector<1x8x512xf32> to vector<8x512xf32>
    %85 = arith.truncf %78 : vector<8x128xf32> to vector<8x128xbf16>
    %cst_37 = arith.constant dense<0.000000e+00> : vector<8x512xf32>
    %86 = tpu.matmul %85, %12, %cst_37 {dimension_numbers = #tpu.dot_dimension_numbers<[1], [0], [0], [1], [0, 0, 1, 1], [], []>} : vector<8x128xbf16>, vector<128x512xbf16>, vector<8x512xf32> -> vector<8x512xf32>
    %87 = arith.addf %84, %86 : vector<8x512xf32>
    %88 = vector.extract_strided_slice %87 {offsets = [0, 0], sizes = [8, 128], strides = [1, 1]} : vector<8x512xf32> to vector<8x128xf32>
    %89 = arith.negf %88 : vector<8x128xf32>
    %90 = math.exp %89 : vector<8x128xf32>
    %cst_38 = arith.constant 1.000000e+00 : f32
    %91 = vector.broadcast %cst_38 : f32 to vector<8x128xf32>
    %92 = arith.addf %91, %90 : vector<8x128xf32>
    %93 = arith.divf %91, %92 : vector<8x128xf32>
    %94 = vector.extract_strided_slice %87 {offsets = [0, 128], sizes = [8, 128], strides = [1, 1]} : vector<8x512xf32> to vector<8x128xf32>
    %95 = arith.negf %94 : vector<8x128xf32>
    %96 = math.exp %95 : vector<8x128xf32>
    %cst_39 = arith.constant 1.000000e+00 : f32
    %97 = vector.broadcast %cst_39 : f32 to vector<8x128xf32>
    %98 = arith.addf %97, %96 : vector<8x128xf32>
    %99 = arith.divf %97, %98 : vector<8x128xf32>
    %100 = vector.extract_strided_slice %87 {offsets = [0, 256], sizes = [8, 128], strides = [1, 1]} : vector<8x512xf32> to vector<8x128xf32>
    %101 = math.tanh %100 : vector<8x128xf32>
    %102 = vector.extract_strided_slice %87 {offsets = [0, 384], sizes = [8, 128], strides = [1, 1]} : vector<8x512xf32> to vector<8x128xf32>
    %103 = arith.negf %102 : vector<8x128xf32>
    %104 = math.exp %103 : vector<8x128xf32>
    %cst_40 = arith.constant 1.000000e+00 : f32
    %105 = vector.broadcast %cst_40 : f32 to vector<8x128xf32>
    %106 = arith.addf %105, %104 : vector<8x128xf32>
    %107 = arith.divf %105, %106 : vector<8x128xf32>
    %108 = arith.mulf %99, %76 : vector<8x128xf32>
    %109 = arith.mulf %93, %101 : vector<8x128xf32>
    %110 = arith.addf %108, %109 : vector<8x128xf32>
    %111 = math.tanh %110 : vector<8x128xf32>
    %112 = arith.mulf %107, %111 : vector<8x128xf32>
    %113 = arith.truncf %112 : vector<8x128xf32> to vector<8x128xbf16>
    %c2_41 = arith.constant 2 : index
    %c0_42 = arith.constant 0 : index
    %c0_43 = arith.constant 0 : index
    %114 = vector.load %arg6[%c2_41, %c0_42, %c0_43] : memref<4x8x128xbf16, #tpu.memory_space<vmem>>, vector<1x8x128xbf16>
    %115 = vector.shape_cast %114 : vector<1x8x128xbf16> to vector<8x128xbf16>
    %116 = vector.shape_cast %113 : vector<8x128xbf16> to vector<1x8x128xbf16>
    tpu.vector_store %arg6[%c2_41, %c0_42, %c0_43], %116 {strides = array<i32>} : memref<4x8x128xbf16, #tpu.memory_space<vmem>>, vector<1x8x128xbf16>,
    %c3 = arith.constant 3 : index
    %c0_44 = arith.constant 0 : index
    %c0_45 = arith.constant 0 : index
    %117 = vector.load %arg7[%c3, %c0_44, %c0_45] : memref<4x8x512xf32, #tpu.memory_space<vmem>>, vector<1x8x512xf32>
    %118 = vector.shape_cast %117 : vector<1x8x512xf32> to vector<8x512xf32>
    %119 = arith.truncf %112 : vector<8x128xf32> to vector<8x128xbf16>
    %cst_46 = arith.constant dense<0.000000e+00> : vector<8x512xf32>
    %120 = tpu.matmul %119, %12, %cst_46 {dimension_numbers = #tpu.dot_dimension_numbers<[1], [0], [0], [1], [0, 0, 1, 1], [], []>} : vector<8x128xbf16>, vector<128x512xbf16>, vector<8x512xf32> -> vector<8x512xf32>
    %121 = arith.addf %118, %120 : vector<8x512xf32>
    %122 = vector.extract_strided_slice %121 {offsets = [0, 0], sizes = [8, 128], strides = [1, 1]} : vector<8x512xf32> to vector<8x128xf32>
    %123 = arith.negf %122 : vector<8x128xf32>
    %124 = math.exp %123 : vector<8x128xf32>
    %cst_47 = arith.constant 1.000000e+00 : f32
    %125 = vector.broadcast %cst_47 : f32 to vector<8x128xf32>
    %126 = arith.addf %125, %124 : vector<8x128xf32>
    %127 = arith.divf %125, %126 : vector<8x128xf32>
    %128 = vector.extract_strided_slice %121 {offsets = [0, 128], sizes = [8, 128], strides = [1, 1]} : vector<8x512xf32> to vector<8x128xf32>
    %129 = arith.negf %128 : vector<8x128xf32>
    %130 = math.exp %129 : vector<8x128xf32>
    %cst_48 = arith.constant 1.000000e+00 : f32
    %131 = vector.broadcast %cst_48 : f32 to vector<8x128xf32>
    %132 = arith.addf %131, %130 : vector<8x128xf32>
    %133 = arith.divf %131, %132 : vector<8x128xf32>
    %134 = vector.extract_strided_slice %121 {offsets = [0, 256], sizes = [8, 128], strides = [1, 1]} : vector<8x512xf32> to vector<8x128xf32>
    %135 = math.tanh %134 : vector<8x128xf32>
    %136 = vector.extract_strided_slice %121 {offsets = [0, 384], sizes = [8, 128], strides = [1, 1]} : vector<8x512xf32> to vector<8x128xf32>
    %137 = arith.negf %136 : vector<8x128xf32>
    %138 = math.exp %137 : vector<8x128xf32>
    %cst_49 = arith.constant 1.000000e+00 : f32
    %139 = vector.broadcast %cst_49 : f32 to vector<8x128xf32>
    %140 = arith.addf %139, %138 : vector<8x128xf32>
    %141 = arith.divf %139, %140 : vector<8x128xf32>
    %142 = arith.mulf %133, %110 : vector<8x128xf32>
    %143 = arith.mulf %127, %135 : vector<8x128xf32>
    %144 = arith.addf %142, %143 : vector<8x128xf32>
    %145 = math.tanh %144 : vector<8x128xf32>
    %146 = arith.mulf %141, %145 : vector<8x128xf32>
    %147 = arith.truncf %146 : vector<8x128xf32> to vector<8x128xbf16>
    %c3_50 = arith.constant 3 : index
    %c0_51 = arith.constant 0 : index
    %c0_52 = arith.constant 0 : index
    %148 = vector.load %arg6[%c3_50, %c0_51, %c0_52] : memref<4x8x128xbf16, #tpu.memory_space<vmem>>, vector<1x8x128xbf16>
    %149 = vector.shape_cast %148 : vector<1x8x128xbf16> to vector<8x128xbf16>
    %150 = vector.shape_cast %147 : vector<8x128xbf16> to vector<1x8x128xbf16>
    tpu.vector_store %arg6[%c3_50, %c0_51, %c0_52], %150 {strides = array<i32>} : memref<4x8x128xbf16, #tpu.memory_space<vmem>>, vector<1x8x128xbf16>,
    %c0_53 = arith.constant 0 : index
    %c0_54 = arith.constant 0 : index
    %151 = vector.load %arg8[%c0_53, %c0_54] : memref<8x128xf32, #tpu.memory_space<vmem>>, vector<8x128xf32>
    tpu.vector_store %arg8[%c0_53, %c0_54], %146 {strides = array<i32>} : memref<8x128xf32, #tpu.memory_space<vmem>>, vector<8x128xf32>,
    %c0_55 = arith.constant 0 : index
    %c0_56 = arith.constant 0 : index
    %152 = vector.load %arg9[%c0_55, %c0_56] : memref<8x128xf32, #tpu.memory_space<vmem>>, vector<8x128xf32>
    tpu.vector_store %arg9[%c0_55, %c0_56], %144 {strides = array<i32>} : memref<8x128xf32, #tpu.memory_space<vmem>>, vector<8x128xf32>,
    return
  }
  func.func @transform_0(%arg0: i32, %arg1: i32) -> (i32, i32, i32) {
    %c0_i32 = arith.constant 0 : i32
    %c0_i32_0 = arith.constant 0 : i32
    return %arg1, %arg0, %c0_i32 : i32, i32, i32
  }
  func.func @transform_1(%arg0: i32, %arg1: i32) -> (i32, i32) {
    %c0_i32 = arith.constant 0 : i32
    %c0_i32_0 = arith.constant 0 : i32
    %c0_i32_1 = arith.constant 0 : i32
    return %c0_i32, %c0_i32_0 : i32, i32
  }
  func.func @transform_2(%arg0: i32, %arg1: i32) -> (i32, i32) {
    %c0_i32 = arith.constant 0 : i32
    %c0_i32_0 = arith.constant 0 : i32
    %c0_i32_1 = arith.constant 0 : i32
    return %c0_i32, %c0_i32_0 : i32, i32
  }
  func.func @transform_3(%arg0: i32, %arg1: i32) -> (i32, i32) {
    %c0_i32 = arith.constant 0 : i32
    %c0_i32_0 = arith.constant 0 : i32
    %c0_i32_1 = arith.constant 0 : i32
    return %c0_i32, %c0_i32_0 : i32, i32
  }
  func.func @transform_4(%arg0: i32, %arg1: i32) -> (i32, i32, i32) {
    %c0_i32 = arith.constant 0 : i32
    %c0_i32_0 = arith.constant 0 : i32
    return %arg1, %arg0, %c0_i32 : i32, i32, i32
  }
}

module attributes {stable_mosaic.version = 11 : i64} {
  func.func @_lstm_layer_kernel(%arg0: i32, %arg1: i32, %arg2: memref<4x8x128xbf16, #tpu.memory_space<vmem>>, %arg3: memref<128x512xbf16, #tpu.memory_space<vmem>>, %arg4: memref<128x512xbf16, #tpu.memory_space<vmem>>, %arg5: memref<1x512xf32, #tpu.memory_space<vmem>>, %arg6: memref<4x8x128xbf16, #tpu.memory_space<vmem>>, %arg7: memref<4x8x512xf32, #tpu.memory_space<vmem>>, %arg8: memref<8x128xf32, #tpu.memory_space<vmem>>, %arg9: memref<8x128xf32, #tpu.memory_space<vmem>>) attributes {dimension_semantics = [#tpu.dimension_semantics<parallel>, #tpu.dimension_semantics<arbitrary>], iteration_bounds = array<i64: 1, 2>, scalar_prefetch = 0 : i64, scratch_operands = 3 : i64, tpu.core_type = #tpu.core_type<tc>, window_params = [{transform_indices = @transform_0, window_bounds = array<i64: 4, 8, 128>}, {pipeline_mode = #tpu.pipeline_mode<synchronous>, transform_indices = @transform_1, window_bounds = array<i64: 128, 512>}, {pipeline_mode = #tpu.pipeline_mode<synchronous>, transform_indices = @transform_2, window_bounds = array<i64: 128, 512>}, {pipeline_mode = #tpu.pipeline_mode<synchronous>, transform_indices = @transform_3, window_bounds = array<i64: 1, 512>}, {transform_indices = @transform_4, window_bounds = array<i64: 4, 8, 128>}]} {
    %c0_i32 = arith.constant 0 : i32
    %0 = arith.cmpi eq, %arg1, %c0_i32 : i32
    %1 = arith.extui %0 : i1 to i32
    %c0_i32_0 = arith.constant 0 : i32
    %2 = arith.cmpi ne, %1, %c0_i32_0 : i32
    scf.if %2 {
      %cst_57 = arith.constant 0.000000e+00 : f32
      %153 = vector.broadcast %cst_57 : f32 to vector<8x128xf32>
      %c0_58 = arith.constant 0 : index
      %c0_59 = arith.constant 0 : index
      %154 = vector.load %arg8[%c0_58, %c0_59] : memref<8x128xf32, #tpu.memory_space<vmem>>, vector<8x128xf32>
      tpu.vector_store %arg8[%c0_58, %c0_59], %153 {strides = array<i32>} : memref<8x128xf32, #tpu.memory_space<vmem>>, vector<8x128xf32>,
      %cst_60 = arith.constant 0.000000e+00 : f32
      %155 = vector.broadcast %cst_60 : f32 to vector<8x128xf32>
      %c0_61 = arith.constant 0 : index
      %c0_62 = arith.constant 0 : index
      %156 = vector.load %arg9[%c0_61, %c0_62] : memref<8x128xf32, #tpu.memory_space<vmem>>, vector<8x128xf32>
      tpu.vector_store %arg9[%c0_61, %c0_62], %155 {strides = array<i32>} : memref<8x128xf32, #tpu.memory_space<vmem>>, vector<8x128xf32>,
    } else {
    }
    %c0 = arith.constant 0 : index
    %c0_1 = arith.constant 0 : index
    %c0_2 = arith.constant 0 : index
    %3 = vector.load %arg2[%c0, %c0_1, %c0_2] : memref<4x8x128xbf16, #tpu.memory_space<vmem>>, vector<4x8x128xbf16>
    %4 = vector.shape_cast %3 : vector<4x8x128xbf16> to vector<32x128xbf16>
    %c0_3 = arith.constant 0 : index
    %c0_4 = arith.constant 0 : index
    %5 = vector.load %arg3[%c0_3, %c0_4] : memref<128x512xbf16, #tpu.memory_space<vmem>>, vector<128x512xbf16>
    %cst = arith.constant dense<0.000000e+00> : vector<32x512xf32>
    %6 = tpu.matmul %4, %5, %cst {dimension_numbers = #tpu.dot_dimension_numbers<[1], [0], [0], [1], [0, 0, 1, 1], [], []>} : vector<32x128xbf16>, vector<128x512xbf16>, vector<32x512xf32> -> vector<32x512xf32>
    %c0_5 = arith.constant 0 : index
    %c0_6 = arith.constant 0 : index
    %7 = vector.load %arg5[%c0_5, %c0_6] : memref<1x512xf32, #tpu.memory_space<vmem>>, vector<1x512xf32>
    %8 = vector.broadcast %7 : vector<1x512xf32> to vector<32x512xf32>
    %9 = arith.addf %6, %8 : vector<32x512xf32>
    %10 = vector.shape_cast %9 : vector<32x512xf32> to vector<4x8x512xf32>
    %c0_7 = arith.constant 0 : index
    %c0_8 = arith.constant 0 : index
    %c0_9 = arith.constant 0 : index
    %11 = vector.load %arg7[%c0_7, %c0_8, %c0_9] : memref<4x8x512xf32, #tpu.memory_space<vmem>>, vector<4x8x512xf32>
    tpu.vector_store %arg7[%c0_7, %c0_8, %c0_9], %10 {strides = array<i32>} : memref<4x8x512xf32, #tpu.memory_space<vmem>>, vector<4x8x512xf32>,
    %c0_10 = arith.constant 0 : index
    %c0_11 = arith.constant 0 : index
    %12 = vector.load %arg4[%c0_10, %c0_11] : memref<128x512xbf16, #tpu.memory_space<vmem>>, vector<128x512xbf16>
    %c0_12 = arith.constant 0 : index
    %c0_13 = arith.constant 0 : index
    %13 = vector.load %arg8[%c0_12, %c0_13] : memref<8x128xf32, #tpu.memory_space<vmem>>, vector<8x128xf32>
    %c0_14 = arith.constant 0 : index
    %c0_15 = arith.constant 0 : index
    %14 = vector.load %arg9[%c0_14, %c0_15] : memref<8x128xf32, #tpu.memory_space<vmem>>, vector<8x128xf32>
    %c0_16 = arith.constant 0 : index
    %c0_17 = arith.constant 0 : index
    %c0_18 = arith.constant 0 : index
    %15 = vector.load %arg7[%c0_16, %c0_17, %c0_18] : memref<4x8x512xf32, #tpu.memory_space<vmem>>, vector<1x8x512xf32>
    %16 = vector.shape_cast %15 : vector<1x8x512xf32> to vector<8x512xf32>
    %17 = arith.truncf %13 : vector<8x128xf32> to vector<8x128xbf16>
    %cst_19 = arith.constant dense<0.000000e+00> : vector<8x512xf32>
    %18 = tpu.matmul %17, %12, %cst_19 {dimension_numbers = #tpu.dot_dimension_numbers<[1], [0], [0], [1], [0, 0, 1, 1], [], []>} : vector<8x128xbf16>, vector<128x512xbf16>, vector<8x512xf32> -> vector<8x512xf32>
    %19 = arith.addf %16, %18 : vector<8x512xf32>
    %20 = vector.extract_strided_slice %19 {offsets = [0, 0], sizes = [8, 128], strides = [1, 1]} : vector<8x512xf32> to vector<8x128xf32>
    %21 = arith.negf %20 : vector<8x128xf32>
    %22 = math.exp %21 : vector<8x128xf32>
    %cst_20 = arith.constant 1.000000e+00 : f32
    %23 = vector.broadcast %cst_20 : f32 to vector<8x128xf32>
    %24 = arith.addf %23, %22 : vector<8x128xf32>
    %25 = arith.divf %23, %24 : vector<8x128xf32>
    %26 = vector.extract_strided_slice %19 {offsets = [0, 128], sizes = [8, 128], strides = [1, 1]} : vector<8x512xf32> to vector<8x128xf32>
    %27 = arith.negf %26 : vector<8x128xf32>
    %28 = math.exp %27 : vector<8x128xf32>
    %cst_21 = arith.constant 1.000000e+00 : f32
    %29 = vector.broadcast %cst_21 : f32 to vector<8x128xf32>
    %30 = arith.addf %29, %28 : vector<8x128xf32>
    %31 = arith.divf %29, %30 : vector<8x128xf32>
    %32 = vector.extract_strided_slice %19 {offsets = [0, 256], sizes = [8, 128], strides = [1, 1]} : vector<8x512xf32> to vector<8x128xf32>
    %33 = math.tanh %32 : vector<8x128xf32>
    %34 = vector.extract_strided_slice %19 {offsets = [0, 384], sizes = [8, 128], strides = [1, 1]} : vector<8x512xf32> to vector<8x128xf32>
    %35 = arith.negf %34 : vector<8x128xf32>
    %36 = math.exp %35 : vector<8x128xf32>
    %cst_22 = arith.constant 1.000000e+00 : f32
    %37 = vector.broadcast %cst_22 : f32 to vector<8x128xf32>
    %38 = arith.addf %37, %36 : vector<8x128xf32>
    %39 = arith.divf %37, %38 : vector<8x128xf32>
    %40 = arith.mulf %31, %14 : vector<8x128xf32>
    %41 = arith.mulf %25, %33 : vector<8x128xf32>
    %42 = arith.addf %40, %41 : vector<8x128xf32>
    %43 = math.tanh %42 : vector<8x128xf32>
    %44 = arith.mulf %39, %43 : vector<8x128xf32>
    %45 = arith.truncf %44 : vector<8x128xf32> to vector<8x128xbf16>
    %c0_23 = arith.constant 0 : index
    %c0_24 = arith.constant 0 : index
    %c0_25 = arith.constant 0 : index
    %46 = vector.load %arg6[%c0_23, %c0_24, %c0_25] : memref<4x8x128xbf16, #tpu.memory_space<vmem>>, vector<1x8x128xbf16>
    %47 = vector.shape_cast %46 : vector<1x8x128xbf16> to vector<8x128xbf16>
    %48 = vector.shape_cast %45 : vector<8x128xbf16> to vector<1x8x128xbf16>
    tpu.vector_store %arg6[%c0_23, %c0_24, %c0_25], %48 {strides = array<i32>} : memref<4x8x128xbf16, #tpu.memory_space<vmem>>, vector<1x8x128xbf16>,
    %c1 = arith.constant 1 : index
    %c0_26 = arith.constant 0 : index
    %c0_27 = arith.constant 0 : index
    %49 = vector.load %arg7[%c1, %c0_26, %c0_27] : memref<4x8x512xf32, #tpu.memory_space<vmem>>, vector<1x8x512xf32>
    %50 = vector.shape_cast %49 : vector<1x8x512xf32> to vector<8x512xf32>
    %51 = arith.truncf %44 : vector<8x128xf32> to vector<8x128xbf16>
    %cst_28 = arith.constant dense<0.000000e+00> : vector<8x512xf32>
    %52 = tpu.matmul %51, %12, %cst_28 {dimension_numbers = #tpu.dot_dimension_numbers<[1], [0], [0], [1], [0, 0, 1, 1], [], []>} : vector<8x128xbf16>, vector<128x512xbf16>, vector<8x512xf32> -> vector<8x512xf32>
    %53 = arith.addf %50, %52 : vector<8x512xf32>
    %54 = vector.extract_strided_slice %53 {offsets = [0, 0], sizes = [8, 128], strides = [1, 1]} : vector<8x512xf32> to vector<8x128xf32>
    %55 = arith.negf %54 : vector<8x128xf32>
    %56 = math.exp %55 : vector<8x128xf32>
    %cst_29 = arith.constant 1.000000e+00 : f32
    %57 = vector.broadcast %cst_29 : f32 to vector<8x128xf32>
    %58 = arith.addf %57, %56 : vector<8x128xf32>
    %59 = arith.divf %57, %58 : vector<8x128xf32>
    %60 = vector.extract_strided_slice %53 {offsets = [0, 128], sizes = [8, 128], strides = [1, 1]} : vector<8x512xf32> to vector<8x128xf32>
    %61 = arith.negf %60 : vector<8x128xf32>
    %62 = math.exp %61 : vector<8x128xf32>
    %cst_30 = arith.constant 1.000000e+00 : f32
    %63 = vector.broadcast %cst_30 : f32 to vector<8x128xf32>
    %64 = arith.addf %63, %62 : vector<8x128xf32>
    %65 = arith.divf %63, %64 : vector<8x128xf32>
    %66 = vector.extract_strided_slice %53 {offsets = [0, 256], sizes = [8, 128], strides = [1, 1]} : vector<8x512xf32> to vector<8x128xf32>
    %67 = math.tanh %66 : vector<8x128xf32>
    %68 = vector.extract_strided_slice %53 {offsets = [0, 384], sizes = [8, 128], strides = [1, 1]} : vector<8x512xf32> to vector<8x128xf32>
    %69 = arith.negf %68 : vector<8x128xf32>
    %70 = math.exp %69 : vector<8x128xf32>
    %cst_31 = arith.constant 1.000000e+00 : f32
    %71 = vector.broadcast %cst_31 : f32 to vector<8x128xf32>
    %72 = arith.addf %71, %70 : vector<8x128xf32>
    %73 = arith.divf %71, %72 : vector<8x128xf32>
    %74 = arith.mulf %65, %42 : vector<8x128xf32>
    %75 = arith.mulf %59, %67 : vector<8x128xf32>
    %76 = arith.addf %74, %75 : vector<8x128xf32>
    %77 = math.tanh %76 : vector<8x128xf32>
    %78 = arith.mulf %73, %77 : vector<8x128xf32>
    %79 = arith.truncf %78 : vector<8x128xf32> to vector<8x128xbf16>
    %c1_32 = arith.constant 1 : index
    %c0_33 = arith.constant 0 : index
    %c0_34 = arith.constant 0 : index
    %80 = vector.load %arg6[%c1_32, %c0_33, %c0_34] : memref<4x8x128xbf16, #tpu.memory_space<vmem>>, vector<1x8x128xbf16>
    %81 = vector.shape_cast %80 : vector<1x8x128xbf16> to vector<8x128xbf16>
    %82 = vector.shape_cast %79 : vector<8x128xbf16> to vector<1x8x128xbf16>
    tpu.vector_store %arg6[%c1_32, %c0_33, %c0_34], %82 {strides = array<i32>} : memref<4x8x128xbf16, #tpu.memory_space<vmem>>, vector<1x8x128xbf16>,
    %c2 = arith.constant 2 : index
    %c0_35 = arith.constant 0 : index
    %c0_36 = arith.constant 0 : index
    %83 = vector.load %arg7[%c2, %c0_35, %c0_36] : memref<4x8x512xf32, #tpu.memory_space<vmem>>, vector<1x8x512xf32>
    %84 = vector.shape_cast %83 : vector<1x8x512xf32> to vector<8x512xf32>
    %85 = arith.truncf %78 : vector<8x128xf32> to vector<8x128xbf16>
    %cst_37 = arith.constant dense<0.000000e+00> : vector<8x512xf32>
    %86 = tpu.matmul %85, %12, %cst_37 {dimension_numbers = #tpu.dot_dimension_numbers<[1], [0], [0], [1], [0, 0, 1, 1], [], []>} : vector<8x128xbf16>, vector<128x512xbf16>, vector<8x512xf32> -> vector<8x512xf32>
    %87 = arith.addf %84, %86 : vector<8x512xf32>
    %88 = vector.extract_strided_slice %87 {offsets = [0, 0], sizes = [8, 128], strides = [1, 1]} : vector<8x512xf32> to vector<8x128xf32>
    %89 = arith.negf %88 : vector<8x128xf32>
    %90 = math.exp %89 : vector<8x128xf32>
    %cst_38 = arith.constant 1.000000e+00 : f32
    %91 = vector.broadcast %cst_38 : f32 to vector<8x128xf32>
    %92 = arith.addf %91, %90 : vector<8x128xf32>
    %93 = arith.divf %91, %92 : vector<8x128xf32>
    %94 = vector.extract_strided_slice %87 {offsets = [0, 128], sizes = [8, 128], strides = [1, 1]} : vector<8x512xf32> to vector<8x128xf32>
    %95 = arith.negf %94 : vector<8x128xf32>
    %96 = math.exp %95 : vector<8x128xf32>
    %cst_39 = arith.constant 1.000000e+00 : f32
    %97 = vector.broadcast %cst_39 : f32 to vector<8x128xf32>
    %98 = arith.addf %97, %96 : vector<8x128xf32>
    %99 = arith.divf %97, %98 : vector<8x128xf32>
    %100 = vector.extract_strided_slice %87 {offsets = [0, 256], sizes = [8, 128], strides = [1, 1]} : vector<8x512xf32> to vector<8x128xf32>
    %101 = math.tanh %100 : vector<8x128xf32>
    %102 = vector.extract_strided_slice %87 {offsets = [0, 384], sizes = [8, 128], strides = [1, 1]} : vector<8x512xf32> to vector<8x128xf32>
    %103 = arith.negf %102 : vector<8x128xf32>
    %104 = math.exp %103 : vector<8x128xf32>
    %cst_40 = arith.constant 1.000000e+00 : f32
    %105 = vector.broadcast %cst_40 : f32 to vector<8x128xf32>
    %106 = arith.addf %105, %104 : vector<8x128xf32>
    %107 = arith.divf %105, %106 : vector<8x128xf32>
    %108 = arith.mulf %99, %76 : vector<8x128xf32>
    %109 = arith.mulf %93, %101 : vector<8x128xf32>
    %110 = arith.addf %108, %109 : vector<8x128xf32>
    %111 = math.tanh %110 : vector<8x128xf32>
    %112 = arith.mulf %107, %111 : vector<8x128xf32>
    %113 = arith.truncf %112 : vector<8x128xf32> to vector<8x128xbf16>
    %c2_41 = arith.constant 2 : index
    %c0_42 = arith.constant 0 : index
    %c0_43 = arith.constant 0 : index
    %114 = vector.load %arg6[%c2_41, %c0_42, %c0_43] : memref<4x8x128xbf16, #tpu.memory_space<vmem>>, vector<1x8x128xbf16>
    %115 = vector.shape_cast %114 : vector<1x8x128xbf16> to vector<8x128xbf16>
    %116 = vector.shape_cast %113 : vector<8x128xbf16> to vector<1x8x128xbf16>
    tpu.vector_store %arg6[%c2_41, %c0_42, %c0_43], %116 {strides = array<i32>} : memref<4x8x128xbf16, #tpu.memory_space<vmem>>, vector<1x8x128xbf16>,
    %c3 = arith.constant 3 : index
    %c0_44 = arith.constant 0 : index
    %c0_45 = arith.constant 0 : index
    %117 = vector.load %arg7[%c3, %c0_44, %c0_45] : memref<4x8x512xf32, #tpu.memory_space<vmem>>, vector<1x8x512xf32>
    %118 = vector.shape_cast %117 : vector<1x8x512xf32> to vector<8x512xf32>
    %119 = arith.truncf %112 : vector<8x128xf32> to vector<8x128xbf16>
    %cst_46 = arith.constant dense<0.000000e+00> : vector<8x512xf32>
    %120 = tpu.matmul %119, %12, %cst_46 {dimension_numbers = #tpu.dot_dimension_numbers<[1], [0], [0], [1], [0, 0, 1, 1], [], []>} : vector<8x128xbf16>, vector<128x512xbf16>, vector<8x512xf32> -> vector<8x512xf32>
    %121 = arith.addf %118, %120 : vector<8x512xf32>
    %122 = vector.extract_strided_slice %121 {offsets = [0, 0], sizes = [8, 128], strides = [1, 1]} : vector<8x512xf32> to vector<8x128xf32>
    %123 = arith.negf %122 : vector<8x128xf32>
    %124 = math.exp %123 : vector<8x128xf32>
    %cst_47 = arith.constant 1.000000e+00 : f32
    %125 = vector.broadcast %cst_47 : f32 to vector<8x128xf32>
    %126 = arith.addf %125, %124 : vector<8x128xf32>
    %127 = arith.divf %125, %126 : vector<8x128xf32>
    %128 = vector.extract_strided_slice %121 {offsets = [0, 128], sizes = [8, 128], strides = [1, 1]} : vector<8x512xf32> to vector<8x128xf32>
    %129 = arith.negf %128 : vector<8x128xf32>
    %130 = math.exp %129 : vector<8x128xf32>
    %cst_48 = arith.constant 1.000000e+00 : f32
    %131 = vector.broadcast %cst_48 : f32 to vector<8x128xf32>
    %132 = arith.addf %131, %130 : vector<8x128xf32>
    %133 = arith.divf %131, %132 : vector<8x128xf32>
    %134 = vector.extract_strided_slice %121 {offsets = [0, 256], sizes = [8, 128], strides = [1, 1]} : vector<8x512xf32> to vector<8x128xf32>
    %135 = math.tanh %134 : vector<8x128xf32>
    %136 = vector.extract_strided_slice %121 {offsets = [0, 384], sizes = [8, 128], strides = [1, 1]} : vector<8x512xf32> to vector<8x128xf32>
    %137 = arith.negf %136 : vector<8x128xf32>
    %138 = math.exp %137 : vector<8x128xf32>
    %cst_49 = arith.constant 1.000000e+00 : f32
    %139 = vector.broadcast %cst_49 : f32 to vector<8x128xf32>
    %140 = arith.addf %139, %138 : vector<8x128xf32>
    %141 = arith.divf %139, %140 : vector<8x128xf32>
    %142 = arith.mulf %133, %110 : vector<8x128xf32>
    %143 = arith.mulf %127, %135 : vector<8x128xf32>
    %144 = arith.addf %142, %143 : vector<8x128xf32>
    %145 = math.tanh %144 : vector<8x128xf32>
    %146 = arith.mulf %141, %145 : vector<8x128xf32>
    %147 = arith.truncf %146 : vector<8x128xf32> to vector<8x128xbf16>
    %c3_50 = arith.constant 3 : index
    %c0_51 = arith.constant 0 : index
    %c0_52 = arith.constant 0 : index
    %148 = vector.load %arg6[%c3_50, %c0_51, %c0_52] : memref<4x8x128xbf16, #tpu.memory_space<vmem>>, vector<1x8x128xbf16>
    %149 = vector.shape_cast %148 : vector<1x8x128xbf16> to vector<8x128xbf16>
    %150 = vector.shape_cast %147 : vector<8x128xbf16> to vector<1x8x128xbf16>
    tpu.vector_store %arg6[%c3_50, %c0_51, %c0_52], %150 {strides = array<i32>} : memref<4x8x128xbf16, #tpu.memory_space<vmem>>, vector<1x8x128xbf16>,
    %c0_53 = arith.constant 0 : index
    %c0_54 = arith.constant 0 : index
    %151 = vector.load %arg8[%c0_53, %c0_54] : memref<8x128xf32, #tpu.memory_space<vmem>>, vector<8x128xf32>
    tpu.vector_store %arg8[%c0_53, %c0_54], %146 {strides = array<i32>} : memref<8x128xf32, #tpu.memory_space<vmem>>, vector<8x128xf32>,
    %c0_55 = arith.constant 0 : index
    %c0_56 = arith.constant 0 : index
    %152 = vector.load %arg9[%c0_55, %c0_56] : memref<8x128xf32, #tpu.memory_space<vmem>>, vector<8x128xf32>
    tpu.vector_store %arg9[%c0_55, %c0_56], %144 {strides = array<i32>} : memref<8x128xf32, #tpu.memory_space<vmem>>, vector<8x128xf32>,
    return
  }
  func.func @transform_0(%arg0: i32, %arg1: i32) -> (i32, i32, i32) {
    %c0_i32 = arith.constant 0 : i32
    %c0_i32_0 = arith.constant 0 : i32
    return %arg1, %arg0, %c0_i32 : i32, i32, i32
  }
  func.func @transform_1(%arg0: i32, %arg1: i32) -> (i32, i32) {
    %c0_i32 = arith.constant 0 : i32
    %c0_i32_0 = arith.constant 0 : i32
    %c0_i32_1 = arith.constant 0 : i32
    return %c0_i32, %c0_i32_0 : i32, i32
  }
  func.func @transform_2(%arg0: i32, %arg1: i32) -> (i32, i32) {
    %c0_i32 = arith.constant 0 : i32
    %c0_i32_0 = arith.constant 0 : i32
    %c0_i32_1 = arith.constant 0 : i32
    return %c0_i32, %c0_i32_0 : i32, i32
  }
  func.func @transform_3(%arg0: i32, %arg1: i32) -> (i32, i32) {
    %c0_i32 = arith.constant 0 : i32
    %c0_i32_0 = arith.constant 0 : i32
    %c0_i32_1 = arith.constant 0 : i32
    return %c0_i32, %c0_i32_0 : i32, i32
  }
  func.func @transform_4(%arg0: i32, %arg1: i32) -> (i32, i32, i32) {
    %c0_i32 = arith.constant 0 : i32
    %c0_i32_0 = arith.constant 0 : i32
    return %arg1, %arg0, %c0_i32 : i32, i32, i32
  }
}

module attributes {stable_mosaic.version = 11 : i64} {
  func.func @_attn_head_kernel(%arg0: i32, %arg1: memref<8x8x128xbf16, #tpu.memory_space<vmem>>, %arg2: memref<128x128xbf16, #tpu.memory_space<vmem>>, %arg3: memref<128x128xbf16, #tpu.memory_space<vmem>>, %arg4: memref<1x128xf32, #tpu.memory_space<vmem>>, %arg5: memref<128x128xbf16, #tpu.memory_space<vmem>>, %arg6: memref<1x128xf32, #tpu.memory_space<vmem>>, %arg7: memref<8x128xf32, #tpu.memory_space<vmem>>) attributes {dimension_semantics = [#tpu.dimension_semantics<parallel>], iteration_bounds = array<i64: 1>, scalar_prefetch = 0 : i64, scratch_operands = 0 : i64, tpu.core_type = #tpu.core_type<tc>, window_params = [{transform_indices = @transform_0, window_bounds = array<i64: 8, 8, 128>}, {pipeline_mode = #tpu.pipeline_mode<synchronous>, transform_indices = @transform_1, window_bounds = array<i64: 128, 128>}, {pipeline_mode = #tpu.pipeline_mode<synchronous>, transform_indices = @transform_2, window_bounds = array<i64: 128, 128>}, {pipeline_mode = #tpu.pipeline_mode<synchronous>, transform_indices = @transform_3, window_bounds = array<i64: 1, 128>}, {pipeline_mode = #tpu.pipeline_mode<synchronous>, transform_indices = @transform_4, window_bounds = array<i64: 128, 128>}, {pipeline_mode = #tpu.pipeline_mode<synchronous>, transform_indices = @transform_5, window_bounds = array<i64: 1, 128>}, {transform_indices = @transform_6, window_bounds = array<i64: 8, 128>}]} {
    %c0 = arith.constant 0 : index
    %c0_0 = arith.constant 0 : index
    %c0_1 = arith.constant 0 : index
    %0 = vector.load %arg1[%c0, %c0_0, %c0_1] : memref<8x8x128xbf16, #tpu.memory_space<vmem>>, vector<8x8x128xbf16>
    %1 = vector.shape_cast %0 : vector<8x8x128xbf16> to vector<64x128xbf16>
    %c0_2 = arith.constant 0 : index
    %c0_3 = arith.constant 0 : index
    %2 = vector.load %arg2[%c0_2, %c0_3] : memref<128x128xbf16, #tpu.memory_space<vmem>>, vector<128x128xbf16>
    %cst = arith.constant dense<0.000000e+00> : vector<64x128xf32>
    %3 = tpu.matmul %1, %2, %cst {dimension_numbers = #tpu.dot_dimension_numbers<[1], [0], [0], [1], [0, 0, 1, 1], [], []>} : vector<64x128xbf16>, vector<128x128xbf16>, vector<64x128xf32> -> vector<64x128xf32>
    %4 = vector.shape_cast %3 : vector<64x128xf32> to vector<8x8x128xf32>
    %cst_4 = arith.constant dense<0xFF800000> : vector<8x128xf32>
    %5 = vector.multi_reduction <maximumf>, %4, %cst_4 [0] : vector<8x8x128xf32> to vector<8x128xf32>
    %6 = vector.shape_cast %5 : vector<8x128xf32> to vector<1x8x128xf32>
    %7 = vector.broadcast %6 : vector<1x8x128xf32> to vector<8x8x128xf32>
    %8 = arith.subf %4, %7 : vector<8x8x128xf32>
    %9 = math.exp %8 : vector<8x8x128xf32>
    %cst_5 = arith.constant dense<0.000000e+00> : vector<8x128xf32>
    %10 = vector.multi_reduction <add>, %9, %cst_5 [0] : vector<8x8x128xf32> to vector<8x128xf32>
    %11 = vector.shape_cast %10 : vector<8x128xf32> to vector<1x8x128xf32>
    %12 = tpu.reciprocal %11 {approx = true} : vector<1x8x128xf32> -> vector<1x8x128xf32>
    %13 = vector.broadcast %12 : vector<1x8x128xf32> to vector<8x8x128xf32>
    %14 = arith.mulf %9, %13 : vector<8x8x128xf32>
    %cst_6 = arith.constant 0.000000e+00 : f32
    %15 = vector.broadcast %cst_6 : f32 to vector<8x128xf32>
    %16 = vector.extract_strided_slice %14 {offsets = [0, 0, 0], sizes = [1, 8, 128], strides = [1, 1, 1]} : vector<8x8x128xf32> to vector<1x8x128xf32>
    %17 = vector.shape_cast %16 : vector<1x8x128xf32> to vector<8x128xf32>
    %c0_7 = arith.constant 0 : index
    %c0_8 = arith.constant 0 : index
    %c0_9 = arith.constant 0 : index
    %18 = vector.load %arg1[%c0_7, %c0_8, %c0_9] : memref<8x8x128xbf16, #tpu.memory_space<vmem>>, vector<1x8x128xbf16>
    %19 = vector.shape_cast %18 : vector<1x8x128xbf16> to vector<8x128xbf16>
    %20 = arith.extf %19 : vector<8x128xbf16> to vector<8x128xf32>
    %21 = arith.mulf %20, %17 : vector<8x128xf32>
    %22 = arith.addf %15, %21 : vector<8x128xf32>
    %23 = vector.extract_strided_slice %14 {offsets = [1, 0, 0], sizes = [1, 8, 128], strides = [1, 1, 1]} : vector<8x8x128xf32> to vector<1x8x128xf32>
    %24 = vector.shape_cast %23 : vector<1x8x128xf32> to vector<8x128xf32>
    %c1 = arith.constant 1 : index
    %c0_10 = arith.constant 0 : index
    %c0_11 = arith.constant 0 : index
    %25 = vector.load %arg1[%c1, %c0_10, %c0_11] : memref<8x8x128xbf16, #tpu.memory_space<vmem>>, vector<1x8x128xbf16>
    %26 = vector.shape_cast %25 : vector<1x8x128xbf16> to vector<8x128xbf16>
    %27 = arith.extf %26 : vector<8x128xbf16> to vector<8x128xf32>
    %28 = arith.mulf %27, %24 : vector<8x128xf32>
    %29 = arith.addf %22, %28 : vector<8x128xf32>
    %30 = vector.extract_strided_slice %14 {offsets = [2, 0, 0], sizes = [1, 8, 128], strides = [1, 1, 1]} : vector<8x8x128xf32> to vector<1x8x128xf32>
    %31 = vector.shape_cast %30 : vector<1x8x128xf32> to vector<8x128xf32>
    %c2 = arith.constant 2 : index
    %c0_12 = arith.constant 0 : index
    %c0_13 = arith.constant 0 : index
    %32 = vector.load %arg1[%c2, %c0_12, %c0_13] : memref<8x8x128xbf16, #tpu.memory_space<vmem>>, vector<1x8x128xbf16>
    %33 = vector.shape_cast %32 : vector<1x8x128xbf16> to vector<8x128xbf16>
    %34 = arith.extf %33 : vector<8x128xbf16> to vector<8x128xf32>
    %35 = arith.mulf %34, %31 : vector<8x128xf32>
    %36 = arith.addf %29, %35 : vector<8x128xf32>
    %37 = vector.extract_strided_slice %14 {offsets = [3, 0, 0], sizes = [1, 8, 128], strides = [1, 1, 1]} : vector<8x8x128xf32> to vector<1x8x128xf32>
    %38 = vector.shape_cast %37 : vector<1x8x128xf32> to vector<8x128xf32>
    %c3 = arith.constant 3 : index
    %c0_14 = arith.constant 0 : index
    %c0_15 = arith.constant 0 : index
    %39 = vector.load %arg1[%c3, %c0_14, %c0_15] : memref<8x8x128xbf16, #tpu.memory_space<vmem>>, vector<1x8x128xbf16>
    %40 = vector.shape_cast %39 : vector<1x8x128xbf16> to vector<8x128xbf16>
    %41 = arith.extf %40 : vector<8x128xbf16> to vector<8x128xf32>
    %42 = arith.mulf %41, %38 : vector<8x128xf32>
    %43 = arith.addf %36, %42 : vector<8x128xf32>
    %44 = vector.extract_strided_slice %14 {offsets = [4, 0, 0], sizes = [1, 8, 128], strides = [1, 1, 1]} : vector<8x8x128xf32> to vector<1x8x128xf32>
    %45 = vector.shape_cast %44 : vector<1x8x128xf32> to vector<8x128xf32>
    %c4 = arith.constant 4 : index
    %c0_16 = arith.constant 0 : index
    %c0_17 = arith.constant 0 : index
    %46 = vector.load %arg1[%c4, %c0_16, %c0_17] : memref<8x8x128xbf16, #tpu.memory_space<vmem>>, vector<1x8x128xbf16>
    %47 = vector.shape_cast %46 : vector<1x8x128xbf16> to vector<8x128xbf16>
    %48 = arith.extf %47 : vector<8x128xbf16> to vector<8x128xf32>
    %49 = arith.mulf %48, %45 : vector<8x128xf32>
    %50 = arith.addf %43, %49 : vector<8x128xf32>
    %51 = vector.extract_strided_slice %14 {offsets = [5, 0, 0], sizes = [1, 8, 128], strides = [1, 1, 1]} : vector<8x8x128xf32> to vector<1x8x128xf32>
    %52 = vector.shape_cast %51 : vector<1x8x128xf32> to vector<8x128xf32>
    %c5 = arith.constant 5 : index
    %c0_18 = arith.constant 0 : index
    %c0_19 = arith.constant 0 : index
    %53 = vector.load %arg1[%c5, %c0_18, %c0_19] : memref<8x8x128xbf16, #tpu.memory_space<vmem>>, vector<1x8x128xbf16>
    %54 = vector.shape_cast %53 : vector<1x8x128xbf16> to vector<8x128xbf16>
    %55 = arith.extf %54 : vector<8x128xbf16> to vector<8x128xf32>
    %56 = arith.mulf %55, %52 : vector<8x128xf32>
    %57 = arith.addf %50, %56 : vector<8x128xf32>
    %58 = vector.extract_strided_slice %14 {offsets = [6, 0, 0], sizes = [1, 8, 128], strides = [1, 1, 1]} : vector<8x8x128xf32> to vector<1x8x128xf32>
    %59 = vector.shape_cast %58 : vector<1x8x128xf32> to vector<8x128xf32>
    %c6 = arith.constant 6 : index
    %c0_20 = arith.constant 0 : index
    %c0_21 = arith.constant 0 : index
    %60 = vector.load %arg1[%c6, %c0_20, %c0_21] : memref<8x8x128xbf16, #tpu.memory_space<vmem>>, vector<1x8x128xbf16>
    %61 = vector.shape_cast %60 : vector<1x8x128xbf16> to vector<8x128xbf16>
    %62 = arith.extf %61 : vector<8x128xbf16> to vector<8x128xf32>
    %63 = arith.mulf %62, %59 : vector<8x128xf32>
    %64 = arith.addf %57, %63 : vector<8x128xf32>
    %65 = vector.extract_strided_slice %14 {offsets = [7, 0, 0], sizes = [1, 8, 128], strides = [1, 1, 1]} : vector<8x8x128xf32> to vector<1x8x128xf32>
    %66 = vector.shape_cast %65 : vector<1x8x128xf32> to vector<8x128xf32>
    %c7 = arith.constant 7 : index
    %c0_22 = arith.constant 0 : index
    %c0_23 = arith.constant 0 : index
    %67 = vector.load %arg1[%c7, %c0_22, %c0_23] : memref<8x8x128xbf16, #tpu.memory_space<vmem>>, vector<1x8x128xbf16>
    %68 = vector.shape_cast %67 : vector<1x8x128xbf16> to vector<8x128xbf16>
    %69 = arith.extf %68 : vector<8x128xbf16> to vector<8x128xf32>
    %70 = arith.mulf %69, %66 : vector<8x128xf32>
    %71 = arith.addf %64, %70 : vector<8x128xf32>
    %72 = arith.truncf %71 : vector<8x128xf32> to vector<8x128xbf16>
    %c0_24 = arith.constant 0 : index
    %c0_25 = arith.constant 0 : index
    %73 = vector.load %arg3[%c0_24, %c0_25] : memref<128x128xbf16, #tpu.memory_space<vmem>>, vector<128x128xbf16>
    %cst_26 = arith.constant dense<0.000000e+00> : vector<8x128xf32>
    %74 = tpu.matmul %72, %73, %cst_26 {dimension_numbers = #tpu.dot_dimension_numbers<[1], [0], [0], [1], [0, 0, 1, 1], [], []>} : vector<8x128xbf16>, vector<128x128xbf16>, vector<8x128xf32> -> vector<8x128xf32>
    %c0_27 = arith.constant 0 : index
    %c0_28 = arith.constant 0 : index
    %75 = vector.load %arg4[%c0_27, %c0_28] : memref<1x128xf32, #tpu.memory_space<vmem>>, vector<1x128xf32>
    %76 = vector.broadcast %75 : vector<1x128xf32> to vector<8x128xf32>
    %77 = arith.addf %74, %76 : vector<8x128xf32>
    %cst_29 = arith.constant 0.000000e+00 : f32
    %78 = vector.broadcast %cst_29 : f32 to vector<8x128xf32>
    %79 = arith.maximumf %77, %78 : vector<8x128xf32>
    %80 = arith.truncf %79 : vector<8x128xf32> to vector<8x128xbf16>
    %c0_30 = arith.constant 0 : index
    %c0_31 = arith.constant 0 : index
    %81 = vector.load %arg5[%c0_30, %c0_31] : memref<128x128xbf16, #tpu.memory_space<vmem>>, vector<128x128xbf16>
    %cst_32 = arith.constant dense<0.000000e+00> : vector<8x128xf32>
    %82 = tpu.matmul %80, %81, %cst_32 {dimension_numbers = #tpu.dot_dimension_numbers<[1], [0], [0], [1], [0, 0, 1, 1], [], []>} : vector<8x128xbf16>, vector<128x128xbf16>, vector<8x128xf32> -> vector<8x128xf32>
    %c0_33 = arith.constant 0 : index
    %c0_34 = arith.constant 0 : index
    %83 = vector.load %arg6[%c0_33, %c0_34] : memref<1x128xf32, #tpu.memory_space<vmem>>, vector<1x128xf32>
    %84 = vector.broadcast %83 : vector<1x128xf32> to vector<8x128xf32>
    %85 = arith.addf %82, %84 : vector<8x128xf32>
    %c0_35 = arith.constant 0 : index
    %c0_36 = arith.constant 0 : index
    %86 = vector.load %arg7[%c0_35, %c0_36] : memref<8x128xf32, #tpu.memory_space<vmem>>, vector<8x128xf32>
    tpu.vector_store %arg7[%c0_35, %c0_36], %85 {strides = array<i32>} : memref<8x128xf32, #tpu.memory_space<vmem>>, vector<8x128xf32>,
    return
  }
  func.func @transform_0(%arg0: i32) -> (i32, i32, i32) {
    %c0_i32 = arith.constant 0 : i32
    %c0_i32_0 = arith.constant 0 : i32
    %c0_i32_1 = arith.constant 0 : i32
    return %c0_i32, %arg0, %c0_i32_0 : i32, i32, i32
  }
  func.func @transform_1(%arg0: i32) -> (i32, i32) {
    %c0_i32 = arith.constant 0 : i32
    %c0_i32_0 = arith.constant 0 : i32
    %c0_i32_1 = arith.constant 0 : i32
    return %c0_i32, %c0_i32_0 : i32, i32
  }
  func.func @transform_2(%arg0: i32) -> (i32, i32) {
    %c0_i32 = arith.constant 0 : i32
    %c0_i32_0 = arith.constant 0 : i32
    %c0_i32_1 = arith.constant 0 : i32
    return %c0_i32, %c0_i32_0 : i32, i32
  }
  func.func @transform_3(%arg0: i32) -> (i32, i32) {
    %c0_i32 = arith.constant 0 : i32
    %c0_i32_0 = arith.constant 0 : i32
    %c0_i32_1 = arith.constant 0 : i32
    return %c0_i32, %c0_i32_0 : i32, i32
  }
  func.func @transform_4(%arg0: i32) -> (i32, i32) {
    %c0_i32 = arith.constant 0 : i32
    %c0_i32_0 = arith.constant 0 : i32
    %c0_i32_1 = arith.constant 0 : i32
    return %c0_i32, %c0_i32_0 : i32, i32
  }
  func.func @transform_5(%arg0: i32) -> (i32, i32) {
    %c0_i32 = arith.constant 0 : i32
    %c0_i32_0 = arith.constant 0 : i32
    %c0_i32_1 = arith.constant 0 : i32
    return %c0_i32, %c0_i32_0 : i32, i32
  }
  func.func @transform_6(%arg0: i32) -> (i32, i32) {
    %c0_i32 = arith.constant 0 : i32
    %c0_i32_0 = arith.constant 0 : i32
    return %arg0, %c0_i32 : i32, i32
  }
}

</mosaic_0001>

<llo_original>
// kernel: tpu_custom_call.1
$region0: #{tpu_custom_call.1}
  #allocation0 [shape = 'u32[]', space=smem, size = 0x4, offset = 0x4, fixed_abs, tag = 'smem constant byte address 0x4 - core index']
  #allocation1 [shape = 'u32[144,128]{1,0:T(1,128)}', space=vmem, size = 0x12000, scoped, tag = 'internal scratch']
  %s0 = inlined_call_operand.hbm [shape: f32[8,128], index: 0, kind: input, shape index: {}]
  %s1 = inlined_call_operand.hbm [shape: f32[16,128], index: 1, kind: output, shape index: {}]
  %s2 = sld [smem:[#allocation0]]
  $region41: #{tpu_custom_call.1} parent=0
    _
  %s4 = ssub.s32 1, %s2
  %s5 = scalar_select 0, %s4, %s2
  $region1: #{tpu_custom_call.1} parent=0
    #allocation2 [shape = 'u8[4096]{0}', space=vmem, size = 0x1000, scoped, tag = 'input window, operand 0, single buffered']
    #allocation3 [shape = 's32[2]{0}', space=sflag, size = 0x8, scoped, tag = 'scoped memory for tpu_custom_call.1']
    #allocation4 [shape = 's32[2]{0}', space=sflag, size = 0x8, scoped, tag = 'scoped memory for tpu_custom_call.1']
    #allocation5 [shape = 'u8[8192]{0}', space=vmem, size = 0x2000, scoped, tag = 'output window, operand 0']
    %6 = vsyncpa [#allocation3], 0
    %7 = vsyncpa [#allocation4], 0
    %s8 = scalar_lea.sflag [#allocation4], 1
    %9 = vsyncpa %s8, 0
    loop: start=0, step=1, limit=4
    $region2: #{tpu_custom_call.1} parent=1 // loop_pre_header
      _
    $region3: #{tpu_custom_call.1} parent=1 // loop_header
      %s11 = sphi 0, %s15
      %p12 = scmp.ge.s32.totalorder %s11, 4
      %s19 = sphi 0, %s19
      %s21 = sphi 0, %s19
      %s22 = sphi 0, %s21
      %s36 = sphi 0, %s22
      %s42 = sphi 0, %s44
      %s45 = sphi 0, %s42
      %s46 = sphi 0, %s45
      %s62 = sphi 0, %s46
    $region4: #{tpu_custom_call.1} parent=1 // loop_header_branch
      %14 = sbr.rel (%p12) target = $region8
    $region5: #{tpu_custom_call.1} parent=1 // loop_body
      %s16 = ssub.s32 %s11, 1
      %s17 = ssub.s32 %s11, 2
      %s18 = sadd.s32 %s11, 1
      %s20 = sadd.s32 %s19, 1
      %p23 = scmp.eq.s32.totalorder %s11, 1
      %p24 = scmp.ne.s32.totalorder %s19, %s21
      %p25 = scmp.eq.s32.totalorder %s11, 0
      %p26 = por %p24, %p25
      %p27 = scmp.ne.s32.totalorder %s19, %s21
      %p28 = scmp.eq.s32.totalorder %s16, 1
      %p29 = por %p27, %p28
      %p30 = scmp.ne.s32.totalorder %s21, %s22
      %p31 = scmp.eq.s32.totalorder %s16, 0
      %p32 = por %p30, %p31
      %p33 = scmp.ne.s32.totalorder %s21, %s22
      %p34 = scmp.eq.s32.totalorder %s17, 1
      %p35 = por %p33, %p34
      %p37 = scmp.ne.s32.totalorder %s22, %s36
      %p38 = scmp.eq.s32.totalorder %s17, 0
      %p39 = por %p37, %p38
      %s40 = ssub.s32 %s11, %s18
      %p41 = scmp.eq.s32.totalorder %s40, 0
      %s43 = sadd.s32 %s42, 1
      %s44 = scalar_select %p41, %s42, %s43
      %p47 = pneg %p41
      %p48 = scmp.eq.s32.totalorder %s11, 1
      %p49 = por %p47, %p48
      %p50 = scmp.ne.s32.totalorder %s42, %s45
      %p51 = scmp.eq.s32.totalorder %s11, 0
      %p52 = por %p50, %p51
      %p53 = scmp.ne.s32.totalorder %s42, %s45
      %p54 = scmp.eq.s32.totalorder %s16, 1
      %p55 = por %p53, %p54
      %p56 = scmp.ne.s32.totalorder %s45, %s46
      %p57 = scmp.eq.s32.totalorder %s16, 0
      %p58 = por %p56, %p57
      %p59 = scmp.ne.s32.totalorder %s45, %s46
      %p60 = scmp.eq.s32.totalorder %s17, 1
      %p61 = por %p59, %p60
      %p63 = scmp.ne.s32.totalorder %s46, %s62
      %p64 = scmp.eq.s32.totalorder %s17, 0
      %p65 = por %p63, %p64
      %p66 = scmp.le.s32.totalorder 1, %s11
      %p67 = scmp.lt.s32.totalorder %s11, 3
      %p68 = pnand %p66, %p67
      %p69 = pneg %p68
      // Predicated region
      $region9: #{tpu_custom_call.1} parent=5 // pred_check
        _
      $region10: #{tpu_custom_call.1} parent=5 // pred_check_branch
        %71 = sbr.rel (%p68) target = $region12
      $region11: #{tpu_custom_call.1} parent=5 // pred_region
        %s72 = ssub.s32 %s11, 1
        // Predicated region
        $region13: #{tpu_custom_call.1} parent=11 // pred_check
          %p73 = pneg %p32
        $region14: #{tpu_custom_call.1} parent=11 // pred_check_branch
          %75 = sbr.rel (%p73) target = $region16
        $region15: #{tpu_custom_call.1} parent=11 // pred_region
          %s77 = ssub.s32 128, 128
          %78 = vsyncadd [#allocation3], %s77
          %s80 = sshll.u32 [#allocation2], 4
          %s81 = int_to_ptr.vmem [resolvable:$true] %s80
          %83 = dma.hbm_to_vmem [thread:$0]  %s0, 128, %s81, [#allocation3]
        $region16: #{tpu_custom_call.1} parent=11 // pred_fallthru
          _
      $region12: #{tpu_custom_call.1} parent=5 // pred_fallthru
        _
      %p84 = scmp.lt.s32.totalorder %s11, 2
      // Predicated region
      $region17: #{tpu_custom_call.1} parent=5 // pred_check
        %p85 = pneg %p84
      $region18: #{tpu_custom_call.1} parent=5 // pred_check_branch
        %87 = sbr.rel (%p85) target = $region20
      $region19: #{tpu_custom_call.1} parent=5 // pred_region
        _
      $region20: #{tpu_custom_call.1} parent=5 // pred_fallthru
        _
      %p88 = scmp.le.s32.totalorder 1, %s11
      %p89 = scmp.lt.s32.totalorder %s11, 3
      %p90 = pnand %p88, %p89
      %p91 = pneg %p90
      // Predicated region
      $region21: #{tpu_custom_call.1} parent=5 // pred_check
        _
      $region22: #{tpu_custom_call.1} parent=5 // pred_check_branch
        %93 = sbr.rel (%p90) target = $region24
      $region23: #{tpu_custom_call.1} parent=5 // pred_region
        %s94 = ssub.s32 %s11, 1
        // Predicated region
        $region25: #{tpu_custom_call.1} parent=23 // pred_check
          %p95 = pneg %p32
        $region26: #{tpu_custom_call.1} parent=23 // pred_check_branch
          %97 = sbr.rel (%p95) target = $region28
        $region27: #{tpu_custom_call.1} parent=23 // pred_region
          %98 = dma.done [#allocation3], 128
        $region28: #{tpu_custom_call.1} parent=23 // pred_fallthru
          _
        %p99 = pneg %p32
        %p100 = pneg %p29
        %p101 = pneg %p58
        %p102 = pneg %p55
        %s103 = sand.u32 %s45, 1
        %s104 = scalar_lea.sflag [#allocation4], %s103
        %s105 = sand.u32 %s45, 1
        %s106 = smul.addr %s105, 8
        %s107 = scalar_lea.vmem [#allocation5], %s106
        %v108 = vld [vmem:[#allocation2] sm:$0xff]
        %109 = vst [vmem:[%s107] sm:$0xff] %v108
        %s110 = sand.u32 %s45, 1
        %s111 = scalar_lea.sflag [#allocation4], %s110
        %s112 = sand.u32 %s45, 1
        %s113 = smul.addr %s112, 8
        %s114 = scalar_lea.vmem [#allocation5], %s113
        // Predicated region
        $region29: #{tpu_custom_call.1} parent=23 // pred_check
          %p115 = pneg %p55
        $region30: #{tpu_custom_call.1} parent=23 // pred_check_branch
          %117 = sbr.rel (%p115) target = $region32
        $region31: #{tpu_custom_call.1} parent=23 // pred_region
          %s119 = ssub.s32 128, 128
          %120 = vsyncadd %s111, %s119
          %s121 = smul.addr %s16, 128
          %s122 = scalar_lea.hbm %s1, %s121
          %s124 = sshll.u32 %s114, 4
          %s125 = int_to_ptr.vmem [resolvable:$true] %s124
          %127 = dma.vmem_to_hbm [thread:$0]  %s125, 128, %s122, %s111
        $region32: #{tpu_custom_call.1} parent=23 // pred_fallthru
          _
      $region24: #{tpu_custom_call.1} parent=5 // pred_fallthru
        _
      %p128 = scmp.le.s32.totalorder 2, %s11
      // Predicated region
      $region33: #{tpu_custom_call.1} parent=5 // pred_check
        %p129 = pneg %p128
      $region34: #{tpu_custom_call.1} parent=5 // pred_check_branch
        %131 = sbr.rel (%p129) target = $region36
      $region35: #{tpu_custom_call.1} parent=5 // pred_region
        %s132 = ssub.s32 %s11, 2
        // Predicated region
        $region37: #{tpu_custom_call.1} parent=35 // pred_check
          %p133 = pneg %p61
        $region38: #{tpu_custom_call.1} parent=35 // pred_check_branch
          %135 = sbr.rel (%p133) target = $region40
        $region39: #{tpu_custom_call.1} parent=35 // pred_region
          %s136 = sand.u32 %s46, 1
          %s137 = scalar_lea.sflag [#allocation4], %s136
          %s138 = sand.u32 %s46, 1
          %s139 = smul.addr %s138, 8
          %s140 = scalar_lea.vmem [#allocation5], %s139
          %141 = dma.done %s137, 128
        $region40: #{tpu_custom_call.1} parent=35 // pred_fallthru
          _
      $region36: #{tpu_custom_call.1} parent=5 // pred_fallthru
        _
    $region6: #{tpu_custom_call.1} parent=1 // loop_footer
      %s15 = sadd.s32 1, %s11
    $region7: #{tpu_custom_call.1} parent=1 // loop_footer_branch
      %10 = sbr.rel target = $region3
    $region8: #{tpu_custom_call.1} parent=1 // loop_exit
      _
    %142 = vsyncpa [#allocation3], 1
    %s143 = scalar_lea.sflag [#allocation3], 1
    %144 = vsyncpa %s143, 1
    %145 = vsyncpa [#allocation4], 1
    %s146 = scalar_lea.sflag [#allocation4], 1
    %147 = vsyncpa %s146, 1

// kernel: lstm_atten_emb_forward.4
$region0: #{lstm_atten_emb_forward.4}
  #allocation0 [shape = 'u32[]', space=smem, size = 0x4, offset = 0x4, fixed_abs, tag = 'smem constant byte address 0x4 - core index']
  #allocation1 [shape = 'u32[144,128]{1,0:T(1,128)}', space=vmem, size = 0x12000, scoped, tag = 'internal scratch']
  #allocation2 [shape = 'f32[4,8,512]{2,1,0:T(8,128)}', space=vmem, size = 0x10000, scoped, tag = 'scratch operand']
  #allocation3 [shape = 'f32[8,128]{1,0:T(8,128)}', space=vmem, size = 0x1000, scoped, tag = 'scratch operand']
  #allocation4 [shape = 'f32[8,128]{1,0:T(8,128)}', space=vmem, size = 0x1000, scoped, tag = 'scratch operand']
  %s0 = inlined_call_operand.vmem [shape: bf16[8,8,128], index: 0, kind: input, shape index: {}]
  %s1 = inlined_call_operand.vmem [shape: bf16[128,512], index: 1, kind: input, shape index: {}]
  %s2 = inlined_call_operand.vmem [shape: bf16[128,512], index: 2, kind: input, shape index: {}]
  %s3 = inlined_call_operand.vmem [shape: f32[1,512], index: 3, kind: input, shape index: {}]
  %s4 = inlined_call_operand.vmem [shape: bf16[8,8,128], index: 4, kind: output, shape index: {}]
  %s5 = sld [smem:[#allocation0]]
  $region53: #{lstm_atten_emb_forward.4} parent=0
    _
  %s7 = ssub.s32 1, %s5
  %s8 = scalar_select 0, %s7, %s5
  loop: start=0, step=1, limit=4
  $region2: #{lstm_atten_emb_forward.4} parent=0 // loop_pre_header
    _
  $region3: #{lstm_atten_emb_forward.4} parent=0 // loop_header
    %s10 = sphi 0, %s14
    %p11 = scmp.ge.s32.totalorder %s10, 4
    %s17 = sphi 0, %s29
    %s18 = sphi 0, %s25
    %s19 = sphi 0, %s17
    %s20 = sphi 0, %s18
    %s21 = sphi 0, %s19
    %s22 = sphi 0, %s20
    %s34 = sphi 0, %s36
    %s37 = sphi 0, %s34
    %s38 = sphi 0, %s37
    %s54 = sphi 0, %s38
    %s58 = sphi 0, %s58
    %s60 = sphi 0, %s58
    %s61 = sphi 0, %s60
    %s75 = sphi 0, %s61
    %s79 = sphi 0, %s79
    %s81 = sphi 0, %s79
    %s82 = sphi 0, %s81
    %s96 = sphi 0, %s82
    %s100 = sphi 0, %s100
    %s102 = sphi 0, %s100
    %s103 = sphi 0, %s102
    %s117 = sphi 0, %s103
    %s125 = sphi 0, %s127
    %s128 = sphi 0, %s125
    %s129 = sphi 0, %s128
    %s145 = sphi 0, %s129
  $region4: #{lstm_atten_emb_forward.4} parent=0 // loop_header_branch
    %13 = sbr.rel (%p11) target = $region8
  $region5: #{lstm_atten_emb_forward.4} parent=0 // loop_body
    %s15 = ssub.s32 %s10, 1
    %s16 = ssub.s32 %s10, 2
    %s23 = sadd.s32 1, %s18
    %p24 = scmp.ge.s32.totalorder %s23, 2
    %s25 = scalar_select %p24, 0, %s23
    %s26 = sadd.s32 1, %s17
    %s27 = scalar_select %p24, %s26, %s17
    %p28 = scmp.ge.s32.totalorder %s27, 1
    %s29 = scalar_select %p28, 0, %s27
    %s30 = ssub.s32 %s18, %s25
    %s31 = ssub.s32 %s17, %s29
    %s32 = sor.u32 %s30, %s31
    %p33 = scmp.eq.s32.totalorder %s32, 0
    %s35 = sadd.s32 %s34, 1
    %s36 = scalar_select %p33, %s34, %s35
    %p39 = pneg %p33
    %p40 = scmp.eq.s32.totalorder %s10, 1
    %p41 = por %p39, %p40
    %p42 = scmp.ne.s32.totalorder %s34, %s37
    %p43 = scmp.eq.s32.totalorder %s10, 0
    %p44 = por %p42, %p43
    %p45 = scmp.ne.s32.totalorder %s34, %s37
    %p46 = scmp.eq.s32.totalorder %s15, 1
    %p47 = por %p45, %p46
    %p48 = scmp.ne.s32.totalorder %s37, %s38
    %p49 = scmp.eq.s32.totalorder %s15, 0
    %p50 = por %p48, %p49
    %p51 = scmp.ne.s32.totalorder %s37, %s38
    %p52 = scmp.eq.s32.totalorder %s16, 1
    %p53 = por %p51, %p52
    %p55 = scmp.ne.s32.totalorder %s38, %s54
    %p56 = scmp.eq.s32.totalorder %s16, 0
    %p57 = por %p55, %p56
    %s59 = sadd.s32 %s58, 1
    %p62 = scmp.eq.s32.totalorder %s10, 1
    %p63 = scmp.ne.s32.totalorder %s58, %s60
    %p64 = scmp.eq.s32.totalorder %s10, 0
    %p65 = por %p63, %p64
    %p66 = scmp.ne.s32.totalorder %s58, %s60
    %p67 = scmp.eq.s32.totalorder %s15, 1
    %p68 = por %p66, %p67
    %p69 = scmp.ne.s32.totalorder %s60, %s61
    %p70 = scmp.eq.s32.totalorder %s15, 0
    %p71 = por %p69, %p70
    %p72 = scmp.ne.s32.totalorder %s60, %s61
    %p73 = scmp.eq.s32.totalorder %s16, 1
    %p74 = por %p72, %p73
    %p76 = scmp.ne.s32.totalorder %s61, %s75
    %p77 = scmp.eq.s32.totalorder %s16, 0
    %p78 = por %p76, %p77
    %s80 = sadd.s32 %s79, 1
    %p83 = scmp.eq.s32.totalorder %s10, 1
    %p84 = scmp.ne.s32.totalorder %s79, %s81
    %p85 = scmp.eq.s32.totalorder %s10, 0
    %p86 = por %p84, %p85
    %p87 = scmp.ne.s32.totalorder %s79, %s81
    %p88 = scmp.eq.s32.totalorder %s15, 1
    %p89 = por %p87, %p88
    %p90 = scmp.ne.s32.totalorder %s81, %s82
    %p91 = scmp.eq.s32.totalorder %s15, 0
    %p92 = por %p90, %p91
    %p93 = scmp.ne.s32.totalorder %s81, %s82
    %p94 = scmp.eq.s32.totalorder %s16, 1
    %p95 = por %p93, %p94
    %p97 = scmp.ne.s32.totalorder %s82, %s96
    %p98 = scmp.eq.s32.totalorder %s16, 0
    %p99 = por %p97, %p98
    %s101 = sadd.s32 %s100, 1
    %p104 = scmp.eq.s32.totalorder %s10, 1
    %p105 = scmp.ne.s32.totalorder %s100, %s102
    %p106 = scmp.eq.s32.totalorder %s10, 0
    %p107 = por %p105, %p106
    %p108 = scmp.ne.s32.totalorder %s100, %s102
    %p109 = scmp.eq.s32.totalorder %s15, 1
    %p110 = por %p108, %p109
    %p111 = scmp.ne.s32.totalorder %s102, %s103
    %p112 = scmp.eq.s32.totalorder %s15, 0
    %p113 = por %p111, %p112
    %p114 = scmp.ne.s32.totalorder %s102, %s103
    %p115 = scmp.eq.s32.totalorder %s16, 1
    %p116 = por %p114, %p115
    %p118 = scmp.ne.s32.totalorder %s103, %s117
    %p119 = scmp.eq.s32.totalorder %s16, 0
    %p120 = por %p118, %p119
    %s121 = ssub.s32 %s18, %s25
    %s122 = ssub.s32 %s17, %s29
    %s123 = sor.u32 %s121, %s122
    %p124 = scmp.eq.s32.totalorder %s123, 0
    %s126 = sadd.s32 %s125, 1
    %s127 = scalar_select %p124, %s125, %s126
    %p130 = pneg %p124
    %p131 = scmp.eq.s32.totalorder %s10, 1
    %p132 = por %p130, %p131
    %p133 = scmp.ne.s32.totalorder %s125, %s128
    %p134 = scmp.eq.s32.totalorder %s10, 0
    %p135 = por %p133, %p134
    %p136 = scmp.ne.s32.totalorder %s125, %s128
    %p137 = scmp.eq.s32.totalorder %s15, 1
    %p138 = por %p136, %p137
    %p139 = scmp.ne.s32.totalorder %s128, %s129
    %p140 = scmp.eq.s32.totalorder %s15, 0
    %p141 = por %p139, %p140
    %p142 = scmp.ne.s32.totalorder %s128, %s129
    %p143 = scmp.eq.s32.totalorder %s16, 1
    %p144 = por %p142, %p143
    %p146 = scmp.ne.s32.totalorder %s129, %s145
    %p147 = scmp.eq.s32.totalorder %s16, 0
    %p148 = por %p146, %p147
    %p149 = scmp.le.s32.totalorder 1, %s10
    %p150 = scmp.lt.s32.totalorder %s10, 3
    %p151 = pnand %p149, %p150
    %p152 = pneg %p151
    // Predicated region
    $region9: #{lstm_atten_emb_forward.4} parent=5 // pred_check
      _
    $region10: #{lstm_atten_emb_forward.4} parent=5 // pred_check_branch
      %154 = sbr.rel (%p151) target = $region12
    $region11: #{lstm_atten_emb_forward.4} parent=5 // pred_region
      %s155 = ssub.s32 %s10, 1
      // Predicated region
      $region13: #{lstm_atten_emb_forward.4} parent=11 // pred_check
        %p156 = pneg %p71
      $region14: #{lstm_atten_emb_forward.4} parent=11 // pred_check_branch
        %158 = sbr.rel (%p156) target = $region16
      $region15: #{lstm_atten_emb_forward.4} parent=11 // pred_region
        _
      $region16: #{lstm_atten_emb_forward.4} parent=11 // pred_fallthru
        _
      // Predicated region
      $region17: #{lstm_atten_emb_forward.4} parent=11 // pred_check
        %p159 = pneg %p92
      $region18: #{lstm_atten_emb_forward.4} parent=11 // pred_check_branch
        %161 = sbr.rel (%p159) target = $region20
      $region19: #{lstm_atten_emb_forward.4} parent=11 // pred_region
        _
      $region20: #{lstm_atten_emb_forward.4} parent=11 // pred_fallthru
        _
      // Predicated region
      $region21: #{lstm_atten_emb_forward.4} parent=11 // pred_check
        %p162 = pneg %p113
      $region22: #{lstm_atten_emb_forward.4} parent=11 // pred_check_branch
        %164 = sbr.rel (%p162) target = $region24
      $region23: #{lstm_atten_emb_forward.4} parent=11 // pred_region
        _
      $region24: #{lstm_atten_emb_forward.4} parent=11 // pred_fallthru
        _
    $region12: #{lstm_atten_emb_forward.4} parent=5 // pred_fallthru
      _
    %p165 = scmp.lt.s32.totalorder %s10, 2
    // Predicated region
    $region25: #{lstm_atten_emb_forward.4} parent=5 // pred_check
      %p166 = pneg %p165
    $region26: #{lstm_atten_emb_forward.4} parent=5 // pred_check_branch
      %168 = sbr.rel (%p166) target = $region28
    $region27: #{lstm_atten_emb_forward.4} parent=5 // pred_region
      // Predicated region
      $region29: #{lstm_atten_emb_forward.4} parent=27 // pred_check
        %p169 = pneg %p44
      $region30: #{lstm_atten_emb_forward.4} parent=27 // pred_check_branch
        %171 = sbr.rel (%p169) target = $region32
      $region31: #{lstm_atten_emb_forward.4} parent=27 // pred_region
        %s172 = smul.u32 4, %s18
        %p173 = scmp.lt.s32.totalorder %s172, 7
        %s174 = scalar_select %p173, %s172, 7
        %p175 = scmp.lt.s32.totalorder %s17, 0
        %s176 = scalar_select %p175, %s17, 0
        %s177 = sadd.s32 %s176, %s174
        %s178 = smul.addr %s177, 4
        %s179 = scalar_lea.vmem %s0, %s178
        %s180 = smul.u32 4, %s18
      $region32: #{lstm_atten_emb_forward.4} parent=27 // pred_fallthru
        _
    $region28: #{lstm_atten_emb_forward.4} parent=5 // pred_fallthru
      _
    %p181 = scmp.le.s32.totalorder 1, %s10
    %p182 = scmp.lt.s32.totalorder %s10, 3
    %p183 = pnand %p181, %p182
    %p184 = pneg %p183
    // Predicated region
    $region33: #{lstm_atten_emb_forward.4} parent=5 // pred_check
      _
    $region34: #{lstm_atten_emb_forward.4} parent=5 // pred_check_branch
      %186 = sbr.rel (%p183) target = $region36
    $region35: #{lstm_atten_emb_forward.4} parent=5 // pred_region
      %s187 = ssub.s32 %s10, 1
      %s188 = smul.u32 4, %s20
      %p189 = scmp.lt.s32.totalorder %s188, 7
      %s190 = scalar_select %p189, %s188, 7
      %p191 = scmp.lt.s32.totalorder %s19, 0
      %s192 = scalar_select %p191, %s19, 0
      %s193 = sadd.s32 %s192, %s190
      %s194 = smul.addr %s193, 4
      %s195 = scalar_lea.vmem %s0, %s194
      %p196 = pneg %p50
      %p197 = pneg %p47
      %p198 = pneg %p71
      %p199 = pneg %p68
      %p200 = pneg %p92
      %p201 = pneg %p89
      %p202 = pneg %p113
      %p203 = pneg %p110
      %p204 = pneg %p141
      %p205 = pneg %p138
      %s206 = smul.u32 4, %s20
      %p207 = scmp.lt.s32.totalorder %s206, 7
      %s208 = scalar_select %p207, %s206, 7
      %p209 = scmp.lt.s32.totalorder %s19, 0
      %s210 = scalar_select %p209, %s19, 0
      %s211 = sadd.s32 %s210, %s208
      %s212 = smul.addr %s211, 4
      %s213 = scalar_lea.vmem %s4, %s212
      %s214 = smul.u32 4, %s20
      %p215 = scmp.lt.s32.totalorder %s214, 7
      %s216 = scalar_select %p215, %s214, 7
      %p217 = scmp.lt.s32.totalorder %s19, 0
      %s218 = scalar_select %p217, %s19, 0
      %s219 = sadd.s32 %s218, %s216
      %s220 = smul.addr %s219, 4
      %s221 = scalar_lea.vmem %s0, %s220
      %s222 = smul.u32 4, %s20
      %s223 = smul.u32 4, %s20
      %p224 = scmp.lt.s32.totalorder %s223, 7
      %s225 = scalar_select %p224, %s223, 7
      %p226 = scmp.lt.s32.totalorder %s19, 0
      %s227 = scalar_select %p226, %s19, 0
      %s228 = sadd.s32 %s227, %s225
      %s229 = smul.addr %s228, 4
      %s230 = scalar_lea.vmem %s4, %s229
      %s231 = smul.u32 4, %s20
      %p233 = scmp.eq.s32.totalorder %s20, 0
      // Predicated region
      $region37: #{lstm_atten_emb_forward.4} parent=35 // pred_check
        %p234 = pneg %p233
      $region38: #{lstm_atten_emb_forward.4} parent=35 // pred_check_branch
        %236 = sbr.rel (%p234) target = $region40
      $region39: #{lstm_atten_emb_forward.4} parent=35 // pred_region
        %237 = vst [vmem:[#allocation3] sm:$0xff] 0.0
        %238 = vst [vmem:[#allocation4] sm:$0xff] 0.0
      $region40: #{lstm_atten_emb_forward.4} parent=35 // pred_fallthru
        _
      %v239 = vld [vmem:[%s221] sm:$0xf]
      %v240 = vld [vmem:[%s221 + $0x4] sm:$0xf]
      %v241 = vld [vmem:[%s221 + $0x8] sm:$0xf]
      %v242 = vld [vmem:[%s221 + $0xc] sm:$0xf]
      %v243 = vld [vmem:[%s1] sm:$0xff]
      %v244 = vld [vmem:[%s1 + $0x8] sm:$0xff]
      %v245 = vld [vmem:[%s1 + $0x10] sm:$0xff]
      %v246 = vld [vmem:[%s1 + $0x18] sm:$0xff]
      %v247 = vld [vmem:[%s1 + $0x20] sm:$0xff]
      %v248 = vld [vmem:[%s1 + $0x28] sm:$0xff]
      %v249 = vld [vmem:[%s1 + $0x30] sm:$0xff]
      %v250 = vld [vmem:[%s1 + $0x38] sm:$0xff]
      %v251 = vld [vmem:[%s1 + $0x40] sm:$0xff]
      %v252 = vld [vmem:[%s1 + $0x48] sm:$0xff]
      %v253 = vld [vmem:[%s1 + $0x50] sm:$0xff]
      %v254 = vld [vmem:[%s1 + $0x58] sm:$0xff]
      %v255 = vld [vmem:[%s1 + $0x60] sm:$0xff]
      %v256 = vld [vmem:[%s1 + $0x68] sm:$0xff]
      %v257 = vld [vmem:[%s1 + $0x70] sm:$0xff]
      %v258 = vld [vmem:[%s1 + $0x78] sm:$0xff]
      %v259 = vld [vmem:[%s1 + $0x80] sm:$0xff]
      %v260 = vld [vmem:[%s1 + $0x88] sm:$0xff]
      %v261 = vld [vmem:[%s1 + $0x90] sm:$0xff]
      %v262 = vld [vmem:[%s1 + $0x98] sm:$0xff]
      %v263 = vld [vmem:[%s1 + $0xa0] sm:$0xff]
      %v264 = vld [vmem:[%s1 + $0xa8] sm:$0xff]
      %v265 = vld [vmem:[%s1 + $0xb0] sm:$0xff]
      %v266 = vld [vmem:[%s1 + $0xb8] sm:$0xff]
      %v267 = vld [vmem:[%s1 + $0xc0] sm:$0xff]
      %v268 = vld [vmem:[%s1 + $0xc8] sm:$0xff]
      %v269 = vld [vmem:[%s1 + $0xd0] sm:$0xff]
      %v270 = vld [vmem:[%s1 + $0xd8] sm:$0xff]
      %v271 = vld [vmem:[%s1 + $0xe0] sm:$0xff]
      %v272 = vld [vmem:[%s1 + $0xe8] sm:$0xff]
      %v273 = vld [vmem:[%s1 + $0xf0] sm:$0xff]
      %v274 = vld [vmem:[%s1 + $0xf8] sm:$0xff]
      %v275 = vld [vmem:[%s3] sm:$0xf]
      %v277 = vlaneseq
      %v278 = vshrl.u32 %v277, 7
      %v279 = vsub.s32 0, %v278
      %v280 = vrot.slane %v275, %v279
      %v281 = vlaneseq
      %v282 = vshrl.u32 %v281, 7
      %v283 = vsub.s32 1, %v282
      %v284 = vrot.slane %v275, %v283
      %v285 = vlaneseq
      %v286 = vshrl.u32 %v285, 7
      %v287 = vsub.s32 2, %v286
      %v288 = vrot.slane %v275, %v287
      %v289 = vlaneseq
      %v290 = vshrl.u32 %v289, 7
      %v291 = vsub.s32 3, %v290
      %v292 = vrot.slane %v275, %v291
      %v301 = vunpack.c.l.b16 %v239
      %v302 = vunpack.c.l.b16 %v240
      %v303 = vunpack.c.l.b16 %v241
      %v304 = vunpack.c.l.b16 %v242
      %v305 = vpack.c.b16 %v302, %v301
      %v306 = vpack.c.b16 %v304, %v303
      %v341 = vunpack.c.l.b16 %v243
      %v342 = vunpack.c.h.b16 %v243
      %v343 = vunpack.c.l.b16 %v244
      %v344 = vunpack.c.h.b16 %v244
      %v345 = vunpack.c.l.b16 %v245
      %v346 = vunpack.c.h.b16 %v245
      %v347 = vunpack.c.l.b16 %v246
      %v348 = vunpack.c.h.b16 %v246
      %v349 = vunpack.c.l.b16 %v247
      %v350 = vunpack.c.h.b16 %v247
      %v351 = vunpack.c.l.b16 %v248
      %v352 = vunpack.c.h.b16 %v248
      %v353 = vunpack.c.l.b16 %v249
      %v354 = vunpack.c.h.b16 %v249
      %v355 = vunpack.c.l.b16 %v250
      %v356 = vunpack.c.h.b16 %v250
      %v357 = vunpack.c.l.b16 %v251
      %v358 = vunpack.c.h.b16 %v251
      %v359 = vunpack.c.l.b16 %v252
      %v360 = vunpack.c.h.b16 %v252
      %v361 = vunpack.c.l.b16 %v253
      %v362 = vunpack.c.h.b16 %v253
      %v363 = vunpack.c.l.b16 %v254
      %v364 = vunpack.c.h.b16 %v254
      %v365 = vunpack.c.l.b16 %v255
      %v366 = vunpack.c.h.b16 %v255
      %v367 = vunpack.c.l.b16 %v256
      %v368 = vunpack.c.h.b16 %v256
      %v369 = vunpack.c.l.b16 %v257
      %v370 = vunpack.c.h.b16 %v257
      %v371 = vunpack.c.l.b16 %v258
      %v372 = vunpack.c.h.b16 %v258
      %v373 = vunpack.c.l.b16 %v259
      %v374 = vunpack.c.h.b16 %v259
      %v375 = vunpack.c.l.b16 %v260
      %v376 = vunpack.c.h.b16 %v260
      %v377 = vunpack.c.l.b16 %v261
      %v378 = vunpack.c.h.b16 %v261
      %v379 = vunpack.c.l.b16 %v262
      %v380 = vunpack.c.h.b16 %v262
      %v381 = vunpack.c.l.b16 %v263
      %v382 = vunpack.c.h.b16 %v263
      %v383 = vunpack.c.l.b16 %v264
      %v384 = vunpack.c.h.b16 %v264
      %v385 = vunpack.c.l.b16 %v265
      %v386 = vunpack.c.h.b16 %v265
      %v387 = vunpack.c.l.b16 %v266
      %v388 = vunpack.c.h.b16 %v266
      %v389 = vunpack.c.l.b16 %v267
      %v390 = vunpack.c.h.b16 %v267
      %v391 = vunpack.c.l.b16 %v268
      %v392 = vunpack.c.h.b16 %v268
      %v393 = vunpack.c.l.b16 %v269
      %v394 = vunpack.c.h.b16 %v269
      %v395 = vunpack.c.l.b16 %v270
      %v396 = vunpack.c.h.b16 %v270
      %v397 = vunpack.c.l.b16 %v271
      %v398 = vunpack.c.h.b16 %v271
      %v399 = vunpack.c.l.b16 %v272
      %v400 = vunpack.c.h.b16 %v272
      %v401 = vunpack.c.l.b16 %v273
      %v402 = vunpack.c.h.b16 %v273
      %v403 = vunpack.c.l.b16 %v274
      %v404 = vunpack.c.h.b16 %v274
      %v405 = vpack.c.b16 %v345, %v341
      %v406 = vpack.c.b16 %v346, %v342
      %v407 = vpack.c.b16 %v347, %v343
      %v408 = vpack.c.b16 %v348, %v344
      %v409 = vpack.c.b16 %v353, %v349
      %v410 = vpack.c.b16 %v354, %v350
      %v411 = vpack.c.b16 %v355, %v351
      %v412 = vpack.c.b16 %v356, %v352
      %v413 = vpack.c.b16 %v361, %v357
      %v414 = vpack.c.b16 %v362, %v358
      %v415 = vpack.c.b16 %v363, %v359
      %v416 = vpack.c.b16 %v364, %v360
      %v417 = vpack.c.b16 %v369, %v365
      %v418 = vpack.c.b16 %v370, %v366
      %v419 = vpack.c.b16 %v371, %v367
      %v420 = vpack.c.b16 %v372, %v368
      %v421 = vpack.c.b16 %v377, %v373
      %v422 = vpack.c.b16 %v378, %v374
      %v423 = vpack.c.b16 %v379, %v375
      %v424 = vpack.c.b16 %v380, %v376
      %v425 = vpack.c.b16 %v385, %v381
      %v426 = vpack.c.b16 %v386, %v382
      %v427 = vpack.c.b16 %v387, %v383
      %v428 = vpack.c.b16 %v388, %v384
      %v429 = vpack.c.b16 %v393, %v389
      %v430 = vpack.c.b16 %v394, %v390
      %v431 = vpack.c.b16 %v395, %v391
      %v432 = vpack.c.b16 %v396, %v392
      %v433 = vpack.c.b16 %v401, %v397
      %v434 = vpack.c.b16 %v402, %v398
      %v435 = vpack.c.b16 %v403, %v399
      %v436 = vpack.c.b16 %v404, %v400
      %469 = vmatprep.subr.bf16.mxu0 %v406
      %470 = vmatpush1.bf16.msra.mxu0 %v405
      %471 = vmatprep.subr.bf16.mxu0 %v410
      %472 = vmatpush1.bf16.msra.mxu0 %v409
      %473 = vmatprep.subr.bf16.mxu0 %v414
      %474 = vmatpush1.bf16.msra.mxu0 %v413
      %475 = vmatprep.subr.bf16.mxu0 %v418
      %476 = vmatpush1.bf16.msra.mxu0 %v417
      %477 = vmatprep.subr.bf16.mxu0 %v422
      %478 = vmatpush1.bf16.msra.mxu0 %v421
      %479 = vmatprep.subr.bf16.mxu0 %v426
      %480 = vmatpush1.bf16.msra.mxu0 %v425
      %481 = vmatprep.subr.bf16.mxu0 %v430
      %482 = vmatpush1.bf16.msra.mxu0 %v429
      %483 = vmatprep.subr.bf16.mxu0 %v434
      %484 = vmatpush1.bf16.msra.mxu0 %v433
      %485 = vmatprep.subr.bf16.mxu0 0
      %486 = vmatpush1.bf16.msra.mxu0 0
      %487 = vmatprep.subr.bf16.mxu0 0
      %488 = vmatpush1.bf16.msra.mxu0 0
      %489 = vmatprep.subr.bf16.mxu0 0
      %490 = vmatpush1.bf16.msra.mxu0 0
      %491 = vmatprep.subr.bf16.mxu0 0
      %492 = vmatpush1.bf16.msra.mxu0 0
      %493 = vmatprep.subr.bf16.mxu0 0
      %494 = vmatpush1.bf16.msra.mxu0 0
      %495 = vmatprep.subr.bf16.mxu0 0
      %496 = vmatpush1.bf16.msra.mxu0 0
      %497 = vmatprep.subr.bf16.mxu0 0
      %498 = vmatpush1.bf16.msra.mxu0 0
      %499 = vmatprep.subr.bf16.mxu0 0
      %500 = vmatpush1.bf16.msra.mxu0 0
      %501 = vmatprep.mubr.bf16.mxu0 0
      %502 = vmatmul.mubr.bf16.gmra.mrb[0].mxu0 %v305
      %v503 = vpop.f32.mrb[0].mxu0
      %v504 = vadd.f32 %v280, %v503
      %v505 = vpop.f32.mrb[0].mxu0
      %v506 = vadd.f32 %v284, %v505
      %v507 = vpop.f32.mrb[0].mxu0
      %v508 = vadd.f32 %v280, %v507
      %v509 = vpop.f32.mrb[0].mxu0
      %v510 = vadd.f32 %v284, %v509
      %511 = vmatprep.mubr.bf16.mxu0 0
      %512 = vmatmul.mubr.bf16.gmra.mrb[0].mxu0 %v306
      %v513 = vpop.f32.mrb[0].mxu0
      %v514 = vadd.f32 %v280, %v513
      %v515 = vpop.f32.mrb[0].mxu0
      %v516 = vadd.f32 %v284, %v515
      %v517 = vpop.f32.mrb[0].mxu0
      %v518 = vadd.f32 %v280, %v517
      %v519 = vpop.f32.mrb[0].mxu0
      %v520 = vadd.f32 %v284, %v519
      %521 = vdwg.mxu0
      %522 = vmatprep.subr.bf16.mxu0 %v408
      %523 = vmatpush1.bf16.msra.mxu0 %v407
      %524 = vmatprep.subr.bf16.mxu0 %v412
      %525 = vmatpush1.bf16.msra.mxu0 %v411
      %526 = vmatprep.subr.bf16.mxu0 %v416
      %527 = vmatpush1.bf16.msra.mxu0 %v415
      %528 = vmatprep.subr.bf16.mxu0 %v420
      %529 = vmatpush1.bf16.msra.mxu0 %v419
      %530 = vmatprep.subr.bf16.mxu0 %v424
      %531 = vmatpush1.bf16.msra.mxu0 %v423
      %532 = vmatprep.subr.bf16.mxu0 %v428
      %533 = vmatpush1.bf16.msra.mxu0 %v427
      %534 = vmatprep.subr.bf16.mxu0 %v432
      %535 = vmatpush1.bf16.msra.mxu0 %v431
      %536 = vmatprep.subr.bf16.mxu0 %v436
      %537 = vmatpush1.bf16.msra.mxu0 %v435
      %538 = vmatprep.subr.bf16.mxu0 0
      %539 = vmatpush1.bf16.msra.mxu0 0
      %540 = vmatprep.subr.bf16.mxu0 0
      %541 = vmatpush1.bf16.msra.mxu0 0
      %542 = vmatprep.subr.bf16.mxu0 0
      %543 = vmatpush1.bf16.msra.mxu0 0
      %544 = vmatprep.subr.bf16.mxu0 0
      %545 = vmatpush1.bf16.msra.mxu0 0
      %546 = vmatprep.subr.bf16.mxu0 0
      %547 = vmatpush1.bf16.msra.mxu0 0
      %548 = vmatprep.subr.bf16.mxu0 0
      %549 = vmatpush1.bf16.msra.mxu0 0
      %550 = vmatprep.subr.bf16.mxu0 0
      %551 = vmatpush1.bf16.msra.mxu0 0
      %552 = vmatprep.subr.bf16.mxu0 0
      %553 = vmatpush1.bf16.msra.mxu0 0
      %554 = vmatprep.mubr.bf16.mxu0 0
      %555 = vmatmul.mubr.bf16.gmra.mrb[0].mxu0 %v305
      %v556 = vpop.f32.mrb[0].mxu0
      %v557 = vadd.f32 %v288, %v556
      %v558 = vpop.f32.mrb[0].mxu0
      %v559 = vadd.f32 %v292, %v558
      %v560 = vpop.f32.mrb[0].mxu0
      %v561 = vadd.f32 %v288, %v560
      %v562 = vpop.f32.mrb[0].mxu0
      %v563 = vadd.f32 %v292, %v562
      %564 = vmatprep.mubr.bf16.mxu0 0
      %565 = vmatmul.mubr.bf16.gmra.mrb[0].mxu0 %v306
      %v566 = vpop.f32.mrb[0].mxu0
      %v567 = vadd.f32 %v288, %v566
      %v568 = vpop.f32.mrb[0].mxu0
      %v569 = vadd.f32 %v292, %v568
      %v570 = vpop.f32.mrb[0].mxu0
      %v571 = vadd.f32 %v288, %v570
      %v572 = vpop.f32.mrb[0].mxu0
      %v573 = vadd.f32 %v292, %v572
      %574 = vdwg.mxu0
      %575 = vst [vmem:[#allocation2] sm:$0xff] %v504
      %576 = vst [vmem:[#allocation2 + $0x8] sm:$0xff] %v506
      %577 = vst [vmem:[#allocation2 + $0x10] sm:$0xff] %v557
      %578 = vst [vmem:[#allocation2 + $0x18] sm:$0xff] %v559
      %579 = vst [vmem:[#allocation2 + $0x20] sm:$0xff] %v508
      %580 = vst [vmem:[#allocation2 + $0x28] sm:$0xff] %v510
      %581 = vst [vmem:[#allocation2 + $0x30] sm:$0xff] %v561
      %582 = vst [vmem:[#allocation2 + $0x38] sm:$0xff] %v563
      %583 = vst [vmem:[#allocation2 + $0x40] sm:$0xff] %v514
      %584 = vst [vmem:[#allocation2 + $0x48] sm:$0xff] %v516
      %585 = vst [vmem:[#allocation2 + $0x50] sm:$0xff] %v567
      %586 = vst [vmem:[#allocation2 + $0x58] sm:$0xff] %v569
      %587 = vst [vmem:[#allocation2 + $0x60] sm:$0xff] %v518
      %588 = vst [vmem:[#allocation2 + $0x68] sm:$0xff] %v520
      %589 = vst [vmem:[#allocation2 + $0x70] sm:$0xff] %v571
      %590 = vst [vmem:[#allocation2 + $0x78] sm:$0xff] %v573
      %v591 = vld [vmem:[%s2] sm:$0xff]
      %v592 = vld [vmem:[%s2 + $0x8] sm:$0xff]
      %v593 = vld [vmem:[%s2 + $0x10] sm:$0xff]
      %v594 = vld [vmem:[%s2 + $0x18] sm:$0xff]
      %v595 = vld [vmem:[%s2 + $0x20] sm:$0xff]
      %v596 = vld [vmem:[%s2 + $0x28] sm:$0xff]
      %v597 = vld [vmem:[%s2 + $0x30] sm:$0xff]
      %v598 = vld [vmem:[%s2 + $0x38] sm:$0xff]
      %v599 = vld [vmem:[%s2 + $0x40] sm:$0xff]
      %v600 = vld [vmem:[%s2 + $0x48] sm:$0xff]
      %v601 = vld [vmem:[%s2 + $0x50] sm:$0xff]
      %v602 = vld [vmem:[%s2 + $0x58] sm:$0xff]
      %v603 = vld [vmem:[%s2 + $0x60] sm:$0xff]
      %v604 = vld [vmem:[%s2 + $0x68] sm:$0xff]
      %v605 = vld [vmem:[%s2 + $0x70] sm:$0xff]
      %v606 = vld [vmem:[%s2 + $0x78] sm:$0xff]
      %v607 = vld [vmem:[%s2 + $0x80] sm:$0xff]
      %v608 = vld [vmem:[%s2 + $0x88] sm:$0xff]
      %v609 = vld [vmem:[%s2 + $0x90] sm:$0xff]
      %v610 = vld [vmem:[%s2 + $0x98] sm:$0xff]
      %v611 = vld [vmem:[%s2 + $0xa0] sm:$0xff]
      %v612 = vld [vmem:[%s2 + $0xa8] sm:$0xff]
      %v613 = vld [vmem:[%s2 + $0xb0] sm:$0xff]
      %v614 = vld [vmem:[%s2 + $0xb8] sm:$0xff]
      %v615 = vld [vmem:[%s2 + $0xc0] sm:$0xff]
      %v616 = vld [vmem:[%s2 + $0xc8] sm:$0xff]
      %v617 = vld [vmem:[%s2 + $0xd0] sm:$0xff]
      %v618 = vld [vmem:[%s2 + $0xd8] sm:$0xff]
      %v619 = vld [vmem:[%s2 + $0xe0] sm:$0xff]
      %v620 = vld [vmem:[%s2 + $0xe8] sm:$0xff]
      %v621 = vld [vmem:[%s2 + $0xf0] sm:$0xff]
      %v622 = vld [vmem:[%s2 + $0xf8] sm:$0xff]
      %v623 = vld [vmem:[#allocation3] sm:$0xff]
      %v624 = vld [vmem:[#allocation4] sm:$0xff]
      %v625 = vld [vmem:[#allocation2] sm:$0xff]
      %v626 = vld [vmem:[#allocation2 + $0x8] sm:$0xff]
      %v627 = vld [vmem:[#allocation2 + $0x10] sm:$0xff]
      %v628 = vld [vmem:[#allocation2 + $0x18] sm:$0xff]
      %v629 = vpack.c.bf16 %v623, %v623
      %v662 = vunpack.c.l.b16 %v591
      %v663 = vunpack.c.h.b16 %v591
      %v664 = vunpack.c.l.b16 %v592
      %v665 = vunpack.c.h.b16 %v592
      %v666 = vunpack.c.l.b16 %v593
      %v667 = vunpack.c.h.b16 %v593
      %v668 = vunpack.c.l.b16 %v594
      %v669 = vunpack.c.h.b16 %v594
      %v670 = vunpack.c.l.b16 %v595
      %v671 = vunpack.c.h.b16 %v595
      %v672 = vunpack.c.l.b16 %v596
      %v673 = vunpack.c.h.b16 %v596
      %v674 = vunpack.c.l.b16 %v597
      %v675 = vunpack.c.h.b16 %v597
      %v676 = vunpack.c.l.b16 %v598
      %v677 = vunpack.c.h.b16 %v598
      %v678 = vunpack.c.l.b16 %v599
      %v679 = vunpack.c.h.b16 %v599
      %v680 = vunpack.c.l.b16 %v600
      %v681 = vunpack.c.h.b16 %v600
      %v682 = vunpack.c.l.b16 %v601
      %v683 = vunpack.c.h.b16 %v601
      %v684 = vunpack.c.l.b16 %v602
      %v685 = vunpack.c.h.b16 %v602
      %v686 = vunpack.c.l.b16 %v603
      %v687 = vunpack.c.h.b16 %v603
      %v688 = vunpack.c.l.b16 %v604
      %v689 = vunpack.c.h.b16 %v604
      %v690 = vunpack.c.l.b16 %v605
      %v691 = vunpack.c.h.b16 %v605
      %v692 = vunpack.c.l.b16 %v606
      %v693 = vunpack.c.h.b16 %v606
      %v694 = vunpack.c.l.b16 %v607
      %v695 = vunpack.c.h.b16 %v607
      %v696 = vunpack.c.l.b16 %v608
      %v697 = vunpack.c.h.b16 %v608
      %v698 = vunpack.c.l.b16 %v609
      %v699 = vunpack.c.h.b16 %v609
      %v700 = vunpack.c.l.b16 %v610
      %v701 = vunpack.c.h.b16 %v610
      %v702 = vunpack.c.l.b16 %v611
      %v703 = vunpack.c.h.b16 %v611
      %v704 = vunpack.c.l.b16 %v612
      %v705 = vunpack.c.h.b16 %v612
      %v706 = vunpack.c.l.b16 %v613
      %v707 = vunpack.c.h.b16 %v613
      %v708 = vunpack.c.l.b16 %v614
      %v709 = vunpack.c.h.b16 %v614
      %v710 = vunpack.c.l.b16 %v615
      %v711 = vunpack.c.h.b16 %v615
      %v712 = vunpack.c.l.b16 %v616
      %v713 = vunpack.c.h.b16 %v616
      %v714 = vunpack.c.l.b16 %v617
      %v715 = vunpack.c.h.b16 %v617
      %v716 = vunpack.c.l.b16 %v618
      %v717 = vunpack.c.h.b16 %v618
      %v718 = vunpack.c.l.b16 %v619
      %v719 = vunpack.c.h.b16 %v619
      %v720 = vunpack.c.l.b16 %v620
      %v721 = vunpack.c.h.b16 %v620
      %v722 = vunpack.c.l.b16 %v621
      %v723 = vunpack.c.h.b16 %v621
      %v724 = vunpack.c.l.b16 %v622
      %v725 = vunpack.c.h.b16 %v622
      %v726 = vpack.c.b16 %v666, %v662
      %v727 = vpack.c.b16 %v667, %v663
      %v728 = vpack.c.b16 %v668, %v664
      %v729 = vpack.c.b16 %v669, %v665
      %v730 = vpack.c.b16 %v674, %v670
      %v731 = vpack.c.b16 %v675, %v671
      %v732 = vpack.c.b16 %v676, %v672
      %v733 = vpack.c.b16 %v677, %v673
      %v734 = vpack.c.b16 %v682, %v678
      %v735 = vpack.c.b16 %v683, %v679
      %v736 = vpack.c.b16 %v684, %v680
      %v737 = vpack.c.b16 %v685, %v681
      %v738 = vpack.c.b16 %v690, %v686
      %v739 = vpack.c.b16 %v691, %v687
      %v740 = vpack.c.b16 %v692, %v688
      %v741 = vpack.c.b16 %v693, %v689
      %v742 = vpack.c.b16 %v698, %v694
      %v743 = vpack.c.b16 %v699, %v695
      %v744 = vpack.c.b16 %v700, %v696
      %v745 = vpack.c.b16 %v701, %v697
      %v746 = vpack.c.b16 %v706, %v702
      %v747 = vpack.c.b16 %v707, %v703
      %v748 = vpack.c.b16 %v708, %v704
      %v749 = vpack.c.b16 %v709, %v705
      %v750 = vpack.c.b16 %v714, %v710
      %v751 = vpack.c.b16 %v715, %v711
      %v752 = vpack.c.b16 %v716, %v712
      %v753 = vpack.c.b16 %v717, %v713
      %v754 = vpack.c.b16 %v722, %v718
      %v755 = vpack.c.b16 %v723, %v719
      %v756 = vpack.c.b16 %v724, %v720
      %v757 = vpack.c.b16 %v725, %v721
      %790 = vmatprep.subr.bf16.mxu0 %v727
      %791 = vmatpush1.bf16.msra.mxu0 %v726
      %792 = vmatprep.subr.bf16.mxu0 %v731
      %793 = vmatpush1.bf16.msra.mxu0 %v730
      %794 = vmatprep.subr.bf16.mxu0 %v735
      %795 = vmatpush1.bf16.msra.mxu0 %v734
      %796 = vmatprep.subr.bf16.mxu0 %v739
      %797 = vmatpush1.bf16.msra.mxu0 %v738
      %798 = vmatprep.subr.bf16.mxu0 %v743
      %799 = vmatpush1.bf16.msra.mxu0 %v742
      %800 = vmatprep.subr.bf16.mxu0 %v747
      %801 = vmatpush1.bf16.msra.mxu0 %v746
      %802 = vmatprep.subr.bf16.mxu0 %v751
      %803 = vmatpush1.bf16.msra.mxu0 %v750
      %804 = vmatprep.subr.bf16.mxu0 %v755
      %805 = vmatpush1.bf16.msra.mxu0 %v754
      %806 = vmatprep.subr.bf16.mxu0 0
      %807 = vmatpush1.bf16.msra.mxu0 0
      %808 = vmatprep.subr.bf16.mxu0 0
      %809 = vmatpush1.bf16.msra.mxu0 0
      %810 = vmatprep.subr.bf16.mxu0 0
      %811 = vmatpush1.bf16.msra.mxu0 0
      %812 = vmatprep.subr.bf16.mxu0 0
      %813 = vmatpush1.bf16.msra.mxu0 0
      %814 = vmatprep.subr.bf16.mxu0 0
      %815 = vmatpush1.bf16.msra.mxu0 0
      %816 = vmatprep.subr.bf16.mxu0 0
      %817 = vmatpush1.bf16.msra.mxu0 0
      %818 = vmatprep.subr.bf16.mxu0 0
      %819 = vmatpush1.bf16.msra.mxu0 0
      %820 = vmatprep.subr.bf16.mxu0 0
      %821 = vmatpush1.bf16.msra.mxu0 0
      %822 = vmatprep.mubr.bf16.mxu0 0
      %823 = vmatmul.mubr.bf16.gmra.mrb[0].mxu0 %v629
      %v824 = vpop.f32.mrb[0].mxu0
      %v825 = vadd.f32 0.0, %v824
      %v826 = vpop.f32.mrb[0].mxu0
      %v827 = vadd.f32 0.0, %v826
      %v828 = vpop.f32.mrb[0].mxu0
      %v829 = vpop.f32.mrb[0].mxu0
      %830 = vdwg.mxu0
      %831 = vmatprep.subr.bf16.mxu0 %v729
      %832 = vmatpush1.bf16.msra.mxu0 %v728
      %833 = vmatprep.subr.bf16.mxu0 %v733
      %834 = vmatpush1.bf16.msra.mxu0 %v732
      %835 = vmatprep.subr.bf16.mxu0 %v737
      %836 = vmatpush1.bf16.msra.mxu0 %v736
      %837 = vmatprep.subr.bf16.mxu0 %v741
      %838 = vmatpush1.bf16.msra.mxu0 %v740
      %839 = vmatprep.subr.bf16.mxu0 %v745
      %840 = vmatpush1.bf16.msra.mxu0 %v744
      %841 = vmatprep.subr.bf16.mxu0 %v749
      %842 = vmatpush1.bf16.msra.mxu0 %v748
      %843 = vmatprep.subr.bf16.mxu0 %v753
      %844 = vmatpush1.bf16.msra.mxu0 %v752
      %845 = vmatprep.subr.bf16.mxu0 %v757
      %846 = vmatpush1.bf16.msra.mxu0 %v756
      %847 = vmatprep.subr.bf16.mxu0 0
      %848 = vmatpush1.bf16.msra.mxu0 0
      %849 = vmatprep.subr.bf16.mxu0 0
      %850 = vmatpush1.bf16.msra.mxu0 0
      %851 = vmatprep.subr.bf16.mxu0 0
      %852 = vmatpush1.bf16.msra.mxu0 0
      %853 = vmatprep.subr.bf16.mxu0 0
      %854 = vmatpush1.bf16.msra.mxu0 0
      %855 = vmatprep.subr.bf16.mxu0 0
      %856 = vmatpush1.bf16.msra.mxu0 0
      %857 = vmatprep.subr.bf16.mxu0 0
      %858 = vmatpush1.bf16.msra.mxu0 0
      %859 = vmatprep.subr.bf16.mxu0 0
      %860 = vmatpush1.bf16.msra.mxu0 0
      %861 = vmatprep.subr.bf16.mxu0 0
      %862 = vmatpush1.bf16.msra.mxu0 0
      %863 = vmatprep.mubr.bf16.mxu0 0
      %864 = vmatmul.mubr.bf16.gmra.mrb[0].mxu0 %v629
      %v865 = vpop.f32.mrb[0].mxu0
      %v866 = vadd.f32 0.0, %v865
      %v867 = vpop.f32.mrb[0].mxu0
      %v868 = vadd.f32 0.0, %v867
      %v869 = vpop.f32.mrb[0].mxu0
      %v870 = vpop.f32.mrb[0].mxu0
      %871 = vdwg.mxu0
      %v872 = vadd.f32 %v625, %v825
      %v873 = vadd.f32 %v626, %v827
      %v874 = vadd.f32 %v627, %v866
      %v875 = vadd.f32 %v628, %v868
      %v876 = vxor.u32 %v872, 2147483648
      %v877 = vmul.f32 %v876, 1.442695
      %v878 = vpow.pop %v877
      %v879 = vadd.f32 %v878, 1.0
      %v880 = vrcp.pop %v879
      %v881 = vmul.f32 1.0, %v880
      %v882 = vxor.u32 %v873, 2147483648
      %v883 = vmul.f32 %v882, 1.442695
      %v884 = vpow.pop %v883
      %v885 = vadd.f32 %v884, 1.0
      %v886 = vrcp.pop %v885
      %v887 = vmul.f32 1.0, %v886
      %v888 = vtanh.pop %v874
      %v889 = vxor.u32 %v875, 2147483648
      %v890 = vmul.f32 %v889, 1.442695
      %v891 = vpow.pop %v890
      %v892 = vadd.f32 %v891, 1.0
      %v893 = vrcp.pop %v892
      %v894 = vmul.f32 1.0, %v893
      %v895 = vmul.f32 %v887, %v624
      %v896 = vmul.f32 %v881, %v888
      %v897 = vadd.f32 %v895, %v896
      %v898 = vtanh.pop %v897
      %v899 = vmul.f32 %v894, %v898
      %v900 = vpack.c.bf16 %v899, %v899
      %901 = vst [vmem:[%s230] sm:$0xf] %v900
      %s902 = scalar_lea.vmem [#allocation2], 32
      %v903 = vld [vmem:[%s902] sm:$0xff]
      %v904 = vld [vmem:[%s902 + $0x8] sm:$0xff]
      %v905 = vld [vmem:[%s902 + $0x10] sm:$0xff]
      %v906 = vld [vmem:[%s902 + $0x18] sm:$0xff]
      %907 = vmatprep.subr.bf16.mxu0 %v727
      %908 = vmatpush1.bf16.msra.mxu0 %v726
      %909 = vmatprep.subr.bf16.mxu0 %v731
      %910 = vmatpush1.bf16.msra.mxu0 %v730
      %911 = vmatprep.subr.bf16.mxu0 %v735
      %912 = vmatpush1.bf16.msra.mxu0 %v734
      %913 = vmatprep.subr.bf16.mxu0 %v739
      %914 = vmatpush1.bf16.msra.mxu0 %v738
      %915 = vmatprep.subr.bf16.mxu0 %v743
      %916 = vmatpush1.bf16.msra.mxu0 %v742
      %917 = vmatprep.subr.bf16.mxu0 %v747
      %918 = vmatpush1.bf16.msra.mxu0 %v746
      %919 = vmatprep.subr.bf16.mxu0 %v751
      %920 = vmatpush1.bf16.msra.mxu0 %v750
      %921 = vmatprep.subr.bf16.mxu0 %v755
      %922 = vmatpush1.bf16.msra.mxu0 %v754
      %923 = vmatprep.subr.bf16.mxu0 0
      %924 = vmatpush1.bf16.msra.mxu0 0
      %925 = vmatprep.subr.bf16.mxu0 0
      %926 = vmatpush1.bf16.msra.mxu0 0
      %927 = vmatprep.subr.bf16.mxu0 0
      %928 = vmatpush1.bf16.msra.mxu0 0
      %929 = vmatprep.subr.bf16.mxu0 0
      %930 = vmatpush1.bf16.msra.mxu0 0
      %931 = vmatprep.subr.bf16.mxu0 0
      %932 = vmatpush1.bf16.msra.mxu0 0
      %933 = vmatprep.subr.bf16.mxu0 0
      %934 = vmatpush1.bf16.msra.mxu0 0
      %935 = vmatprep.subr.bf16.mxu0 0
      %936 = vmatpush1.bf16.msra.mxu0 0
      %937 = vmatprep.subr.bf16.mxu0 0
      %938 = vmatpush1.bf16.msra.mxu0 0
      %939 = vmatprep.mubr.bf16.mxu0 0
      %940 = vmatmul.mubr.bf16.gmra.mrb[0].mxu0 %v900
      %v941 = vpop.f32.mrb[0].mxu0
      %v942 = vadd.f32 0.0, %v941
      %v943 = vpop.f32.mrb[0].mxu0
      %v944 = vadd.f32 0.0, %v943
      %v945 = vpop.f32.mrb[0].mxu0
      %v946 = vpop.f32.mrb[0].mxu0
      %947 = vdwg.mxu0
      %948 = vmatprep.subr.bf16.mxu0 %v729
      %949 = vmatpush1.bf16.msra.mxu0 %v728
      %950 = vmatprep.subr.bf16.mxu0 %v733
      %951 = vmatpush1.bf16.msra.mxu0 %v732
      %952 = vmatprep.subr.bf16.mxu0 %v737
      %953 = vmatpush1.bf16.msra.mxu0 %v736
      %954 = vmatprep.subr.bf16.mxu0 %v741
      %955 = vmatpush1.bf16.msra.mxu0 %v740
      %956 = vmatprep.subr.bf16.mxu0 %v745
      %957 = vmatpush1.bf16.msra.mxu0 %v744
      %958 = vmatprep.subr.bf16.mxu0 %v749
      %959 = vmatpush1.bf16.msra.mxu0 %v748
      %960 = vmatprep.subr.bf16.mxu0 %v753
      %961 = vmatpush1.bf16.msra.mxu0 %v752
      %962 = vmatprep.subr.bf16.mxu0 %v757
      %963 = vmatpush1.bf16.msra.mxu0 %v756
      %964 = vmatprep.subr.bf16.mxu0 0
      %965 = vmatpush1.bf16.msra.mxu0 0
      %966 = vmatprep.subr.bf16.mxu0 0
      %967 = vmatpush1.bf16.msra.mxu0 0
      %968 = vmatprep.subr.bf16.mxu0 0
      %969 = vmatpush1.bf16.msra.mxu0 0
      %970 = vmatprep.subr.bf16.mxu0 0
      %971 = vmatpush1.bf16.msra.mxu0 0
      %972 = vmatprep.subr.bf16.mxu0 0
      %973 = vmatpush1.bf16.msra.mxu0 0
      %974 = vmatprep.subr.bf16.mxu0 0
      %975 = vmatpush1.bf16.msra.mxu0 0
      %976 = vmatprep.subr.bf16.mxu0 0
      %977 = vmatpush1.bf16.msra.mxu0 0
      %978 = vmatprep.subr.bf16.mxu0 0
      %979 = vmatpush1.bf16.msra.mxu0 0
      %980 = vmatprep.mubr.bf16.mxu0 0
      %981 = vmatmul.mubr.bf16.gmra.mrb[0].mxu0 %v900
      %v982 = vpop.f32.mrb[0].mxu0
      %v983 = vadd.f32 0.0, %v982
      %v984 = vpop.f32.mrb[0].mxu0
      %v985 = vadd.f32 0.0, %v984
      %v986 = vpop.f32.mrb[0].mxu0
      %v987 = vpop.f32.mrb[0].mxu0
      %988 = vdwg.mxu0
      %v989 = vadd.f32 %v903, %v942
      %v990 = vadd.f32 %v904, %v944
      %v991 = vadd.f32 %v905, %v983
      %v992 = vadd.f32 %v906, %v985
      %v993 = vxor.u32 %v989, 2147483648
      %v994 = vmul.f32 %v993, 1.442695
      %v995 = vpow.pop %v994
      %v996 = vadd.f32 %v995, 1.0
      %v997 = vrcp.pop %v996
      %v998 = vmul.f32 1.0, %v997
      %v999 = vxor.u32 %v990, 2147483648
      %v1000 = vmul.f32 %v999, 1.442695
      %v1001 = vpow.pop %v1000
      %v1002 = vadd.f32 %v1001, 1.0
      %v1003 = vrcp.pop %v1002
      %v1004 = vmul.f32 1.0, %v1003
      %v1005 = vtanh.pop %v991
      %v1006 = vxor.u32 %v992, 2147483648
      %v1007 = vmul.f32 %v1006, 1.442695
      %v1008 = vpow.pop %v1007
      %v1009 = vadd.f32 %v1008, 1.0
      %v1010 = vrcp.pop %v1009
      %v1011 = vmul.f32 1.0, %v1010
      %v1012 = vmul.f32 %v1004, %v897
      %v1013 = vmul.f32 %v998, %v1005
      %v1014 = vadd.f32 %v1012, %v1013
      %v1015 = vtanh.pop %v1014
      %v1016 = vmul.f32 %v1011, %v1015
      %v1017 = vpack.c.bf16 %v1016, %v1016
      %s1018 = scalar_lea.vmem %s230, 4
      %1019 = vst [vmem:[%s1018] sm:$0xf] %v1017
      %s1020 = scalar_lea.vmem [#allocation2], 64
      %v1021 = vld [vmem:[%s1020] sm:$0xff]
      %v1022 = vld [vmem:[%s1020 + $0x8] sm:$0xff]
      %v1023 = vld [vmem:[%s1020 + $0x10] sm:$0xff]
      %v1024 = vld [vmem:[%s1020 + $0x18] sm:$0xff]
      %1025 = vmatprep.subr.bf16.mxu0 %v727
      %1026 = vmatpush1.bf16.msra.mxu0 %v726
      %1027 = vmatprep.subr.bf16.mxu0 %v731
      %1028 = vmatpush1.bf16.msra.mxu0 %v730
      %1029 = vmatprep.subr.bf16.mxu0 %v735
      %1030 = vmatpush1.bf16.msra.mxu0 %v734
      %1031 = vmatprep.subr.bf16.mxu0 %v739
      %1032 = vmatpush1.bf16.msra.mxu0 %v738
      %1033 = vmatprep.subr.bf16.mxu0 %v743
      %1034 = vmatpush1.bf16.msra.mxu0 %v742
      %1035 = vmatprep.subr.bf16.mxu0 %v747
      %1036 = vmatpush1.bf16.msra.mxu0 %v746
      %1037 = vmatprep.subr.bf16.mxu0 %v751
      %1038 = vmatpush1.bf16.msra.mxu0 %v750
      %1039 = vmatprep.subr.bf16.mxu0 %v755
      %1040 = vmatpush1.bf16.msra.mxu0 %v754
      %1041 = vmatprep.subr.bf16.mxu0 0
      %1042 = vmatpush1.bf16.msra.mxu0 0
      %1043 = vmatprep.subr.bf16.mxu0 0
      %1044 = vmatpush1.bf16.msra.mxu0 0
      %1045 = vmatprep.subr.bf16.mxu0 0
      %1046 = vmatpush1.bf16.msra.mxu0 0
      %1047 = vmatprep.subr.bf16.mxu0 0
      %1048 = vmatpush1.bf16.msra.mxu0 0
      %1049 = vmatprep.subr.bf16.mxu0 0
      %1050 = vmatpush1.bf16.msra.mxu0 0
      %1051 = vmatprep.subr.bf16.mxu0 0
      %1052 = vmatpush1.bf16.msra.mxu0 0
      %1053 = vmatprep.subr.bf16.mxu0 0
      %1054 = vmatpush1.bf16.msra.mxu0 0
      %1055 = vmatprep.subr.bf16.mxu0 0
      %1056 = vmatpush1.bf16.msra.mxu0 0
      %1057 = vmatprep.mubr.bf16.mxu0 0
      %1058 = vmatmul.mubr.bf16.gmra.mrb[0].mxu0 %v1017
      %v1059 = vpop.f32.mrb[0].mxu0
      %v1060 = vadd.f32 0.0, %v1059
      %v1061 = vpop.f32.mrb[0].mxu0
      %v1062 = vadd.f32 0.0, %v1061
      %v1063 = vpop.f32.mrb[0].mxu0
      %v1064 = vpop.f32.mrb[0].mxu0
      %1065 = vdwg.mxu0
      %1066 = vmatprep.subr.bf16.mxu0 %v729
      %1067 = vmatpush1.bf16.msra.mxu0 %v728
      %1068 = vmatprep.subr.bf16.mxu0 %v733
      %1069 = vmatpush1.bf16.msra.mxu0 %v732
      %1070 = vmatprep.subr.bf16.mxu0 %v737
      %1071 = vmatpush1.bf16.msra.mxu0 %v736
      %1072 = vmatprep.subr.bf16.mxu0 %v741
      %1073 = vmatpush1.bf16.msra.mxu0 %v740
      %1074 = vmatprep.subr.bf16.mxu0 %v745
      %1075 = vmatpush1.bf16.msra.mxu0 %v744
      %1076 = vmatprep.subr.bf16.mxu0 %v749
      %1077 = vmatpush1.bf16.msra.mxu0 %v748
      %1078 = vmatprep.subr.bf16.mxu0 %v753
      %1079 = vmatpush1.bf16.msra.mxu0 %v752
      %1080 = vmatprep.subr.bf16.mxu0 %v757
      %1081 = vmatpush1.bf16.msra.mxu0 %v756
      %1082 = vmatprep.subr.bf16.mxu0 0
      %1083 = vmatpush1.bf16.msra.mxu0 0
      %1084 = vmatprep.subr.bf16.mxu0 0
      %1085 = vmatpush1.bf16.msra.mxu0 0
      %1086 = vmatprep.subr.bf16.mxu0 0
      %1087 = vmatpush1.bf16.msra.mxu0 0
      %1088 = vmatprep.subr.bf16.mxu0 0
      %1089 = vmatpush1.bf16.msra.mxu0 0
      %1090 = vmatprep.subr.bf16.mxu0 0
      %1091 = vmatpush1.bf16.msra.mxu0 0
      %1092 = vmatprep.subr.bf16.mxu0 0
      %1093 = vmatpush1.bf16.msra.mxu0 0
      %1094 = vmatprep.subr.bf16.mxu0 0
      %1095 = vmatpush1.bf16.msra.mxu0 0
      %1096 = vmatprep.subr.bf16.mxu0 0
      %1097 = vmatpush1.bf16.msra.mxu0 0
      %1098 = vmatprep.mubr.bf16.mxu0 0
      %1099 = vmatmul.mubr.bf16.gmra.mrb[0].mxu0 %v1017
      %v1100 = vpop.f32.mrb[0].mxu0
      %v1101 = vadd.f32 0.0, %v1100
      %v1102 = vpop.f32.mrb[0].mxu0
      %v1103 = vadd.f32 0.0, %v1102
      %v1104 = vpop.f32.mrb[0].mxu0
      %v1105 = vpop.f32.mrb[0].mxu0
      %1106 = vdwg.mxu0
      %v1107 = vadd.f32 %v1021, %v1060
      %v1108 = vadd.f32 %v1022, %v1062
      %v1109 = vadd.f32 %v1023, %v1101
      %v1110 = vadd.f32 %v1024, %v1103
      %v1111 = vxor.u32 %v1107, 2147483648
      %v1112 = vmul.f32 %v1111, 1.442695
      %v1113 = vpow.pop %v1112
      %v1114 = vadd.f32 %v1113, 1.0
      %v1115 = vrcp.pop %v1114
      %v1116 = vmul.f32 1.0, %v1115
      %v1117 = vxor.u32 %v1108, 2147483648
      %v1118 = vmul.f32 %v1117, 1.442695
      %v1119 = vpow.pop %v1118
      %v1120 = vadd.f32 %v1119, 1.0
      %v1121 = vrcp.pop %v1120
      %v1122 = vmul.f32 1.0, %v1121
      %v1123 = vtanh.pop %v1109
      %v1124 = vxor.u32 %v1110, 2147483648
      %v1125 = vmul.f32 %v1124, 1.442695
      %v1126 = vpow.pop %v1125
      %v1127 = vadd.f32 %v1126, 1.0
      %v1128 = vrcp.pop %v1127
      %v1129 = vmul.f32 1.0, %v1128
      %v1130 = vmul.f32 %v1122, %v1014
      %v1131 = vmul.f32 %v1116, %v1123
      %v1132 = vadd.f32 %v1130, %v1131
      %v1133 = vtanh.pop %v1132
      %v1134 = vmul.f32 %v1129, %v1133
      %v1135 = vpack.c.bf16 %v1134, %v1134
      %s1136 = scalar_lea.vmem %s230, 8
      %1137 = vst [vmem:[%s1136] sm:$0xf] %v1135
      %s1138 = scalar_lea.vmem [#allocation2], 96
      %v1139 = vld [vmem:[%s1138] sm:$0xff]
      %v1140 = vld [vmem:[%s1138 + $0x8] sm:$0xff]
      %v1141 = vld [vmem:[%s1138 + $0x10] sm:$0xff]
      %v1142 = vld [vmem:[%s1138 + $0x18] sm:$0xff]
      %1143 = vmatprep.subr.bf16.mxu0 %v727
      %1144 = vmatpush1.bf16.msra.mxu0 %v726
      %1145 = vmatprep.subr.bf16.mxu0 %v731
      %1146 = vmatpush1.bf16.msra.mxu0 %v730
      %1147 = vmatprep.subr.bf16.mxu0 %v735
      %1148 = vmatpush1.bf16.msra.mxu0 %v734
      %1149 = vmatprep.subr.bf16.mxu0 %v739
      %1150 = vmatpush1.bf16.msra.mxu0 %v738
      %1151 = vmatprep.subr.bf16.mxu0 %v743
      %1152 = vmatpush1.bf16.msra.mxu0 %v742
      %1153 = vmatprep.subr.bf16.mxu0 %v747
      %1154 = vmatpush1.bf16.msra.mxu0 %v746
      %1155 = vmatprep.subr.bf16.mxu0 %v751
      %1156 = vmatpush1.bf16.msra.mxu0 %v750
      %1157 = vmatprep.subr.bf16.mxu0 %v755
      %1158 = vmatpush1.bf16.msra.mxu0 %v754
      %1159 = vmatprep.subr.bf16.mxu0 0
      %1160 = vmatpush1.bf16.msra.mxu0 0
      %1161 = vmatprep.subr.bf16.mxu0 0
      %1162 = vmatpush1.bf16.msra.mxu0 0
      %1163 = vmatprep.subr.bf16.mxu0 0
      %1164 = vmatpush1.bf16.msra.mxu0 0
      %1165 = vmatprep.subr.bf16.mxu0 0
      %1166 = vmatpush1.bf16.msra.mxu0 0
      %1167 = vmatprep.subr.bf16.mxu0 0
      %1168 = vmatpush1.bf16.msra.mxu0 0
      %1169 = vmatprep.subr.bf16.mxu0 0
      %1170 = vmatpush1.bf16.msra.mxu0 0
      %1171 = vmatprep.subr.bf16.mxu0 0
      %1172 = vmatpush1.bf16.msra.mxu0 0
      %1173 = vmatprep.subr.bf16.mxu0 0
      %1174 = vmatpush1.bf16.msra.mxu0 0
      %1175 = vmatprep.mubr.bf16.mxu0 0
      %1176 = vmatmul.mubr.bf16.gmra.mrb[0].mxu0 %v1135
      %v1177 = vpop.f32.mrb[0].mxu0
      %v1178 = vadd.f32 0.0, %v1177
      %v1179 = vpop.f32.mrb[0].mxu0
      %v1180 = vadd.f32 0.0, %v1179
      %v1181 = vpop.f32.mrb[0].mxu0
      %v1182 = vpop.f32.mrb[0].mxu0
      %1183 = vdwg.mxu0
      %1184 = vmatprep.subr.bf16.mxu0 %v729
      %1185 = vmatpush1.bf16.msra.mxu0 %v728
      %1186 = vmatprep.subr.bf16.mxu0 %v733
      %1187 = vmatpush1.bf16.msra.mxu0 %v732
      %1188 = vmatprep.subr.bf16.mxu0 %v737
      %1189 = vmatpush1.bf16.msra.mxu0 %v736
      %1190 = vmatprep.subr.bf16.mxu0 %v741
      %1191 = vmatpush1.bf16.msra.mxu0 %v740
      %1192 = vmatprep.subr.bf16.mxu0 %v745
      %1193 = vmatpush1.bf16.msra.mxu0 %v744
      %1194 = vmatprep.subr.bf16.mxu0 %v749
      %1195 = vmatpush1.bf16.msra.mxu0 %v748
      %1196 = vmatprep.subr.bf16.mxu0 %v753
      %1197 = vmatpush1.bf16.msra.mxu0 %v752
      %1198 = vmatprep.subr.bf16.mxu0 %v757
      %1199 = vmatpush1.bf16.msra.mxu0 %v756
      %1200 = vmatprep.subr.bf16.mxu0 0
      %1201 = vmatpush1.bf16.msra.mxu0 0
      %1202 = vmatprep.subr.bf16.mxu0 0
      %1203 = vmatpush1.bf16.msra.mxu0 0
      %1204 = vmatprep.subr.bf16.mxu0 0
      %1205 = vmatpush1.bf16.msra.mxu0 0
      %1206 = vmatprep.subr.bf16.mxu0 0
      %1207 = vmatpush1.bf16.msra.mxu0 0
      %1208 = vmatprep.subr.bf16.mxu0 0
      %1209 = vmatpush1.bf16.msra.mxu0 0
      %1210 = vmatprep.subr.bf16.mxu0 0
      %1211 = vmatpush1.bf16.msra.mxu0 0
      %1212 = vmatprep.subr.bf16.mxu0 0
      %1213 = vmatpush1.bf16.msra.mxu0 0
      %1214 = vmatprep.subr.bf16.mxu0 0
      %1215 = vmatpush1.bf16.msra.mxu0 0
      %1216 = vmatprep.mubr.bf16.mxu0 0
      %1217 = vmatmul.mubr.bf16.gmra.mrb[0].mxu0 %v1135
      %v1218 = vpop.f32.mrb[0].mxu0
      %v1219 = vadd.f32 0.0, %v1218
      %v1220 = vpop.f32.mrb[0].mxu0
      %v1221 = vadd.f32 0.0, %v1220
      %v1222 = vpop.f32.mrb[0].mxu0
      %v1223 = vpop.f32.mrb[0].mxu0
      %1224 = vdwg.mxu0
      %v1225 = vadd.f32 %v1139, %v1178
      %v1226 = vadd.f32 %v1140, %v1180
      %v1227 = vadd.f32 %v1141, %v1219
      %v1228 = vadd.f32 %v1142, %v1221
      %v1229 = vxor.u32 %v1225, 2147483648
      %v1230 = vmul.f32 %v1229, 1.442695
      %v1231 = vpow.pop %v1230
      %v1232 = vadd.f32 %v1231, 1.0
      %v1233 = vrcp.pop %v1232
      %v1234 = vmul.f32 1.0, %v1233
      %v1235 = vxor.u32 %v1226, 2147483648
      %v1236 = vmul.f32 %v1235, 1.442695
      %v1237 = vpow.pop %v1236
      %v1238 = vadd.f32 %v1237, 1.0
      %v1239 = vrcp.pop %v1238
      %v1240 = vmul.f32 1.0, %v1239
      %v1241 = vtanh.pop %v1227
      %v1242 = vxor.u32 %v1228, 2147483648
      %v1243 = vmul.f32 %v1242, 1.442695
      %v1244 = vpow.pop %v1243
      %v1245 = vadd.f32 %v1244, 1.0
      %v1246 = vrcp.pop %v1245
      %v1247 = vmul.f32 1.0, %v1246
      %v1248 = vmul.f32 %v1240, %v1132
      %v1249 = vmul.f32 %v1234, %v1241
      %v1250 = vadd.f32 %v1248, %v1249
      %v1251 = vtanh.pop %v1250
      %v1252 = vmul.f32 %v1247, %v1251
      %v1253 = vpack.c.bf16 %v1252, %v1252
      %s1254 = scalar_lea.vmem %s230, 12
      %1255 = vst [vmem:[%s1254] sm:$0xf] %v1253
      %1256 = vst [vmem:[#allocation3] sm:$0xff] %v1252
      %1257 = vst [vmem:[#allocation4] sm:$0xff] %v1250
      %s1258 = smul.u32 4, %s20
      %p1259 = scmp.lt.s32.totalorder %s1258, 7
      %s1260 = scalar_select %p1259, %s1258, 7
      %p1261 = scmp.lt.s32.totalorder %s19, 0
      %s1262 = scalar_select %p1261, %s19, 0
      %s1263 = sadd.s32 %s1262, %s1260
      %s1264 = smul.addr %s1263, 4
      %s1265 = scalar_lea.vmem %s4, %s1264
      // Predicated region
      $region41: #{lstm_atten_emb_forward.4} parent=35 // pred_check
        %p1266 = pneg %p138
      $region42: #{lstm_atten_emb_forward.4} parent=35 // pred_check_branch
        %1268 = sbr.rel (%p1266) target = $region44
      $region43: #{lstm_atten_emb_forward.4} parent=35 // pred_region
        %s1269 = smul.u32 4, %s20
      $region44: #{lstm_atten_emb_forward.4} parent=35 // pred_fallthru
        _
    $region36: #{lstm_atten_emb_forward.4} parent=5 // pred_fallthru
      _
    %p1270 = scmp.le.s32.totalorder 2, %s10
    // Predicated region
    $region45: #{lstm_atten_emb_forward.4} parent=5 // pred_check
      %p1271 = pneg %p1270
    $region46: #{lstm_atten_emb_forward.4} parent=5 // pred_check_branch
      %1273 = sbr.rel (%p1271) target = $region48
    $region47: #{lstm_atten_emb_forward.4} parent=5 // pred_region
      %s1274 = ssub.s32 %s10, 2
      // Predicated region
      $region49: #{lstm_atten_emb_forward.4} parent=47 // pred_check
        %p1275 = pneg %p144
      $region50: #{lstm_atten_emb_forward.4} parent=47 // pred_check_branch
        %1277 = sbr.rel (%p1275) target = $region52
      $region51: #{lstm_atten_emb_forward.4} parent=47 // pred_region
        %s1278 = smul.u32 4, %s22
        %p1279 = scmp.lt.s32.totalorder %s1278, 7
        %s1280 = scalar_select %p1279, %s1278, 7
        %p1281 = scmp.lt.s32.totalorder %s21, 0
        %s1282 = scalar_select %p1281, %s21, 0
        %s1283 = sadd.s32 %s1282, %s1280
        %s1284 = smul.addr %s1283, 4
        %s1285 = scalar_lea.vmem %s4, %s1284
      $region52: #{lstm_atten_emb_forward.4} parent=47 // pred_fallthru
        _
    $region48: #{lstm_atten_emb_forward.4} parent=5 // pred_fallthru
      _
  $region6: #{lstm_atten_emb_forward.4} parent=0 // loop_footer
    %s14 = sadd.s32 1, %s10
  $region7: #{lstm_atten_emb_forward.4} parent=0 // loop_footer_branch
    %9 = sbr.rel target = $region3
  $region8: #{lstm_atten_emb_forward.4} parent=0 // loop_exit
    _

// kernel: lstm_atten_emb_forward.5
$region0: #{lstm_atten_emb_forward.5}
  #allocation0 [shape = 'u32[]', space=smem, size = 0x4, offset = 0x4, fixed_abs, tag = 'smem constant byte address 0x4 - core index']
  #allocation1 [shape = 'u32[144,128]{1,0:T(1,128)}', space=vmem, size = 0x12000, scoped, tag = 'internal scratch']
  %s0 = inlined_call_operand.vmem [shape: bf16[8,8,128], index: 0, kind: input, shape index: {}]
  %s1 = inlined_call_operand.vmem [shape: bf16[128,128], index: 1, kind: input, shape index: {}]
  %s2 = inlined_call_operand.vmem [shape: bf16[128,128], index: 2, kind: input, shape index: {}]
  %s3 = inlined_call_operand.vmem [shape: f32[1,128], index: 3, kind: input, shape index: {}]
  %s4 = inlined_call_operand.vmem [shape: bf16[128,128], index: 4, kind: input, shape index: {}]
  %s5 = inlined_call_operand.vmem [shape: f32[1,128], index: 5, kind: input, shape index: {}]
  %s6 = inlined_call_operand.vmem [shape: f32[8,128], index: 6, kind: output, shape index: {}]
  %s7 = sld [smem:[#allocation0]]
  $region34: #{lstm_atten_emb_forward.5} parent=0
    _
  %s9 = ssub.s32 1, %s7
  %s10 = scalar_select 0, %s9, %s7
  // Predicated region
  $region2: #{lstm_atten_emb_forward.5} parent=0 // pred_check
    _
  $region3: #{lstm_atten_emb_forward.5} parent=0 // pred_check_branch
    %12 = sbr.rel (0) target = $region5
  $region4: #{lstm_atten_emb_forward.5} parent=0 // pred_region
    _
  $region5: #{lstm_atten_emb_forward.5} parent=0 // pred_fallthru
    _
  // Predicated region
  $region6: #{lstm_atten_emb_forward.5} parent=0 // pred_check
    _
  $region7: #{lstm_atten_emb_forward.5} parent=0 // pred_check_branch
    %14 = sbr.rel (0) target = $region9
  $region8: #{lstm_atten_emb_forward.5} parent=0 // pred_region
    _
  $region9: #{lstm_atten_emb_forward.5} parent=0 // pred_fallthru
    _
  // Predicated region
  $region10: #{lstm_atten_emb_forward.5} parent=0 // pred_check
    _
  $region11: #{lstm_atten_emb_forward.5} parent=0 // pred_check_branch
    %16 = sbr.rel (0) target = $region13
  $region12: #{lstm_atten_emb_forward.5} parent=0 // pred_region
    _
  $region13: #{lstm_atten_emb_forward.5} parent=0 // pred_fallthru
    _
  // Predicated region
  $region14: #{lstm_atten_emb_forward.5} parent=0 // pred_check
    _
  $region15: #{lstm_atten_emb_forward.5} parent=0 // pred_check_branch
    %18 = sbr.rel (0) target = $region17
  $region16: #{lstm_atten_emb_forward.5} parent=0 // pred_region
    _
  $region17: #{lstm_atten_emb_forward.5} parent=0 // pred_fallthru
    _
  // Predicated region
  $region18: #{lstm_atten_emb_forward.5} parent=0 // pred_check
    _
  $region19: #{lstm_atten_emb_forward.5} parent=0 // pred_check_branch
    %20 = sbr.rel (0) target = $region21
  $region20: #{lstm_atten_emb_forward.5} parent=0 // pred_region
    _
  $region21: #{lstm_atten_emb_forward.5} parent=0 // pred_fallthru
    _
  // Predicated region
  $region22: #{lstm_atten_emb_forward.5} parent=0 // pred_check
    _
  $region23: #{lstm_atten_emb_forward.5} parent=0 // pred_check_branch
    %22 = sbr.rel (0) target = $region25
  $region24: #{lstm_atten_emb_forward.5} parent=0 // pred_region
    _
  $region25: #{lstm_atten_emb_forward.5} parent=0 // pred_fallthru
    _
  %v24 = vld [vmem:[%s0] sm:$0xf]
  %v25 = vld [vmem:[%s0 + $0x4] sm:$0xf]
  %v26 = vld [vmem:[%s0 + $0x8] sm:$0xf]
  %v27 = vld [vmem:[%s0 + $0xc] sm:$0xf]
  %v28 = vld [vmem:[%s0 + $0x10] sm:$0xf]
  %v29 = vld [vmem:[%s0 + $0x14] sm:$0xf]
  %v30 = vld [vmem:[%s0 + $0x18] sm:$0xf]
  %v31 = vld [vmem:[%s0 + $0x1c] sm:$0xf]
  %v32 = vld [vmem:[%s1] sm:$0xf]
  %v33 = vld [vmem:[%s1 + $0x4] sm:$0xf]
  %v34 = vld [vmem:[%s1 + $0x8] sm:$0xf]
  %v35 = vld [vmem:[%s1 + $0xc] sm:$0xf]
  %v36 = vld [vmem:[%s1 + $0x10] sm:$0xf]
  %v37 = vld [vmem:[%s1 + $0x14] sm:$0xf]
  %v38 = vld [vmem:[%s1 + $0x18] sm:$0xf]
  %v39 = vld [vmem:[%s1 + $0x1c] sm:$0xf]
  %v40 = vld [vmem:[%s1 + $0x20] sm:$0xf]
  %v41 = vld [vmem:[%s1 + $0x24] sm:$0xf]
  %v42 = vld [vmem:[%s1 + $0x28] sm:$0xf]
  %v43 = vld [vmem:[%s1 + $0x2c] sm:$0xf]
  %v44 = vld [vmem:[%s1 + $0x30] sm:$0xf]
  %v45 = vld [vmem:[%s1 + $0x34] sm:$0xf]
  %v46 = vld [vmem:[%s1 + $0x38] sm:$0xf]
  %v47 = vld [vmem:[%s1 + $0x3c] sm:$0xf]
  %v56 = vunpack.c.l.b16 %v24
  %v57 = vunpack.c.l.b16 %v25
  %v58 = vunpack.c.l.b16 %v26
  %v59 = vunpack.c.l.b16 %v27
  %v60 = vunpack.c.l.b16 %v28
  %v61 = vunpack.c.l.b16 %v29
  %v62 = vunpack.c.l.b16 %v30
  %v63 = vunpack.c.l.b16 %v31
  %v64 = vpack.c.b16 %v57, %v56
  %v65 = vpack.c.b16 %v59, %v58
  %v66 = vpack.c.b16 %v61, %v60
  %v67 = vpack.c.b16 %v63, %v62
  %v88 = vunpack.c.l.b16 %v32
  %v89 = vunpack.c.l.b16 %v33
  %v90 = vunpack.c.l.b16 %v34
  %v91 = vunpack.c.l.b16 %v35
  %v92 = vunpack.c.l.b16 %v36
  %v93 = vunpack.c.l.b16 %v37
  %v94 = vunpack.c.l.b16 %v38
  %v95 = vunpack.c.l.b16 %v39
  %v96 = vunpack.c.l.b16 %v40
  %v97 = vunpack.c.l.b16 %v41
  %v98 = vunpack.c.l.b16 %v42
  %v99 = vunpack.c.l.b16 %v43
  %v100 = vunpack.c.l.b16 %v44
  %v101 = vunpack.c.l.b16 %v45
  %v102 = vunpack.c.l.b16 %v46
  %v103 = vunpack.c.l.b16 %v47
  %v104 = vpack.c.b16 %v89, %v88
  %v105 = vpack.c.b16 %v91, %v90
  %v106 = vpack.c.b16 %v93, %v92
  %v107 = vpack.c.b16 %v95, %v94
  %v108 = vpack.c.b16 %v97, %v96
  %v109 = vpack.c.b16 %v99, %v98
  %v110 = vpack.c.b16 %v101, %v100
  %v111 = vpack.c.b16 %v103, %v102
  %120 = vmatprep.subr.bf16.mxu0 0
  %121 = vmatpush1.bf16.msra.mxu0 %v104
  %122 = vmatprep.subr.bf16.mxu0 0
  %123 = vmatpush1.bf16.msra.mxu0 %v105
  %124 = vmatprep.subr.bf16.mxu0 0
  %125 = vmatpush1.bf16.msra.mxu0 %v106
  %126 = vmatprep.subr.bf16.mxu0 0
  %127 = vmatpush1.bf16.msra.mxu0 %v107
  %128 = vmatprep.subr.bf16.mxu0 0
  %129 = vmatpush1.bf16.msra.mxu0 %v108
  %130 = vmatprep.subr.bf16.mxu0 0
  %131 = vmatpush1.bf16.msra.mxu0 %v109
  %132 = vmatprep.subr.bf16.mxu0 0
  %133 = vmatpush1.bf16.msra.mxu0 %v110
  %134 = vmatprep.subr.bf16.mxu0 0
  %135 = vmatpush1.bf16.msra.mxu0 %v111
  %136 = vmatprep.subr.bf16.mxu0 0
  %137 = vmatpush1.bf16.msra.mxu0 0
  %138 = vmatprep.subr.bf16.mxu0 0
  %139 = vmatpush1.bf16.msra.mxu0 0
  %140 = vmatprep.subr.bf16.mxu0 0
  %141 = vmatpush1.bf16.msra.mxu0 0
  %142 = vmatprep.subr.bf16.mxu0 0
  %143 = vmatpush1.bf16.msra.mxu0 0
  %144 = vmatprep.subr.bf16.mxu0 0
  %145 = vmatpush1.bf16.msra.mxu0 0
  %146 = vmatprep.subr.bf16.mxu0 0
  %147 = vmatpush1.bf16.msra.mxu0 0
  %148 = vmatprep.subr.bf16.mxu0 0
  %149 = vmatpush1.bf16.msra.mxu0 0
  %150 = vmatprep.subr.bf16.mxu0 0
  %151 = vmatpush1.bf16.msra.mxu0 0
  %152 = vmatprep.mubr.bf16.mxu0 0
  %153 = vmatmul.mubr.bf16.gmra.mrb[0].mxu0 %v64
  %v154 = vpop.f32.mrb[0].mxu0
  %v155 = vadd.f32 0.0, %v154
  %v156 = vpop.f32.mrb[0].mxu0
  %v157 = vpop.f32.mrb[0].mxu0
  %v158 = vadd.f32 0.0, %v157
  %v159 = vpop.f32.mrb[0].mxu0
  %160 = vmatprep.mubr.bf16.mxu0 0
  %161 = vmatmul.mubr.bf16.gmra.mrb[0].mxu0 %v65
  %v162 = vpop.f32.mrb[0].mxu0
  %v163 = vadd.f32 0.0, %v162
  %v164 = vpop.f32.mrb[0].mxu0
  %v165 = vpop.f32.mrb[0].mxu0
  %v166 = vadd.f32 0.0, %v165
  %v167 = vpop.f32.mrb[0].mxu0
  %168 = vmatprep.mubr.bf16.mxu0 0
  %169 = vmatmul.mubr.bf16.gmra.mrb[0].mxu0 %v66
  %v170 = vpop.f32.mrb[0].mxu0
  %v171 = vadd.f32 0.0, %v170
  %v172 = vpop.f32.mrb[0].mxu0
  %v173 = vpop.f32.mrb[0].mxu0
  %v174 = vadd.f32 0.0, %v173
  %v175 = vpop.f32.mrb[0].mxu0
  %176 = vmatprep.mubr.bf16.mxu0 0
  %177 = vmatmul.mubr.bf16.gmra.mrb[0].mxu0 %v67
  %v178 = vpop.f32.mrb[0].mxu0
  %v179 = vadd.f32 0.0, %v178
  %v180 = vpop.f32.mrb[0].mxu0
  %v181 = vpop.f32.mrb[0].mxu0
  %v182 = vadd.f32 0.0, %v181
  %v183 = vpop.f32.mrb[0].mxu0
  %184 = vdwg.mxu0
  %v185 = vmax.f32 %v155, %v171
  %v186 = vmax.f32 %v158, %v174
  %v187 = vmax.f32 %v163, %v179
  %v188 = vmax.f32 %v166, %v182
  %v189 = vmax.f32 %v185, %v186
  %v190 = vmax.f32 %v187, %v188
  %v191 = vmax.f32 %v189, %v190
  %v192 = vsub.f32 %v155, %v191
  %v193 = vsub.f32 %v158, %v191
  %v194 = vsub.f32 %v163, %v191
  %v195 = vsub.f32 %v166, %v191
  %v196 = vsub.f32 %v171, %v191
  %v197 = vsub.f32 %v174, %v191
  %v198 = vsub.f32 %v179, %v191
  %v199 = vsub.f32 %v182, %v191
  %v200 = vmul.f32 %v192, 1.442695
  %v201 = vpow.pop %v200
  %v202 = vmul.f32 %v193, 1.442695
  %v203 = vpow.pop %v202
  %v204 = vmul.f32 %v194, 1.442695
  %v205 = vpow.pop %v204
  %v206 = vmul.f32 %v195, 1.442695
  %v207 = vpow.pop %v206
  %v208 = vmul.f32 %v196, 1.442695
  %v209 = vpow.pop %v208
  %v210 = vmul.f32 %v197, 1.442695
  %v211 = vpow.pop %v210
  %v212 = vmul.f32 %v198, 1.442695
  %v213 = vpow.pop %v212
  %v214 = vmul.f32 %v199, 1.442695
  %v215 = vpow.pop %v214
  %v216 = vadd.f32 %v201, %v203
  %v217 = vadd.f32 %v216, %v205
  %v218 = vadd.f32 %v217, %v207
  %v219 = vadd.f32 %v218, %v209
  %v220 = vadd.f32 %v219, %v211
  %v221 = vadd.f32 %v220, %v213
  %v222 = vadd.f32 %v221, %v215
  %v223 = vrcp.pop %v222
  %v224 = vmul.f32 %v201, %v223
  %v225 = vmul.f32 %v203, %v223
  %v226 = vmul.f32 %v205, %v223
  %v227 = vmul.f32 %v207, %v223
  %v228 = vmul.f32 %v209, %v223
  %v229 = vmul.f32 %v211, %v223
  %v230 = vmul.f32 %v213, %v223
  %v231 = vmul.f32 %v215, %v223
  %v232 = vld [vmem:[%s0] sm:$0xf]
  %v233 = vunpack.c.l.bf16 %v232
  %v234 = vmul.f32 %v233, %v224
  %v235 = vadd.f32 %v234, 0.0
  %s236 = scalar_lea.vmem %s0, 4
  %v237 = vld [vmem:[%s236] sm:$0xf]
  %v238 = vunpack.c.l.bf16 %v237
  %v239 = vmul.f32 %v238, %v225
  %v240 = vadd.f32 %v235, %v239
  %s241 = scalar_lea.vmem %s0, 8
  %v242 = vld [vmem:[%s241] sm:$0xf]
  %v243 = vunpack.c.l.bf16 %v242
  %v244 = vmul.f32 %v243, %v226
  %v245 = vadd.f32 %v240, %v244
  %s246 = scalar_lea.vmem %s0, 12
  %v247 = vld [vmem:[%s246] sm:$0xf]
  %v248 = vunpack.c.l.bf16 %v247
  %v249 = vmul.f32 %v248, %v227
  %v250 = vadd.f32 %v245, %v249
  %s251 = scalar_lea.vmem %s0, 16
  %v252 = vld [vmem:[%s251] sm:$0xf]
  %v253 = vunpack.c.l.bf16 %v252
  %v254 = vmul.f32 %v253, %v228
  %v255 = vadd.f32 %v250, %v254
  %s256 = scalar_lea.vmem %s0, 20
  %v257 = vld [vmem:[%s256] sm:$0xf]
  %v258 = vunpack.c.l.bf16 %v257
  %v259 = vmul.f32 %v258, %v229
  %v260 = vadd.f32 %v255, %v259
  %s261 = scalar_lea.vmem %s0, 24
  %v262 = vld [vmem:[%s261] sm:$0xf]
  %v263 = vunpack.c.l.bf16 %v262
  %v264 = vmul.f32 %v263, %v230
  %v265 = vadd.f32 %v260, %v264
  %s266 = scalar_lea.vmem %s0, 28
  %v267 = vld [vmem:[%s266] sm:$0xf]
  %v268 = vunpack.c.l.bf16 %v267
  %v269 = vmul.f32 %v268, %v231
  %v270 = vadd.f32 %v265, %v269
  %v271 = vpack.c.bf16 %v270, %v270
  %v272 = vld [vmem:[%s2] sm:$0xf]
  %v273 = vld [vmem:[%s2 + $0x4] sm:$0xf]
  %v274 = vld [vmem:[%s2 + $0x8] sm:$0xf]
  %v275 = vld [vmem:[%s2 + $0xc] sm:$0xf]
  %v276 = vld [vmem:[%s2 + $0x10] sm:$0xf]
  %v277 = vld [vmem:[%s2 + $0x14] sm:$0xf]
  %v278 = vld [vmem:[%s2 + $0x18] sm:$0xf]
  %v279 = vld [vmem:[%s2 + $0x1c] sm:$0xf]
  %v280 = vld [vmem:[%s2 + $0x20] sm:$0xf]
  %v281 = vld [vmem:[%s2 + $0x24] sm:$0xf]
  %v282 = vld [vmem:[%s2 + $0x28] sm:$0xf]
  %v283 = vld [vmem:[%s2 + $0x2c] sm:$0xf]
  %v284 = vld [vmem:[%s2 + $0x30] sm:$0xf]
  %v285 = vld [vmem:[%s2 + $0x34] sm:$0xf]
  %v286 = vld [vmem:[%s2 + $0x38] sm:$0xf]
  %v287 = vld [vmem:[%s2 + $0x3c] sm:$0xf]
  %v288 = vld [vmem:[%s3] sm:$0x1]
  %v290 = vlaneseq
  %v291 = vshrl.u32 %v290, 7
  %v292 = vsub.s32 0, %v291
  %v293 = vrot.slane %v288, %v292
  %v311 = vunpack.c.l.b16 %v272
  %v312 = vunpack.c.l.b16 %v273
  %v313 = vunpack.c.l.b16 %v274
  %v314 = vunpack.c.l.b16 %v275
  %v315 = vunpack.c.l.b16 %v276
  %v316 = vunpack.c.l.b16 %v277
  %v317 = vunpack.c.l.b16 %v278
  %v318 = vunpack.c.l.b16 %v279
  %v319 = vunpack.c.l.b16 %v280
  %v320 = vunpack.c.l.b16 %v281
  %v321 = vunpack.c.l.b16 %v282
  %v322 = vunpack.c.l.b16 %v283
  %v323 = vunpack.c.l.b16 %v284
  %v324 = vunpack.c.l.b16 %v285
  %v325 = vunpack.c.l.b16 %v286
  %v326 = vunpack.c.l.b16 %v287
  %v327 = vpack.c.b16 %v312, %v311
  %v328 = vpack.c.b16 %v314, %v313
  %v329 = vpack.c.b16 %v316, %v315
  %v330 = vpack.c.b16 %v318, %v317
  %v331 = vpack.c.b16 %v320, %v319
  %v332 = vpack.c.b16 %v322, %v321
  %v333 = vpack.c.b16 %v324, %v323
  %v334 = vpack.c.b16 %v326, %v325
  %343 = vmatprep.subr.bf16.mxu0 0
  %344 = vmatpush1.bf16.msra.mxu0 %v327
  %345 = vmatprep.subr.bf16.mxu0 0
  %346 = vmatpush1.bf16.msra.mxu0 %v328
  %347 = vmatprep.subr.bf16.mxu0 0
  %348 = vmatpush1.bf16.msra.mxu0 %v329
  %349 = vmatprep.subr.bf16.mxu0 0
  %350 = vmatpush1.bf16.msra.mxu0 %v330
  %351 = vmatprep.subr.bf16.mxu0 0
  %352 = vmatpush1.bf16.msra.mxu0 %v331
  %353 = vmatprep.subr.bf16.mxu0 0
  %354 = vmatpush1.bf16.msra.mxu0 %v332
  %355 = vmatprep.subr.bf16.mxu0 0
  %356 = vmatpush1.bf16.msra.mxu0 %v333
  %357 = vmatprep.subr.bf16.mxu0 0
  %358 = vmatpush1.bf16.msra.mxu0 %v334
  %359 = vmatprep.subr.bf16.mxu0 0
  %360 = vmatpush1.bf16.msra.mxu0 0
  %361 = vmatprep.subr.bf16.mxu0 0
  %362 = vmatpush1.bf16.msra.mxu0 0
  %363 = vmatprep.subr.bf16.mxu0 0
  %364 = vmatpush1.bf16.msra.mxu0 0
  %365 = vmatprep.subr.bf16.mxu0 0
  %366 = vmatpush1.bf16.msra.mxu0 0
  %367 = vmatprep.subr.bf16.mxu0 0
  %368 = vmatpush1.bf16.msra.mxu0 0
  %369 = vmatprep.subr.bf16.mxu0 0
  %370 = vmatpush1.bf16.msra.mxu0 0
  %371 = vmatprep.subr.bf16.mxu0 0
  %372 = vmatpush1.bf16.msra.mxu0 0
  %373 = vmatprep.subr.bf16.mxu0 0
  %374 = vmatpush1.bf16.msra.mxu0 0
  %375 = vmatprep.mubr.bf16.mxu0 0
  %376 = vmatmul.mubr.bf16.gmra.mrb[0].mxu0 %v271
  %v377 = vpop.f32.mrb[0].mxu0
  %v378 = vadd.f32 %v293, %v377
  %v379 = vpop.f32.mrb[0].mxu0
  %v380 = vpop.f32.mrb[0].mxu0
  %v381 = vpop.f32.mrb[0].mxu0
  %382 = vdwg.mxu0
  %v383 = vmax.f32 %v378, 0.0
  %v384 = vpack.c.bf16 %v383, %v383
  %v385 = vld [vmem:[%s4] sm:$0xf]
  %v386 = vld [vmem:[%s4 + $0x4] sm:$0xf]
  %v387 = vld [vmem:[%s4 + $0x8] sm:$0xf]
  %v388 = vld [vmem:[%s4 + $0xc] sm:$0xf]
  %v389 = vld [vmem:[%s4 + $0x10] sm:$0xf]
  %v390 = vld [vmem:[%s4 + $0x14] sm:$0xf]
  %v391 = vld [vmem:[%s4 + $0x18] sm:$0xf]
  %v392 = vld [vmem:[%s4 + $0x1c] sm:$0xf]
  %v393 = vld [vmem:[%s4 + $0x20] sm:$0xf]
  %v394 = vld [vmem:[%s4 + $0x24] sm:$0xf]
  %v395 = vld [vmem:[%s4 + $0x28] sm:$0xf]
  %v396 = vld [vmem:[%s4 + $0x2c] sm:$0xf]
  %v397 = vld [vmem:[%s4 + $0x30] sm:$0xf]
  %v398 = vld [vmem:[%s4 + $0x34] sm:$0xf]
  %v399 = vld [vmem:[%s4 + $0x38] sm:$0xf]
  %v400 = vld [vmem:[%s4 + $0x3c] sm:$0xf]
  %v401 = vld [vmem:[%s5] sm:$0x1]
  %v403 = vlaneseq
  %v404 = vshrl.u32 %v403, 7
  %v405 = vsub.s32 0, %v404
  %v406 = vrot.slane %v401, %v405
  %v424 = vunpack.c.l.b16 %v385
  %v425 = vunpack.c.l.b16 %v386
  %v426 = vunpack.c.l.b16 %v387
  %v427 = vunpack.c.l.b16 %v388
  %v428 = vunpack.c.l.b16 %v389
  %v429 = vunpack.c.l.b16 %v390
  %v430 = vunpack.c.l.b16 %v391
  %v431 = vunpack.c.l.b16 %v392
  %v432 = vunpack.c.l.b16 %v393
  %v433 = vunpack.c.l.b16 %v394
  %v434 = vunpack.c.l.b16 %v395
  %v435 = vunpack.c.l.b16 %v396
  %v436 = vunpack.c.l.b16 %v397
  %v437 = vunpack.c.l.b16 %v398
  %v438 = vunpack.c.l.b16 %v399
  %v439 = vunpack.c.l.b16 %v400
  %v440 = vpack.c.b16 %v425, %v424
  %v441 = vpack.c.b16 %v427, %v426
  %v442 = vpack.c.b16 %v429, %v428
  %v443 = vpack.c.b16 %v431, %v430
  %v444 = vpack.c.b16 %v433, %v432
  %v445 = vpack.c.b16 %v435, %v434
  %v446 = vpack.c.b16 %v437, %v436
  %v447 = vpack.c.b16 %v439, %v438
  %456 = vmatprep.subr.bf16.mxu0 0
  %457 = vmatpush1.bf16.msra.mxu0 %v440
  %458 = vmatprep.subr.bf16.mxu0 0
  %459 = vmatpush1.bf16.msra.mxu0 %v441
  %460 = vmatprep.subr.bf16.mxu0 0
  %461 = vmatpush1.bf16.msra.mxu0 %v442
  %462 = vmatprep.subr.bf16.mxu0 0
  %463 = vmatpush1.bf16.msra.mxu0 %v443
  %464 = vmatprep.subr.bf16.mxu0 0
  %465 = vmatpush1.bf16.msra.mxu0 %v444
  %466 = vmatprep.subr.bf16.mxu0 0
  %467 = vmatpush1.bf16.msra.mxu0 %v445
  %468 = vmatprep.subr.bf16.mxu0 0
  %469 = vmatpush1.bf16.msra.mxu0 %v446
  %470 = vmatprep.subr.bf16.mxu0 0
  %471 = vmatpush1.bf16.msra.mxu0 %v447
  %472 = vmatprep.subr.bf16.mxu0 0
  %473 = vmatpush1.bf16.msra.mxu0 0
  %474 = vmatprep.subr.bf16.mxu0 0
  %475 = vmatpush1.bf16.msra.mxu0 0
  %476 = vmatprep.subr.bf16.mxu0 0
  %477 = vmatpush1.bf16.msra.mxu0 0
  %478 = vmatprep.subr.bf16.mxu0 0
  %479 = vmatpush1.bf16.msra.mxu0 0
  %480 = vmatprep.subr.bf16.mxu0 0
  %481 = vmatpush1.bf16.msra.mxu0 0
  %482 = vmatprep.subr.bf16.mxu0 0
  %483 = vmatpush1.bf16.msra.mxu0 0
  %484 = vmatprep.subr.bf16.mxu0 0
  %485 = vmatpush1.bf16.msra.mxu0 0
  %486 = vmatprep.subr.bf16.mxu0 0
  %487 = vmatpush1.bf16.msra.mxu0 0
  %488 = vmatprep.mubr.bf16.mxu0 0
  %489 = vmatmul.mubr.bf16.gmra.mrb[0].mxu0 %v384
  %v490 = vpop.f32.mrb[0].mxu0
  %v491 = vadd.f32 %v406, %v490
  %v492 = vpop.f32.mrb[0].mxu0
  %v493 = vpop.f32.mrb[0].mxu0
  %v494 = vpop.f32.mrb[0].mxu0
  %495 = vdwg.mxu0
  %496 = vst [vmem:[%s6] sm:$0xff] %v491
  // Predicated region
  $region26: #{lstm_atten_emb_forward.5} parent=0 // pred_check
    _
  $region27: #{lstm_atten_emb_forward.5} parent=0 // pred_check_branch
    %498 = sbr.rel (0) target = $region29
  $region28: #{lstm_atten_emb_forward.5} parent=0 // pred_region
    _
  $region29: #{lstm_atten_emb_forward.5} parent=0 // pred_fallthru
    _
  // Predicated region
  $region30: #{lstm_atten_emb_forward.5} parent=0 // pred_check
    _
  $region31: #{lstm_atten_emb_forward.5} parent=0 // pred_check_branch
    %500 = sbr.rel (0) target = $region33
  $region32: #{lstm_atten_emb_forward.5} parent=0 // pred_region
    _
  $region33: #{lstm_atten_emb_forward.5} parent=0 // pred_fallthru
    _

// kernel: lstm_atten_emb_forward.3
$region0: #{lstm_atten_emb_forward.3}
  #allocation0 [shape = 'u32[]', space=smem, size = 0x4, offset = 0x4, fixed_abs, tag = 'smem constant byte address 0x4 - core index']
  #allocation1 [shape = 'u32[144,128]{1,0:T(1,128)}', space=vmem, size = 0x12000, scoped, tag = 'internal scratch']
  #allocation2 [shape = 'f32[4,8,512]{2,1,0:T(8,128)}', space=vmem, size = 0x10000, scoped, tag = 'scratch operand']
  #allocation3 [shape = 'f32[8,128]{1,0:T(8,128)}', space=vmem, size = 0x1000, scoped, tag = 'scratch operand']
  #allocation4 [shape = 'f32[8,128]{1,0:T(8,128)}', space=vmem, size = 0x1000, scoped, tag = 'scratch operand']
  %s0 = inlined_call_operand.vmem [shape: bf16[8,8,128], index: 0, kind: input, shape index: {}]
  %s1 = inlined_call_operand.hbm [shape: bf16[128,512], index: 1, kind: input, shape index: {}]
  %s2 = inlined_call_operand.hbm [shape: bf16[128,512], index: 2, kind: input, shape index: {}]
  %s3 = inlined_call_operand.vmem [shape: f32[1,512], index: 3, kind: input, shape index: {}]
  %s4 = inlined_call_operand.vmem [shape: bf16[8,8,128], index: 4, kind: output, shape index: {}]
  %s5 = sld [smem:[#allocation0]]
  $region61: #{lstm_atten_emb_forward.3} parent=0
    _
  %s7 = ssub.s32 1, %s5
  %s8 = scalar_select 0, %s7, %s5
  $region1: #{lstm_atten_emb_forward.3} parent=0
    #allocation5 [shape = 'u8[131072]{0}', space=vmem, size = 0x20000, scoped, tag = 'input window, operand 1, single buffered']
    #allocation6 [shape = 's32[2]{0}', space=sflag, size = 0x8, scoped, tag = 'scoped memory for lstm_atten_emb_forward.3']
    #allocation7 [shape = 'u8[131072]{0}', space=vmem, size = 0x20000, scoped, tag = 'input window, operand 2, single buffered']
    #allocation8 [shape = 's32[1]{0}', space=sflag, size = 0x4, scoped, tag = 'scoped memory for lstm_atten_emb_forward.3']
    %9 = vsyncpa [#allocation6], 0
    %10 = vsyncpa [#allocation8], 0
    loop: start=0, step=1, limit=4
    $region2: #{lstm_atten_emb_forward.3} parent=1 // loop_pre_header
      _
    $region3: #{lstm_atten_emb_forward.3} parent=1 // loop_header
      %s12 = sphi 0, %s16
      %p13 = scmp.ge.s32.totalorder %s12, 4
      %s19 = sphi 0, %s31
      %s20 = sphi 0, %s27
      %s21 = sphi 0, %s19
      %s22 = sphi 0, %s20
      %s23 = sphi 0, %s21
      %s24 = sphi 0, %s22
      %s36 = sphi 0, %s38
      %s39 = sphi 0, %s36
      %s40 = sphi 0, %s39
      %s56 = sphi 0, %s40
      %s60 = sphi 0, %s60
      %s62 = sphi 0, %s60
      %s63 = sphi 0, %s62
      %s77 = sphi 0, %s63
      %s81 = sphi 0, %s81
      %s83 = sphi 0, %s81
      %s84 = sphi 0, %s83
      %s98 = sphi 0, %s84
      %s102 = sphi 0, %s102
      %s104 = sphi 0, %s102
      %s105 = sphi 0, %s104
      %s119 = sphi 0, %s105
      %s127 = sphi 0, %s129
      %s130 = sphi 0, %s127
      %s131 = sphi 0, %s130
      %s147 = sphi 0, %s131
    $region4: #{lstm_atten_emb_forward.3} parent=1 // loop_header_branch
      %15 = sbr.rel (%p13) target = $region8
    $region5: #{lstm_atten_emb_forward.3} parent=1 // loop_body
      %s17 = ssub.s32 %s12, 1
      %s18 = ssub.s32 %s12, 2
      %s25 = sadd.s32 1, %s20
      %p26 = scmp.ge.s32.totalorder %s25, 2
      %s27 = scalar_select %p26, 0, %s25
      %s28 = sadd.s32 1, %s19
      %s29 = scalar_select %p26, %s28, %s19
      %p30 = scmp.ge.s32.totalorder %s29, 1
      %s31 = scalar_select %p30, 0, %s29
      %s32 = ssub.s32 %s20, %s27
      %s33 = ssub.s32 %s19, %s31
      %s34 = sor.u32 %s32, %s33
      %p35 = scmp.eq.s32.totalorder %s34, 0
      %s37 = sadd.s32 %s36, 1
      %s38 = scalar_select %p35, %s36, %s37
      %p41 = pneg %p35
      %p42 = scmp.eq.s32.totalorder %s12, 1
      %p43 = por %p41, %p42
      %p44 = scmp.ne.s32.totalorder %s36, %s39
      %p45 = scmp.eq.s32.totalorder %s12, 0
      %p46 = por %p44, %p45
      %p47 = scmp.ne.s32.totalorder %s36, %s39
      %p48 = scmp.eq.s32.totalorder %s17, 1
      %p49 = por %p47, %p48
      %p50 = scmp.ne.s32.totalorder %s39, %s40
      %p51 = scmp.eq.s32.totalorder %s17, 0
      %p52 = por %p50, %p51
      %p53 = scmp.ne.s32.totalorder %s39, %s40
      %p54 = scmp.eq.s32.totalorder %s18, 1
      %p55 = por %p53, %p54
      %p57 = scmp.ne.s32.totalorder %s40, %s56
      %p58 = scmp.eq.s32.totalorder %s18, 0
      %p59 = por %p57, %p58
      %s61 = sadd.s32 %s60, 1
      %p64 = scmp.eq.s32.totalorder %s12, 1
      %p65 = scmp.ne.s32.totalorder %s60, %s62
      %p66 = scmp.eq.s32.totalorder %s12, 0
      %p67 = por %p65, %p66
      %p68 = scmp.ne.s32.totalorder %s60, %s62
      %p69 = scmp.eq.s32.totalorder %s17, 1
      %p70 = por %p68, %p69
      %p71 = scmp.ne.s32.totalorder %s62, %s63
      %p72 = scmp.eq.s32.totalorder %s17, 0
      %p73 = por %p71, %p72
      %p74 = scmp.ne.s32.totalorder %s62, %s63
      %p75 = scmp.eq.s32.totalorder %s18, 1
      %p76 = por %p74, %p75
      %p78 = scmp.ne.s32.totalorder %s63, %s77
      %p79 = scmp.eq.s32.totalorder %s18, 0
      %p80 = por %p78, %p79
      %s82 = sadd.s32 %s81, 1
      %p85 = scmp.eq.s32.totalorder %s12, 1
      %p86 = scmp.ne.s32.totalorder %s81, %s83
      %p87 = scmp.eq.s32.totalorder %s12, 0
      %p88 = por %p86, %p87
      %p89 = scmp.ne.s32.totalorder %s81, %s83
      %p90 = scmp.eq.s32.totalorder %s17, 1
      %p91 = por %p89, %p90
      %p92 = scmp.ne.s32.totalorder %s83, %s84
      %p93 = scmp.eq.s32.totalorder %s17, 0
      %p94 = por %p92, %p93
      %p95 = scmp.ne.s32.totalorder %s83, %s84
      %p96 = scmp.eq.s32.totalorder %s18, 1
      %p97 = por %p95, %p96
      %p99 = scmp.ne.s32.totalorder %s84, %s98
      %p100 = scmp.eq.s32.totalorder %s18, 0
      %p101 = por %p99, %p100
      %s103 = sadd.s32 %s102, 1
      %p106 = scmp.eq.s32.totalorder %s12, 1
      %p107 = scmp.ne.s32.totalorder %s102, %s104
      %p108 = scmp.eq.s32.totalorder %s12, 0
      %p109 = por %p107, %p108
      %p110 = scmp.ne.s32.totalorder %s102, %s104
      %p111 = scmp.eq.s32.totalorder %s17, 1
      %p112 = por %p110, %p111
      %p113 = scmp.ne.s32.totalorder %s104, %s105
      %p114 = scmp.eq.s32.totalorder %s17, 0
      %p115 = por %p113, %p114
      %p116 = scmp.ne.s32.totalorder %s104, %s105
      %p117 = scmp.eq.s32.totalorder %s18, 1
      %p118 = por %p116, %p117
      %p120 = scmp.ne.s32.totalorder %s105, %s119
      %p121 = scmp.eq.s32.totalorder %s18, 0
      %p122 = por %p120, %p121
      %s123 = ssub.s32 %s20, %s27
      %s124 = ssub.s32 %s19, %s31
      %s125 = sor.u32 %s123, %s124
      %p126 = scmp.eq.s32.totalorder %s125, 0
      %s128 = sadd.s32 %s127, 1
      %s129 = scalar_select %p126, %s127, %s128
      %p132 = pneg %p126
      %p133 = scmp.eq.s32.totalorder %s12, 1
      %p134 = por %p132, %p133
      %p135 = scmp.ne.s32.totalorder %s127, %s130
      %p136 = scmp.eq.s32.totalorder %s12, 0
      %p137 = por %p135, %p136
      %p138 = scmp.ne.s32.totalorder %s127, %s130
      %p139 = scmp.eq.s32.totalorder %s17, 1
      %p140 = por %p138, %p139
      %p141 = scmp.ne.s32.totalorder %s130, %s131
      %p142 = scmp.eq.s32.totalorder %s17, 0
      %p143 = por %p141, %p142
      %p144 = scmp.ne.s32.totalorder %s130, %s131
      %p145 = scmp.eq.s32.totalorder %s18, 1
      %p146 = por %p144, %p145
      %p148 = scmp.ne.s32.totalorder %s131, %s147
      %p149 = scmp.eq.s32.totalorder %s18, 0
      %p150 = por %p148, %p149
      %p151 = scmp.le.s32.totalorder 1, %s12
      %p152 = scmp.lt.s32.totalorder %s12, 3
      %p153 = pnand %p151, %p152
      %p154 = pneg %p153
      // Predicated region
      $region9: #{lstm_atten_emb_forward.3} parent=5 // pred_check
        _
      $region10: #{lstm_atten_emb_forward.3} parent=5 // pred_check_branch
        %156 = sbr.rel (%p153) target = $region12
      $region11: #{lstm_atten_emb_forward.3} parent=5 // pred_region
        %s157 = ssub.s32 %s12, 1
        // Predicated region
        $region13: #{lstm_atten_emb_forward.3} parent=11 // pred_check
          %p158 = pneg %p73
        $region14: #{lstm_atten_emb_forward.3} parent=11 // pred_check_branch
          %160 = sbr.rel (%p158) target = $region16
        $region15: #{lstm_atten_emb_forward.3} parent=11 // pred_region
          %s162 = ssub.s32 4096, 4096
          %163 = vsyncadd [#allocation6], %s162
          %s164 = sshll.u32 [#allocation5], 4
          %s165 = int_to_ptr.vmem [resolvable:$true] %s164
          %170 = dma.hbm_to_vmem [thread:$0]  %s1, 4096, %s165, [#allocation6], 256, 256, 16
        $region16: #{lstm_atten_emb_forward.3} parent=11 // pred_fallthru
          _
        // Predicated region
        $region17: #{lstm_atten_emb_forward.3} parent=11 // pred_check
          %p171 = pneg %p94
        $region18: #{lstm_atten_emb_forward.3} parent=11 // pred_check_branch
          %173 = sbr.rel (%p171) target = $region20
        $region19: #{lstm_atten_emb_forward.3} parent=11 // pred_region
          %s175 = ssub.s32 4096, 4096
          %176 = vsyncadd [#allocation8], %s175
          %s177 = sshll.u32 [#allocation7], 4
          %s178 = int_to_ptr.vmem [resolvable:$true] %s177
          %183 = dma.hbm_to_vmem [thread:$0]  %s2, 4096, %s178, [#allocation8], 256, 256, 16
        $region20: #{lstm_atten_emb_forward.3} parent=11 // pred_fallthru
          _
        // Predicated region
        $region21: #{lstm_atten_emb_forward.3} parent=11 // pred_check
          %p184 = pneg %p115
        $region22: #{lstm_atten_emb_forward.3} parent=11 // pred_check_branch
          %186 = sbr.rel (%p184) target = $region24
        $region23: #{lstm_atten_emb_forward.3} parent=11 // pred_region
          _
        $region24: #{lstm_atten_emb_forward.3} parent=11 // pred_fallthru
          _
      $region12: #{lstm_atten_emb_forward.3} parent=5 // pred_fallthru
        _
      %p187 = scmp.lt.s32.totalorder %s12, 2
      // Predicated region
      $region25: #{lstm_atten_emb_forward.3} parent=5 // pred_check
        %p188 = pneg %p187
      $region26: #{lstm_atten_emb_forward.3} parent=5 // pred_check_branch
        %190 = sbr.rel (%p188) target = $region28
      $region27: #{lstm_atten_emb_forward.3} parent=5 // pred_region
        // Predicated region
        $region29: #{lstm_atten_emb_forward.3} parent=27 // pred_check
          %p191 = pneg %p46
        $region30: #{lstm_atten_emb_forward.3} parent=27 // pred_check_branch
          %193 = sbr.rel (%p191) target = $region32
        $region31: #{lstm_atten_emb_forward.3} parent=27 // pred_region
          %s194 = smul.u32 4, %s20
          %p195 = scmp.lt.s32.totalorder %s194, 7
          %s196 = scalar_select %p195, %s194, 7
          %p197 = scmp.lt.s32.totalorder %s19, 0
          %s198 = scalar_select %p197, %s19, 0
          %s199 = sadd.s32 %s198, %s196
          %s200 = smul.addr %s199, 4
          %s201 = scalar_lea.vmem %s0, %s200
          %s202 = smul.u32 4, %s20
        $region32: #{lstm_atten_emb_forward.3} parent=27 // pred_fallthru
          _
      $region28: #{lstm_atten_emb_forward.3} parent=5 // pred_fallthru
        _
      %p203 = scmp.le.s32.totalorder 1, %s12
      %p204 = scmp.lt.s32.totalorder %s12, 3
      %p205 = pnand %p203, %p204
      %p206 = pneg %p205
      // Predicated region
      $region33: #{lstm_atten_emb_forward.3} parent=5 // pred_check
        _
      $region34: #{lstm_atten_emb_forward.3} parent=5 // pred_check_branch
        %208 = sbr.rel (%p205) target = $region36
      $region35: #{lstm_atten_emb_forward.3} parent=5 // pred_region
        %s209 = ssub.s32 %s12, 1
        // Predicated region
        $region37: #{lstm_atten_emb_forward.3} parent=35 // pred_check
          %p210 = pneg %p73
        $region38: #{lstm_atten_emb_forward.3} parent=35 // pred_check_branch
          %212 = sbr.rel (%p210) target = $region40
        $region39: #{lstm_atten_emb_forward.3} parent=35 // pred_region
          %213 = dma.done [#allocation6], 4096
        $region40: #{lstm_atten_emb_forward.3} parent=35 // pred_fallthru
          _
        // Predicated region
        $region41: #{lstm_atten_emb_forward.3} parent=35 // pred_check
          %p214 = pneg %p94
        $region42: #{lstm_atten_emb_forward.3} parent=35 // pred_check_branch
          %216 = sbr.rel (%p214) target = $region44
        $region43: #{lstm_atten_emb_forward.3} parent=35 // pred_region
          %217 = dma.done [#allocation8], 4096
        $region44: #{lstm_atten_emb_forward.3} parent=35 // pred_fallthru
          _
        %s218 = smul.u32 4, %s22
        %p219 = scmp.lt.s32.totalorder %s218, 7
        %s220 = scalar_select %p219, %s218, 7
        %p221 = scmp.lt.s32.totalorder %s21, 0
        %s222 = scalar_select %p221, %s21, 0
        %s223 = sadd.s32 %s222, %s220
        %s224 = smul.addr %s223, 4
        %s225 = scalar_lea.vmem %s0, %s224
        %p226 = pneg %p52
        %p227 = pneg %p49
        %p228 = pneg %p73
        %p229 = pneg %p70
        %p230 = pneg %p94
        %p231 = pneg %p91
        %p232 = pneg %p115
        %p233 = pneg %p112
        %p234 = pneg %p143
        %p235 = pneg %p140
        %s236 = smul.u32 4, %s22
        %p237 = scmp.lt.s32.totalorder %s236, 7
        %s238 = scalar_select %p237, %s236, 7
        %p239 = scmp.lt.s32.totalorder %s21, 0
        %s240 = scalar_select %p239, %s21, 0
        %s241 = sadd.s32 %s240, %s238
        %s242 = smul.addr %s241, 4
        %s243 = scalar_lea.vmem %s4, %s242
        %s244 = smul.u32 4, %s22
        %p245 = scmp.lt.s32.totalorder %s244, 7
        %s246 = scalar_select %p245, %s244, 7
        %p247 = scmp.lt.s32.totalorder %s21, 0
        %s248 = scalar_select %p247, %s21, 0
        %s249 = sadd.s32 %s248, %s246
        %s250 = smul.addr %s249, 4
        %s251 = scalar_lea.vmem %s0, %s250
        %s252 = smul.u32 4, %s22
        %s253 = smul.u32 4, %s22
        %p254 = scmp.lt.s32.totalorder %s253, 7
        %s255 = scalar_select %p254, %s253, 7
        %p256 = scmp.lt.s32.totalorder %s21, 0
        %s257 = scalar_select %p256, %s21, 0
        %s258 = sadd.s32 %s257, %s255
        %s259 = smul.addr %s258, 4
        %s260 = scalar_lea.vmem %s4, %s259
        %s261 = smul.u32 4, %s22
        %p263 = scmp.eq.s32.totalorder %s22, 0
        // Predicated region
        $region45: #{lstm_atten_emb_forward.3} parent=35 // pred_check
          %p264 = pneg %p263
        $region46: #{lstm_atten_emb_forward.3} parent=35 // pred_check_branch
          %266 = sbr.rel (%p264) target = $region48
        $region47: #{lstm_atten_emb_forward.3} parent=35 // pred_region
          %267 = vst [vmem:[#allocation3] sm:$0xff] 0.0
          %268 = vst [vmem:[#allocation4] sm:$0xff] 0.0
        $region48: #{lstm_atten_emb_forward.3} parent=35 // pred_fallthru
          _
        %v269 = vld [vmem:[%s251] sm:$0xf]
        %v270 = vld [vmem:[%s251 + $0x4] sm:$0xf]
        %v271 = vld [vmem:[%s251 + $0x8] sm:$0xf]
        %v272 = vld [vmem:[%s251 + $0xc] sm:$0xf]
        %v273 = vld [vmem:[#allocation5] sm:$0xff]
        %v274 = vld [vmem:[#allocation5 + $0x8] sm:$0xff]
        %v275 = vld [vmem:[#allocation5 + $0x10] sm:$0xff]
        %v276 = vld [vmem:[#allocation5 + $0x18] sm:$0xff]
        %v277 = vld [vmem:[#allocation5 + $0x20] sm:$0xff]
        %v278 = vld [vmem:[#allocation5 + $0x28] sm:$0xff]
        %v279 = vld [vmem:[#allocation5 + $0x30] sm:$0xff]
        %v280 = vld [vmem:[#allocation5 + $0x38] sm:$0xff]
        %v281 = vld [vmem:[#allocation5 + $0x40] sm:$0xff]
        %v282 = vld [vmem:[#allocation5 + $0x48] sm:$0xff]
        %v283 = vld [vmem:[#allocation5 + $0x50] sm:$0xff]
        %v284 = vld [vmem:[#allocation5 + $0x58] sm:$0xff]
        %v285 = vld [vmem:[#allocation5 + $0x60] sm:$0xff]
        %v286 = vld [vmem:[#allocation5 + $0x68] sm:$0xff]
        %v287 = vld [vmem:[#allocation5 + $0x70] sm:$0xff]
        %v288 = vld [vmem:[#allocation5 + $0x78] sm:$0xff]
        %v289 = vld [vmem:[#allocation5 + $0x80] sm:$0xff]
        %v290 = vld [vmem:[#allocation5 + $0x88] sm:$0xff]
        %v291 = vld [vmem:[#allocation5 + $0x90] sm:$0xff]
        %v292 = vld [vmem:[#allocation5 + $0x98] sm:$0xff]
        %v293 = vld [vmem:[#allocation5 + $0xa0] sm:$0xff]
        %v294 = vld [vmem:[#allocation5 + $0xa8] sm:$0xff]
        %v295 = vld [vmem:[#allocation5 + $0xb0] sm:$0xff]
        %v296 = vld [vmem:[#allocation5 + $0xb8] sm:$0xff]
        %v297 = vld [vmem:[#allocation5 + $0xc0] sm:$0xff]
        %v298 = vld [vmem:[#allocation5 + $0xc8] sm:$0xff]
        %v299 = vld [vmem:[#allocation5 + $0xd0] sm:$0xff]
        %v300 = vld [vmem:[#allocation5 + $0xd8] sm:$0xff]
        %v301 = vld [vmem:[#allocation5 + $0xe0] sm:$0xff]
        %v302 = vld [vmem:[#allocation5 + $0xe8] sm:$0xff]
        %v303 = vld [vmem:[#allocation5 + $0xf0] sm:$0xff]
        %v304 = vld [vmem:[#allocation5 + $0xf8] sm:$0xff]
        %v305 = vld [vmem:[%s3] sm:$0xf]
        %v307 = vlaneseq
        %v308 = vshrl.u32 %v307, 7
        %v309 = vsub.s32 0, %v308
        %v310 = vrot.slane %v305, %v309
        %v311 = vlaneseq
        %v312 = vshrl.u32 %v311, 7
        %v313 = vsub.s32 1, %v312
        %v314 = vrot.slane %v305, %v313
        %v315 = vlaneseq
        %v316 = vshrl.u32 %v315, 7
        %v317 = vsub.s32 2, %v316
        %v318 = vrot.slane %v305, %v317
        %v319 = vlaneseq
        %v320 = vshrl.u32 %v319, 7
        %v321 = vsub.s32 3, %v320
        %v322 = vrot.slane %v305, %v321
        %v331 = vunpack.c.l.b16 %v269
        %v332 = vunpack.c.l.b16 %v270
        %v333 = vunpack.c.l.b16 %v271
        %v334 = vunpack.c.l.b16 %v272
        %v335 = vpack.c.b16 %v332, %v331
        %v336 = vpack.c.b16 %v334, %v333
        %v371 = vunpack.c.l.b16 %v273
        %v372 = vunpack.c.h.b16 %v273
        %v373 = vunpack.c.l.b16 %v274
        %v374 = vunpack.c.h.b16 %v274
        %v375 = vunpack.c.l.b16 %v275
        %v376 = vunpack.c.h.b16 %v275
        %v377 = vunpack.c.l.b16 %v276
        %v378 = vunpack.c.h.b16 %v276
        %v379 = vunpack.c.l.b16 %v277
        %v380 = vunpack.c.h.b16 %v277
        %v381 = vunpack.c.l.b16 %v278
        %v382 = vunpack.c.h.b16 %v278
        %v383 = vunpack.c.l.b16 %v279
        %v384 = vunpack.c.h.b16 %v279
        %v385 = vunpack.c.l.b16 %v280
        %v386 = vunpack.c.h.b16 %v280
        %v387 = vunpack.c.l.b16 %v281
        %v388 = vunpack.c.h.b16 %v281
        %v389 = vunpack.c.l.b16 %v282
        %v390 = vunpack.c.h.b16 %v282
        %v391 = vunpack.c.l.b16 %v283
        %v392 = vunpack.c.h.b16 %v283
        %v393 = vunpack.c.l.b16 %v284
        %v394 = vunpack.c.h.b16 %v284
        %v395 = vunpack.c.l.b16 %v285
        %v396 = vunpack.c.h.b16 %v285
        %v397 = vunpack.c.l.b16 %v286
        %v398 = vunpack.c.h.b16 %v286
        %v399 = vunpack.c.l.b16 %v287
        %v400 = vunpack.c.h.b16 %v287
        %v401 = vunpack.c.l.b16 %v288
        %v402 = vunpack.c.h.b16 %v288
        %v403 = vunpack.c.l.b16 %v289
        %v404 = vunpack.c.h.b16 %v289
        %v405 = vunpack.c.l.b16 %v290
        %v406 = vunpack.c.h.b16 %v290
        %v407 = vunpack.c.l.b16 %v291
        %v408 = vunpack.c.h.b16 %v291
        %v409 = vunpack.c.l.b16 %v292
        %v410 = vunpack.c.h.b16 %v292
        %v411 = vunpack.c.l.b16 %v293
        %v412 = vunpack.c.h.b16 %v293
        %v413 = vunpack.c.l.b16 %v294
        %v414 = vunpack.c.h.b16 %v294
        %v415 = vunpack.c.l.b16 %v295
        %v416 = vunpack.c.h.b16 %v295
        %v417 = vunpack.c.l.b16 %v296
        %v418 = vunpack.c.h.b16 %v296
        %v419 = vunpack.c.l.b16 %v297
        %v420 = vunpack.c.h.b16 %v297
        %v421 = vunpack.c.l.b16 %v298
        %v422 = vunpack.c.h.b16 %v298
        %v423 = vunpack.c.l.b16 %v299
        %v424 = vunpack.c.h.b16 %v299
        %v425 = vunpack.c.l.b16 %v300
        %v426 = vunpack.c.h.b16 %v300
        %v427 = vunpack.c.l.b16 %v301
        %v428 = vunpack.c.h.b16 %v301
        %v429 = vunpack.c.l.b16 %v302
        %v430 = vunpack.c.h.b16 %v302
        %v431 = vunpack.c.l.b16 %v303
        %v432 = vunpack.c.h.b16 %v303
        %v433 = vunpack.c.l.b16 %v304
        %v434 = vunpack.c.h.b16 %v304
        %v435 = vpack.c.b16 %v375, %v371
        %v436 = vpack.c.b16 %v376, %v372
        %v437 = vpack.c.b16 %v377, %v373
        %v438 = vpack.c.b16 %v378, %v374
        %v439 = vpack.c.b16 %v383, %v379
        %v440 = vpack.c.b16 %v384, %v380
        %v441 = vpack.c.b16 %v385, %v381
        %v442 = vpack.c.b16 %v386, %v382
        %v443 = vpack.c.b16 %v391, %v387
        %v444 = vpack.c.b16 %v392, %v388
        %v445 = vpack.c.b16 %v393, %v389
        %v446 = vpack.c.b16 %v394, %v390
        %v447 = vpack.c.b16 %v399, %v395
        %v448 = vpack.c.b16 %v400, %v396
        %v449 = vpack.c.b16 %v401, %v397
        %v450 = vpack.c.b16 %v402, %v398
        %v451 = vpack.c.b16 %v407, %v403
        %v452 = vpack.c.b16 %v408, %v404
        %v453 = vpack.c.b16 %v409, %v405
        %v454 = vpack.c.b16 %v410, %v406
        %v455 = vpack.c.b16 %v415, %v411
        %v456 = vpack.c.b16 %v416, %v412
        %v457 = vpack.c.b16 %v417, %v413
        %v458 = vpack.c.b16 %v418, %v414
        %v459 = vpack.c.b16 %v423, %v419
        %v460 = vpack.c.b16 %v424, %v420
        %v461 = vpack.c.b16 %v425, %v421
        %v462 = vpack.c.b16 %v426, %v422
        %v463 = vpack.c.b16 %v431, %v427
        %v464 = vpack.c.b16 %v432, %v428
        %v465 = vpack.c.b16 %v433, %v429
        %v466 = vpack.c.b16 %v434, %v430
        %499 = vmatprep.subr.bf16.mxu0 %v436
        %500 = vmatpush1.bf16.msra.mxu0 %v435
        %501 = vmatprep.subr.bf16.mxu0 %v440
        %502 = vmatpush1.bf16.msra.mxu0 %v439
        %503 = vmatprep.subr.bf16.mxu0 %v444
        %504 = vmatpush1.bf16.msra.mxu0 %v443
        %505 = vmatprep.subr.bf16.mxu0 %v448
        %506 = vmatpush1.bf16.msra.mxu0 %v447
        %507 = vmatprep.subr.bf16.mxu0 %v452
        %508 = vmatpush1.bf16.msra.mxu0 %v451
        %509 = vmatprep.subr.bf16.mxu0 %v456
        %510 = vmatpush1.bf16.msra.mxu0 %v455
        %511 = vmatprep.subr.bf16.mxu0 %v460
        %512 = vmatpush1.bf16.msra.mxu0 %v459
        %513 = vmatprep.subr.bf16.mxu0 %v464
        %514 = vmatpush1.bf16.msra.mxu0 %v463
        %515 = vmatprep.subr.bf16.mxu0 0
        %516 = vmatpush1.bf16.msra.mxu0 0
        %517 = vmatprep.subr.bf16.mxu0 0
        %518 = vmatpush1.bf16.msra.mxu0 0
        %519 = vmatprep.subr.bf16.mxu0 0
        %520 = vmatpush1.bf16.msra.mxu0 0
        %521 = vmatprep.subr.bf16.mxu0 0
        %522 = vmatpush1.bf16.msra.mxu0 0
        %523 = vmatprep.subr.bf16.mxu0 0
        %524 = vmatpush1.bf16.msra.mxu0 0
        %525 = vmatprep.subr.bf16.mxu0 0
        %526 = vmatpush1.bf16.msra.mxu0 0
        %527 = vmatprep.subr.bf16.mxu0 0
        %528 = vmatpush1.bf16.msra.mxu0 0
        %529 = vmatprep.subr.bf16.mxu0 0
        %530 = vmatpush1.bf16.msra.mxu0 0
        %531 = vmatprep.mubr.bf16.mxu0 0
        %532 = vmatmul.mubr.bf16.gmra.mrb[0].mxu0 %v335
        %v533 = vpop.f32.mrb[0].mxu0
        %v534 = vadd.f32 %v310, %v533
        %v535 = vpop.f32.mrb[0].mxu0
        %v536 = vadd.f32 %v314, %v535
        %v537 = vpop.f32.mrb[0].mxu0
        %v538 = vadd.f32 %v310, %v537
        %v539 = vpop.f32.mrb[0].mxu0
        %v540 = vadd.f32 %v314, %v539
        %541 = vmatprep.mubr.bf16.mxu0 0
        %542 = vmatmul.mubr.bf16.gmra.mrb[0].mxu0 %v336
        %v543 = vpop.f32.mrb[0].mxu0
        %v544 = vadd.f32 %v310, %v543
        %v545 = vpop.f32.mrb[0].mxu0
        %v546 = vadd.f32 %v314, %v545
        %v547 = vpop.f32.mrb[0].mxu0
        %v548 = vadd.f32 %v310, %v547
        %v549 = vpop.f32.mrb[0].mxu0
        %v550 = vadd.f32 %v314, %v549
        %551 = vdwg.mxu0
        %552 = vmatprep.subr.bf16.mxu0 %v438
        %553 = vmatpush1.bf16.msra.mxu0 %v437
        %554 = vmatprep.subr.bf16.mxu0 %v442
        %555 = vmatpush1.bf16.msra.mxu0 %v441
        %556 = vmatprep.subr.bf16.mxu0 %v446
        %557 = vmatpush1.bf16.msra.mxu0 %v445
        %558 = vmatprep.subr.bf16.mxu0 %v450
        %559 = vmatpush1.bf16.msra.mxu0 %v449
        %560 = vmatprep.subr.bf16.mxu0 %v454
        %561 = vmatpush1.bf16.msra.mxu0 %v453
        %562 = vmatprep.subr.bf16.mxu0 %v458
        %563 = vmatpush1.bf16.msra.mxu0 %v457
        %564 = vmatprep.subr.bf16.mxu0 %v462
        %565 = vmatpush1.bf16.msra.mxu0 %v461
        %566 = vmatprep.subr.bf16.mxu0 %v466
        %567 = vmatpush1.bf16.msra.mxu0 %v465
        %568 = vmatprep.subr.bf16.mxu0 0
        %569 = vmatpush1.bf16.msra.mxu0 0
        %570 = vmatprep.subr.bf16.mxu0 0
        %571 = vmatpush1.bf16.msra.mxu0 0
        %572 = vmatprep.subr.bf16.mxu0 0
        %573 = vmatpush1.bf16.msra.mxu0 0
        %574 = vmatprep.subr.bf16.mxu0 0
        %575 = vmatpush1.bf16.msra.mxu0 0
        %576 = vmatprep.subr.bf16.mxu0 0
        %577 = vmatpush1.bf16.msra.mxu0 0
        %578 = vmatprep.subr.bf16.mxu0 0
        %579 = vmatpush1.bf16.msra.mxu0 0
        %580 = vmatprep.subr.bf16.mxu0 0
        %581 = vmatpush1.bf16.msra.mxu0 0
        %582 = vmatprep.subr.bf16.mxu0 0
        %583 = vmatpush1.bf16.msra.mxu0 0
        %584 = vmatprep.mubr.bf16.mxu0 0
        %585 = vmatmul.mubr.bf16.gmra.mrb[0].mxu0 %v335
        %v586 = vpop.f32.mrb[0].mxu0
        %v587 = vadd.f32 %v318, %v586
        %v588 = vpop.f32.mrb[0].mxu0
        %v589 = vadd.f32 %v322, %v588
        %v590 = vpop.f32.mrb[0].mxu0
        %v591 = vadd.f32 %v318, %v590
        %v592 = vpop.f32.mrb[0].mxu0
        %v593 = vadd.f32 %v322, %v592
        %594 = vmatprep.mubr.bf16.mxu0 0
        %595 = vmatmul.mubr.bf16.gmra.mrb[0].mxu0 %v336
        %v596 = vpop.f32.mrb[0].mxu0
        %v597 = vadd.f32 %v318, %v596
        %v598 = vpop.f32.mrb[0].mxu0
        %v599 = vadd.f32 %v322, %v598
        %v600 = vpop.f32.mrb[0].mxu0
        %v601 = vadd.f32 %v318, %v600
        %v602 = vpop.f32.mrb[0].mxu0
        %v603 = vadd.f32 %v322, %v602
        %604 = vdwg.mxu0
        %605 = vst [vmem:[#allocation2] sm:$0xff] %v534
        %606 = vst [vmem:[#allocation2 + $0x8] sm:$0xff] %v536
        %607 = vst [vmem:[#allocation2 + $0x10] sm:$0xff] %v587
        %608 = vst [vmem:[#allocation2 + $0x18] sm:$0xff] %v589
        %609 = vst [vmem:[#allocation2 + $0x20] sm:$0xff] %v538
        %610 = vst [vmem:[#allocation2 + $0x28] sm:$0xff] %v540
        %611 = vst [vmem:[#allocation2 + $0x30] sm:$0xff] %v591
        %612 = vst [vmem:[#allocation2 + $0x38] sm:$0xff] %v593
        %613 = vst [vmem:[#allocation2 + $0x40] sm:$0xff] %v544
        %614 = vst [vmem:[#allocation2 + $0x48] sm:$0xff] %v546
        %615 = vst [vmem:[#allocation2 + $0x50] sm:$0xff] %v597
        %616 = vst [vmem:[#allocation2 + $0x58] sm:$0xff] %v599
        %617 = vst [vmem:[#allocation2 + $0x60] sm:$0xff] %v548
        %618 = vst [vmem:[#allocation2 + $0x68] sm:$0xff] %v550
        %619 = vst [vmem:[#allocation2 + $0x70] sm:$0xff] %v601
        %620 = vst [vmem:[#allocation2 + $0x78] sm:$0xff] %v603
        %v621 = vld [vmem:[#allocation7] sm:$0xff]
        %v622 = vld [vmem:[#allocation7 + $0x8] sm:$0xff]
        %v623 = vld [vmem:[#allocation7 + $0x10] sm:$0xff]
        %v624 = vld [vmem:[#allocation7 + $0x18] sm:$0xff]
        %v625 = vld [vmem:[#allocation7 + $0x20] sm:$0xff]
        %v626 = vld [vmem:[#allocation7 + $0x28] sm:$0xff]
        %v627 = vld [vmem:[#allocation7 + $0x30] sm:$0xff]
        %v628 = vld [vmem:[#allocation7 + $0x38] sm:$0xff]
        %v629 = vld [vmem:[#allocation7 + $0x40] sm:$0xff]
        %v630 = vld [vmem:[#allocation7 + $0x48] sm:$0xff]
        %v631 = vld [vmem:[#allocation7 + $0x50] sm:$0xff]
        %v632 = vld [vmem:[#allocation7 + $0x58] sm:$0xff]
        %v633 = vld [vmem:[#allocation7 + $0x60] sm:$0xff]
        %v634 = vld [vmem:[#allocation7 + $0x68] sm:$0xff]
        %v635 = vld [vmem:[#allocation7 + $0x70] sm:$0xff]
        %v636 = vld [vmem:[#allocation7 + $0x78] sm:$0xff]
        %v637 = vld [vmem:[#allocation7 + $0x80] sm:$0xff]
        %v638 = vld [vmem:[#allocation7 + $0x88] sm:$0xff]
        %v639 = vld [vmem:[#allocation7 + $0x90] sm:$0xff]
        %v640 = vld [vmem:[#allocation7 + $0x98] sm:$0xff]
        %v641 = vld [vmem:[#allocation7 + $0xa0] sm:$0xff]
        %v642 = vld [vmem:[#allocation7 + $0xa8] sm:$0xff]
        %v643 = vld [vmem:[#allocation7 + $0xb0] sm:$0xff]
        %v644 = vld [vmem:[#allocation7 + $0xb8] sm:$0xff]
        %v645 = vld [vmem:[#allocation7 + $0xc0] sm:$0xff]
        %v646 = vld [vmem:[#allocation7 + $0xc8] sm:$0xff]
        %v647 = vld [vmem:[#allocation7 + $0xd0] sm:$0xff]
        %v648 = vld [vmem:[#allocation7 + $0xd8] sm:$0xff]
        %v649 = vld [vmem:[#allocation7 + $0xe0] sm:$0xff]
        %v650 = vld [vmem:[#allocation7 + $0xe8] sm:$0xff]
        %v651 = vld [vmem:[#allocation7 + $0xf0] sm:$0xff]
        %v652 = vld [vmem:[#allocation7 + $0xf8] sm:$0xff]
        %v653 = vld [vmem:[#allocation3] sm:$0xff]
        %v654 = vld [vmem:[#allocation4] sm:$0xff]
        %v655 = vld [vmem:[#allocation2] sm:$0xff]
        %v656 = vld [vmem:[#allocation2 + $0x8] sm:$0xff]
        %v657 = vld [vmem:[#allocation2 + $0x10] sm:$0xff]
        %v658 = vld [vmem:[#allocation2 + $0x18] sm:$0xff]
        %v659 = vpack.c.bf16 %v653, %v653
        %v692 = vunpack.c.l.b16 %v621
        %v693 = vunpack.c.h.b16 %v621
        %v694 = vunpack.c.l.b16 %v622
        %v695 = vunpack.c.h.b16 %v622
        %v696 = vunpack.c.l.b16 %v623
        %v697 = vunpack.c.h.b16 %v623
        %v698 = vunpack.c.l.b16 %v624
        %v699 = vunpack.c.h.b16 %v624
        %v700 = vunpack.c.l.b16 %v625
        %v701 = vunpack.c.h.b16 %v625
        %v702 = vunpack.c.l.b16 %v626
        %v703 = vunpack.c.h.b16 %v626
        %v704 = vunpack.c.l.b16 %v627
        %v705 = vunpack.c.h.b16 %v627
        %v706 = vunpack.c.l.b16 %v628
        %v707 = vunpack.c.h.b16 %v628
        %v708 = vunpack.c.l.b16 %v629
        %v709 = vunpack.c.h.b16 %v629
        %v710 = vunpack.c.l.b16 %v630
        %v711 = vunpack.c.h.b16 %v630
        %v712 = vunpack.c.l.b16 %v631
        %v713 = vunpack.c.h.b16 %v631
        %v714 = vunpack.c.l.b16 %v632
        %v715 = vunpack.c.h.b16 %v632
        %v716 = vunpack.c.l.b16 %v633
        %v717 = vunpack.c.h.b16 %v633
        %v718 = vunpack.c.l.b16 %v634
        %v719 = vunpack.c.h.b16 %v634
        %v720 = vunpack.c.l.b16 %v635
        %v721 = vunpack.c.h.b16 %v635
        %v722 = vunpack.c.l.b16 %v636
        %v723 = vunpack.c.h.b16 %v636
        %v724 = vunpack.c.l.b16 %v637
        %v725 = vunpack.c.h.b16 %v637
        %v726 = vunpack.c.l.b16 %v638
        %v727 = vunpack.c.h.b16 %v638
        %v728 = vunpack.c.l.b16 %v639
        %v729 = vunpack.c.h.b16 %v639
        %v730 = vunpack.c.l.b16 %v640
        %v731 = vunpack.c.h.b16 %v640
        %v732 = vunpack.c.l.b16 %v641
        %v733 = vunpack.c.h.b16 %v641
        %v734 = vunpack.c.l.b16 %v642
        %v735 = vunpack.c.h.b16 %v642
        %v736 = vunpack.c.l.b16 %v643
        %v737 = vunpack.c.h.b16 %v643
        %v738 = vunpack.c.l.b16 %v644
        %v739 = vunpack.c.h.b16 %v644
        %v740 = vunpack.c.l.b16 %v645
        %v741 = vunpack.c.h.b16 %v645
        %v742 = vunpack.c.l.b16 %v646
        %v743 = vunpack.c.h.b16 %v646
        %v744 = vunpack.c.l.b16 %v647
        %v745 = vunpack.c.h.b16 %v647
        %v746 = vunpack.c.l.b16 %v648
        %v747 = vunpack.c.h.b16 %v648
        %v748 = vunpack.c.l.b16 %v649
        %v749 = vunpack.c.h.b16 %v649
        %v750 = vunpack.c.l.b16 %v650
        %v751 = vunpack.c.h.b16 %v650
        %v752 = vunpack.c.l.b16 %v651
        %v753 = vunpack.c.h.b16 %v651
        %v754 = vunpack.c.l.b16 %v652
        %v755 = vunpack.c.h.b16 %v652
        %v756 = vpack.c.b16 %v696, %v692
        %v757 = vpack.c.b16 %v697, %v693
        %v758 = vpack.c.b16 %v698, %v694
        %v759 = vpack.c.b16 %v699, %v695
        %v760 = vpack.c.b16 %v704, %v700
        %v761 = vpack.c.b16 %v705, %v701
        %v762 = vpack.c.b16 %v706, %v702
        %v763 = vpack.c.b16 %v707, %v703
        %v764 = vpack.c.b16 %v712, %v708
        %v765 = vpack.c.b16 %v713, %v709
        %v766 = vpack.c.b16 %v714, %v710
        %v767 = vpack.c.b16 %v715, %v711
        %v768 = vpack.c.b16 %v720, %v716
        %v769 = vpack.c.b16 %v721, %v717
        %v770 = vpack.c.b16 %v722, %v718
        %v771 = vpack.c.b16 %v723, %v719
        %v772 = vpack.c.b16 %v728, %v724
        %v773 = vpack.c.b16 %v729, %v725
        %v774 = vpack.c.b16 %v730, %v726
        %v775 = vpack.c.b16 %v731, %v727
        %v776 = vpack.c.b16 %v736, %v732
        %v777 = vpack.c.b16 %v737, %v733
        %v778 = vpack.c.b16 %v738, %v734
        %v779 = vpack.c.b16 %v739, %v735
        %v780 = vpack.c.b16 %v744, %v740
        %v781 = vpack.c.b16 %v745, %v741
        %v782 = vpack.c.b16 %v746, %v742
        %v783 = vpack.c.b16 %v747, %v743
        %v784 = vpack.c.b16 %v752, %v748
        %v785 = vpack.c.b16 %v753, %v749
        %v786 = vpack.c.b16 %v754, %v750
        %v787 = vpack.c.b16 %v755, %v751
        %820 = vmatprep.subr.bf16.mxu0 %v757
        %821 = vmatpush1.bf16.msra.mxu0 %v756
        %822 = vmatprep.subr.bf16.mxu0 %v761
        %823 = vmatpush1.bf16.msra.mxu0 %v760
        %824 = vmatprep.subr.bf16.mxu0 %v765
        %825 = vmatpush1.bf16.msra.mxu0 %v764
        %826 = vmatprep.subr.bf16.mxu0 %v769
        %827 = vmatpush1.bf16.msra.mxu0 %v768
        %828 = vmatprep.subr.bf16.mxu0 %v773
        %829 = vmatpush1.bf16.msra.mxu0 %v772
        %830 = vmatprep.subr.bf16.mxu0 %v777
        %831 = vmatpush1.bf16.msra.mxu0 %v776
        %832 = vmatprep.subr.bf16.mxu0 %v781
        %833 = vmatpush1.bf16.msra.mxu0 %v780
        %834 = vmatprep.subr.bf16.mxu0 %v785
        %835 = vmatpush1.bf16.msra.mxu0 %v784
        %836 = vmatprep.subr.bf16.mxu0 0
        %837 = vmatpush1.bf16.msra.mxu0 0
        %838 = vmatprep.subr.bf16.mxu0 0
        %839 = vmatpush1.bf16.msra.mxu0 0
        %840 = vmatprep.subr.bf16.mxu0 0
        %841 = vmatpush1.bf16.msra.mxu0 0
        %842 = vmatprep.subr.bf16.mxu0 0
        %843 = vmatpush1.bf16.msra.mxu0 0
        %844 = vmatprep.subr.bf16.mxu0 0
        %845 = vmatpush1.bf16.msra.mxu0 0
        %846 = vmatprep.subr.bf16.mxu0 0
        %847 = vmatpush1.bf16.msra.mxu0 0
        %848 = vmatprep.subr.bf16.mxu0 0
        %849 = vmatpush1.bf16.msra.mxu0 0
        %850 = vmatprep.subr.bf16.mxu0 0
        %851 = vmatpush1.bf16.msra.mxu0 0
        %852 = vmatprep.mubr.bf16.mxu0 0
        %853 = vmatmul.mubr.bf16.gmra.mrb[0].mxu0 %v659
        %v854 = vpop.f32.mrb[0].mxu0
        %v855 = vadd.f32 0.0, %v854
        %v856 = vpop.f32.mrb[0].mxu0
        %v857 = vadd.f32 0.0, %v856
        %v858 = vpop.f32.mrb[0].mxu0
        %v859 = vpop.f32.mrb[0].mxu0
        %860 = vdwg.mxu0
        %861 = vmatprep.subr.bf16.mxu0 %v759
        %862 = vmatpush1.bf16.msra.mxu0 %v758
        %863 = vmatprep.subr.bf16.mxu0 %v763
        %864 = vmatpush1.bf16.msra.mxu0 %v762
        %865 = vmatprep.subr.bf16.mxu0 %v767
        %866 = vmatpush1.bf16.msra.mxu0 %v766
        %867 = vmatprep.subr.bf16.mxu0 %v771
        %868 = vmatpush1.bf16.msra.mxu0 %v770
        %869 = vmatprep.subr.bf16.mxu0 %v775
        %870 = vmatpush1.bf16.msra.mxu0 %v774
        %871 = vmatprep.subr.bf16.mxu0 %v779
        %872 = vmatpush1.bf16.msra.mxu0 %v778
        %873 = vmatprep.subr.bf16.mxu0 %v783
        %874 = vmatpush1.bf16.msra.mxu0 %v782
        %875 = vmatprep.subr.bf16.mxu0 %v787
        %876 = vmatpush1.bf16.msra.mxu0 %v786
        %877 = vmatprep.subr.bf16.mxu0 0
        %878 = vmatpush1.bf16.msra.mxu0 0
        %879 = vmatprep.subr.bf16.mxu0 0
        %880 = vmatpush1.bf16.msra.mxu0 0
        %881 = vmatprep.subr.bf16.mxu0 0
        %882 = vmatpush1.bf16.msra.mxu0 0
        %883 = vmatprep.subr.bf16.mxu0 0
        %884 = vmatpush1.bf16.msra.mxu0 0
        %885 = vmatprep.subr.bf16.mxu0 0
        %886 = vmatpush1.bf16.msra.mxu0 0
        %887 = vmatprep.subr.bf16.mxu0 0
        %888 = vmatpush1.bf16.msra.mxu0 0
        %889 = vmatprep.subr.bf16.mxu0 0
        %890 = vmatpush1.bf16.msra.mxu0 0
        %891 = vmatprep.subr.bf16.mxu0 0
        %892 = vmatpush1.bf16.msra.mxu0 0
        %893 = vmatprep.mubr.bf16.mxu0 0
        %894 = vmatmul.mubr.bf16.gmra.mrb[0].mxu0 %v659
        %v895 = vpop.f32.mrb[0].mxu0
        %v896 = vadd.f32 0.0, %v895
        %v897 = vpop.f32.mrb[0].mxu0
        %v898 = vadd.f32 0.0, %v897
        %v899 = vpop.f32.mrb[0].mxu0
        %v900 = vpop.f32.mrb[0].mxu0
        %901 = vdwg.mxu0
        %v902 = vadd.f32 %v655, %v855
        %v903 = vadd.f32 %v656, %v857
        %v904 = vadd.f32 %v657, %v896
        %v905 = vadd.f32 %v658, %v898
        %v906 = vxor.u32 %v902, 2147483648
        %v907 = vmul.f32 %v906, 1.442695
        %v908 = vpow.pop %v907
        %v909 = vadd.f32 %v908, 1.0
        %v910 = vrcp.pop %v909
        %v911 = vmul.f32 1.0, %v910
        %v912 = vxor.u32 %v903, 2147483648
        %v913 = vmul.f32 %v912, 1.442695
        %v914 = vpow.pop %v913
        %v915 = vadd.f32 %v914, 1.0
        %v916 = vrcp.pop %v915
        %v917 = vmul.f32 1.0, %v916
        %v918 = vtanh.pop %v904
        %v919 = vxor.u32 %v905, 2147483648
        %v920 = vmul.f32 %v919, 1.442695
        %v921 = vpow.pop %v920
        %v922 = vadd.f32 %v921, 1.0
        %v923 = vrcp.pop %v922
        %v924 = vmul.f32 1.0, %v923
        %v925 = vmul.f32 %v917, %v654
        %v926 = vmul.f32 %v911, %v918
        %v927 = vadd.f32 %v925, %v926
        %v928 = vtanh.pop %v927
        %v929 = vmul.f32 %v924, %v928
        %v930 = vpack.c.bf16 %v929, %v929
        %931 = vst [vmem:[%s260] sm:$0xf] %v930
        %s932 = scalar_lea.vmem [#allocation2], 32
        %v933 = vld [vmem:[%s932] sm:$0xff]
        %v934 = vld [vmem:[%s932 + $0x8] sm:$0xff]
        %v935 = vld [vmem:[%s932 + $0x10] sm:$0xff]
        %v936 = vld [vmem:[%s932 + $0x18] sm:$0xff]
        %937 = vmatprep.subr.bf16.mxu0 %v757
        %938 = vmatpush1.bf16.msra.mxu0 %v756
        %939 = vmatprep.subr.bf16.mxu0 %v761
        %940 = vmatpush1.bf16.msra.mxu0 %v760
        %941 = vmatprep.subr.bf16.mxu0 %v765
        %942 = vmatpush1.bf16.msra.mxu0 %v764
        %943 = vmatprep.subr.bf16.mxu0 %v769
        %944 = vmatpush1.bf16.msra.mxu0 %v768
        %945 = vmatprep.subr.bf16.mxu0 %v773
        %946 = vmatpush1.bf16.msra.mxu0 %v772
        %947 = vmatprep.subr.bf16.mxu0 %v777
        %948 = vmatpush1.bf16.msra.mxu0 %v776
        %949 = vmatprep.subr.bf16.mxu0 %v781
        %950 = vmatpush1.bf16.msra.mxu0 %v780
        %951 = vmatprep.subr.bf16.mxu0 %v785
        %952 = vmatpush1.bf16.msra.mxu0 %v784
        %953 = vmatprep.subr.bf16.mxu0 0
        %954 = vmatpush1.bf16.msra.mxu0 0
        %955 = vmatprep.subr.bf16.mxu0 0
        %956 = vmatpush1.bf16.msra.mxu0 0
        %957 = vmatprep.subr.bf16.mxu0 0
        %958 = vmatpush1.bf16.msra.mxu0 0
        %959 = vmatprep.subr.bf16.mxu0 0
        %960 = vmatpush1.bf16.msra.mxu0 0
        %961 = vmatprep.subr.bf16.mxu0 0
        %962 = vmatpush1.bf16.msra.mxu0 0
        %963 = vmatprep.subr.bf16.mxu0 0
        %964 = vmatpush1.bf16.msra.mxu0 0
        %965 = vmatprep.subr.bf16.mxu0 0
        %966 = vmatpush1.bf16.msra.mxu0 0
        %967 = vmatprep.subr.bf16.mxu0 0
        %968 = vmatpush1.bf16.msra.mxu0 0
        %969 = vmatprep.mubr.bf16.mxu0 0
        %970 = vmatmul.mubr.bf16.gmra.mrb[0].mxu0 %v930
        %v971 = vpop.f32.mrb[0].mxu0
        %v972 = vadd.f32 0.0, %v971
        %v973 = vpop.f32.mrb[0].mxu0
        %v974 = vadd.f32 0.0, %v973
        %v975 = vpop.f32.mrb[0].mxu0
        %v976 = vpop.f32.mrb[0].mxu0
        %977 = vdwg.mxu0
        %978 = vmatprep.subr.bf16.mxu0 %v759
        %979 = vmatpush1.bf16.msra.mxu0 %v758
        %980 = vmatprep.subr.bf16.mxu0 %v763
        %981 = vmatpush1.bf16.msra.mxu0 %v762
        %982 = vmatprep.subr.bf16.mxu0 %v767
        %983 = vmatpush1.bf16.msra.mxu0 %v766
        %984 = vmatprep.subr.bf16.mxu0 %v771
        %985 = vmatpush1.bf16.msra.mxu0 %v770
        %986 = vmatprep.subr.bf16.mxu0 %v775
        %987 = vmatpush1.bf16.msra.mxu0 %v774
        %988 = vmatprep.subr.bf16.mxu0 %v779
        %989 = vmatpush1.bf16.msra.mxu0 %v778
        %990 = vmatprep.subr.bf16.mxu0 %v783
        %991 = vmatpush1.bf16.msra.mxu0 %v782
        %992 = vmatprep.subr.bf16.mxu0 %v787
        %993 = vmatpush1.bf16.msra.mxu0 %v786
        %994 = vmatprep.subr.bf16.mxu0 0
        %995 = vmatpush1.bf16.msra.mxu0 0
        %996 = vmatprep.subr.bf16.mxu0 0
        %997 = vmatpush1.bf16.msra.mxu0 0
        %998 = vmatprep.subr.bf16.mxu0 0
        %999 = vmatpush1.bf16.msra.mxu0 0
        %1000 = vmatprep.subr.bf16.mxu0 0
        %1001 = vmatpush1.bf16.msra.mxu0 0
        %1002 = vmatprep.subr.bf16.mxu0 0
        %1003 = vmatpush1.bf16.msra.mxu0 0
        %1004 = vmatprep.subr.bf16.mxu0 0
        %1005 = vmatpush1.bf16.msra.mxu0 0
        %1006 = vmatprep.subr.bf16.mxu0 0
        %1007 = vmatpush1.bf16.msra.mxu0 0
        %1008 = vmatprep.subr.bf16.mxu0 0
        %1009 = vmatpush1.bf16.msra.mxu0 0
        %1010 = vmatprep.mubr.bf16.mxu0 0
        %1011 = vmatmul.mubr.bf16.gmra.mrb[0].mxu0 %v930
        %v1012 = vpop.f32.mrb[0].mxu0
        %v1013 = vadd.f32 0.0, %v1012
        %v1014 = vpop.f32.mrb[0].mxu0
        %v1015 = vadd.f32 0.0, %v1014
        %v1016 = vpop.f32.mrb[0].mxu0
        %v1017 = vpop.f32.mrb[0].mxu0
        %1018 = vdwg.mxu0
        %v1019 = vadd.f32 %v933, %v972
        %v1020 = vadd.f32 %v934, %v974
        %v1021 = vadd.f32 %v935, %v1013
        %v1022 = vadd.f32 %v936, %v1015
        %v1023 = vxor.u32 %v1019, 2147483648
        %v1024 = vmul.f32 %v1023, 1.442695
        %v1025 = vpow.pop %v1024
        %v1026 = vadd.f32 %v1025, 1.0
        %v1027 = vrcp.pop %v1026
        %v1028 = vmul.f32 1.0, %v1027
        %v1029 = vxor.u32 %v1020, 2147483648
        %v1030 = vmul.f32 %v1029, 1.442695
        %v1031 = vpow.pop %v1030
        %v1032 = vadd.f32 %v1031, 1.0
        %v1033 = vrcp.pop %v1032
        %v1034 = vmul.f32 1.0, %v1033
        %v1035 = vtanh.pop %v1021
        %v1036 = vxor.u32 %v1022, 2147483648
        %v1037 = vmul.f32 %v1036, 1.442695
        %v1038 = vpow.pop %v1037
        %v1039 = vadd.f32 %v1038, 1.0
        %v1040 = vrcp.pop %v1039
        %v1041 = vmul.f32 1.0, %v1040
        %v1042 = vmul.f32 %v1034, %v927
        %v1043 = vmul.f32 %v1028, %v1035
        %v1044 = vadd.f32 %v1042, %v1043
        %v1045 = vtanh.pop %v1044
        %v1046 = vmul.f32 %v1041, %v1045
        %v1047 = vpack.c.bf16 %v1046, %v1046
        %s1048 = scalar_lea.vmem %s260, 4
        %1049 = vst [vmem:[%s1048] sm:$0xf] %v1047
        %s1050 = scalar_lea.vmem [#allocation2], 64
        %v1051 = vld [vmem:[%s1050] sm:$0xff]
        %v1052 = vld [vmem:[%s1050 + $0x8] sm:$0xff]
        %v1053 = vld [vmem:[%s1050 + $0x10] sm:$0xff]
        %v1054 = vld [vmem:[%s1050 + $0x18] sm:$0xff]
        %1055 = vmatprep.subr.bf16.mxu0 %v757
        %1056 = vmatpush1.bf16.msra.mxu0 %v756
        %1057 = vmatprep.subr.bf16.mxu0 %v761
        %1058 = vmatpush1.bf16.msra.mxu0 %v760
        %1059 = vmatprep.subr.bf16.mxu0 %v765
        %1060 = vmatpush1.bf16.msra.mxu0 %v764
        %1061 = vmatprep.subr.bf16.mxu0 %v769
        %1062 = vmatpush1.bf16.msra.mxu0 %v768
        %1063 = vmatprep.subr.bf16.mxu0 %v773
        %1064 = vmatpush1.bf16.msra.mxu0 %v772
        %1065 = vmatprep.subr.bf16.mxu0 %v777
        %1066 = vmatpush1.bf16.msra.mxu0 %v776
        %1067 = vmatprep.subr.bf16.mxu0 %v781
        %1068 = vmatpush1.bf16.msra.mxu0 %v780
        %1069 = vmatprep.subr.bf16.mxu0 %v785
        %1070 = vmatpush1.bf16.msra.mxu0 %v784
        %1071 = vmatprep.subr.bf16.mxu0 0
        %1072 = vmatpush1.bf16.msra.mxu0 0
        %1073 = vmatprep.subr.bf16.mxu0 0
        %1074 = vmatpush1.bf16.msra.mxu0 0
        %1075 = vmatprep.subr.bf16.mxu0 0
        %1076 = vmatpush1.bf16.msra.mxu0 0
        %1077 = vmatprep.subr.bf16.mxu0 0
        %1078 = vmatpush1.bf16.msra.mxu0 0
        %1079 = vmatprep.subr.bf16.mxu0 0
        %1080 = vmatpush1.bf16.msra.mxu0 0
        %1081 = vmatprep.subr.bf16.mxu0 0
        %1082 = vmatpush1.bf16.msra.mxu0 0
        %1083 = vmatprep.subr.bf16.mxu0 0
        %1084 = vmatpush1.bf16.msra.mxu0 0
        %1085 = vmatprep.subr.bf16.mxu0 0
        %1086 = vmatpush1.bf16.msra.mxu0 0
        %1087 = vmatprep.mubr.bf16.mxu0 0
        %1088 = vmatmul.mubr.bf16.gmra.mrb[0].mxu0 %v1047
        %v1089 = vpop.f32.mrb[0].mxu0
        %v1090 = vadd.f32 0.0, %v1089
        %v1091 = vpop.f32.mrb[0].mxu0
        %v1092 = vadd.f32 0.0, %v1091
        %v1093 = vpop.f32.mrb[0].mxu0
        %v1094 = vpop.f32.mrb[0].mxu0
        %1095 = vdwg.mxu0
        %1096 = vmatprep.subr.bf16.mxu0 %v759
        %1097 = vmatpush1.bf16.msra.mxu0 %v758
        %1098 = vmatprep.subr.bf16.mxu0 %v763
        %1099 = vmatpush1.bf16.msra.mxu0 %v762
        %1100 = vmatprep.subr.bf16.mxu0 %v767
        %1101 = vmatpush1.bf16.msra.mxu0 %v766
        %1102 = vmatprep.subr.bf16.mxu0 %v771
        %1103 = vmatpush1.bf16.msra.mxu0 %v770
        %1104 = vmatprep.subr.bf16.mxu0 %v775
        %1105 = vmatpush1.bf16.msra.mxu0 %v774
        %1106 = vmatprep.subr.bf16.mxu0 %v779
        %1107 = vmatpush1.bf16.msra.mxu0 %v778
        %1108 = vmatprep.subr.bf16.mxu0 %v783
        %1109 = vmatpush1.bf16.msra.mxu0 %v782
        %1110 = vmatprep.subr.bf16.mxu0 %v787
        %1111 = vmatpush1.bf16.msra.mxu0 %v786
        %1112 = vmatprep.subr.bf16.mxu0 0
        %1113 = vmatpush1.bf16.msra.mxu0 0
        %1114 = vmatprep.subr.bf16.mxu0 0
        %1115 = vmatpush1.bf16.msra.mxu0 0
        %1116 = vmatprep.subr.bf16.mxu0 0
        %1117 = vmatpush1.bf16.msra.mxu0 0
        %1118 = vmatprep.subr.bf16.mxu0 0
        %1119 = vmatpush1.bf16.msra.mxu0 0
        %1120 = vmatprep.subr.bf16.mxu0 0
        %1121 = vmatpush1.bf16.msra.mxu0 0
        %1122 = vmatprep.subr.bf16.mxu0 0
        %1123 = vmatpush1.bf16.msra.mxu0 0
        %1124 = vmatprep.subr.bf16.mxu0 0
        %1125 = vmatpush1.bf16.msra.mxu0 0
        %1126 = vmatprep.subr.bf16.mxu0 0
        %1127 = vmatpush1.bf16.msra.mxu0 0
        %1128 = vmatprep.mubr.bf16.mxu0 0
        %1129 = vmatmul.mubr.bf16.gmra.mrb[0].mxu0 %v1047
        %v1130 = vpop.f32.mrb[0].mxu0
        %v1131 = vadd.f32 0.0, %v1130
        %v1132 = vpop.f32.mrb[0].mxu0
        %v1133 = vadd.f32 0.0, %v1132
        %v1134 = vpop.f32.mrb[0].mxu0
        %v1135 = vpop.f32.mrb[0].mxu0
        %1136 = vdwg.mxu0
        %v1137 = vadd.f32 %v1051, %v1090
        %v1138 = vadd.f32 %v1052, %v1092
        %v1139 = vadd.f32 %v1053, %v1131
        %v1140 = vadd.f32 %v1054, %v1133
        %v1141 = vxor.u32 %v1137, 2147483648
        %v1142 = vmul.f32 %v1141, 1.442695
        %v1143 = vpow.pop %v1142
        %v1144 = vadd.f32 %v1143, 1.0
        %v1145 = vrcp.pop %v1144
        %v1146 = vmul.f32 1.0, %v1145
        %v1147 = vxor.u32 %v1138, 2147483648
        %v1148 = vmul.f32 %v1147, 1.442695
        %v1149 = vpow.pop %v1148
        %v1150 = vadd.f32 %v1149, 1.0
        %v1151 = vrcp.pop %v1150
        %v1152 = vmul.f32 1.0, %v1151
        %v1153 = vtanh.pop %v1139
        %v1154 = vxor.u32 %v1140, 2147483648
        %v1155 = vmul.f32 %v1154, 1.442695
        %v1156 = vpow.pop %v1155
        %v1157 = vadd.f32 %v1156, 1.0
        %v1158 = vrcp.pop %v1157
        %v1159 = vmul.f32 1.0, %v1158
        %v1160 = vmul.f32 %v1152, %v1044
        %v1161 = vmul.f32 %v1146, %v1153
        %v1162 = vadd.f32 %v1160, %v1161
        %v1163 = vtanh.pop %v1162
        %v1164 = vmul.f32 %v1159, %v1163
        %v1165 = vpack.c.bf16 %v1164, %v1164
        %s1166 = scalar_lea.vmem %s260, 8
        %1167 = vst [vmem:[%s1166] sm:$0xf] %v1165
        %s1168 = scalar_lea.vmem [#allocation2], 96
        %v1169 = vld [vmem:[%s1168] sm:$0xff]
        %v1170 = vld [vmem:[%s1168 + $0x8] sm:$0xff]
        %v1171 = vld [vmem:[%s1168 + $0x10] sm:$0xff]
        %v1172 = vld [vmem:[%s1168 + $0x18] sm:$0xff]
        %1173 = vmatprep.subr.bf16.mxu0 %v757
        %1174 = vmatpush1.bf16.msra.mxu0 %v756
        %1175 = vmatprep.subr.bf16.mxu0 %v761
        %1176 = vmatpush1.bf16.msra.mxu0 %v760
        %1177 = vmatprep.subr.bf16.mxu0 %v765
        %1178 = vmatpush1.bf16.msra.mxu0 %v764
        %1179 = vmatprep.subr.bf16.mxu0 %v769
        %1180 = vmatpush1.bf16.msra.mxu0 %v768
        %1181 = vmatprep.subr.bf16.mxu0 %v773
        %1182 = vmatpush1.bf16.msra.mxu0 %v772
        %1183 = vmatprep.subr.bf16.mxu0 %v777
        %1184 = vmatpush1.bf16.msra.mxu0 %v776
        %1185 = vmatprep.subr.bf16.mxu0 %v781
        %1186 = vmatpush1.bf16.msra.mxu0 %v780
        %1187 = vmatprep.subr.bf16.mxu0 %v785
        %1188 = vmatpush1.bf16.msra.mxu0 %v784
        %1189 = vmatprep.subr.bf16.mxu0 0
        %1190 = vmatpush1.bf16.msra.mxu0 0
        %1191 = vmatprep.subr.bf16.mxu0 0
        %1192 = vmatpush1.bf16.msra.mxu0 0
        %1193 = vmatprep.subr.bf16.mxu0 0
        %1194 = vmatpush1.bf16.msra.mxu0 0
        %1195 = vmatprep.subr.bf16.mxu0 0
        %1196 = vmatpush1.bf16.msra.mxu0 0
        %1197 = vmatprep.subr.bf16.mxu0 0
        %1198 = vmatpush1.bf16.msra.mxu0 0
        %1199 = vmatprep.subr.bf16.mxu0 0
        %1200 = vmatpush1.bf16.msra.mxu0 0
        %1201 = vmatprep.subr.bf16.mxu0 0
        %1202 = vmatpush1.bf16.msra.mxu0 0
        %1203 = vmatprep.subr.bf16.mxu0 0
        %1204 = vmatpush1.bf16.msra.mxu0 0
        %1205 = vmatprep.mubr.bf16.mxu0 0
        %1206 = vmatmul.mubr.bf16.gmra.mrb[0].mxu0 %v1165
        %v1207 = vpop.f32.mrb[0].mxu0
        %v1208 = vadd.f32 0.0, %v1207
        %v1209 = vpop.f32.mrb[0].mxu0
        %v1210 = vadd.f32 0.0, %v1209
        %v1211 = vpop.f32.mrb[0].mxu0
        %v1212 = vpop.f32.mrb[0].mxu0
        %1213 = vdwg.mxu0
        %1214 = vmatprep.subr.bf16.mxu0 %v759
        %1215 = vmatpush1.bf16.msra.mxu0 %v758
        %1216 = vmatprep.subr.bf16.mxu0 %v763
        %1217 = vmatpush1.bf16.msra.mxu0 %v762
        %1218 = vmatprep.subr.bf16.mxu0 %v767
        %1219 = vmatpush1.bf16.msra.mxu0 %v766
        %1220 = vmatprep.subr.bf16.mxu0 %v771
        %1221 = vmatpush1.bf16.msra.mxu0 %v770
        %1222 = vmatprep.subr.bf16.mxu0 %v775
        %1223 = vmatpush1.bf16.msra.mxu0 %v774
        %1224 = vmatprep.subr.bf16.mxu0 %v779
        %1225 = vmatpush1.bf16.msra.mxu0 %v778
        %1226 = vmatprep.subr.bf16.mxu0 %v783
        %1227 = vmatpush1.bf16.msra.mxu0 %v782
        %1228 = vmatprep.subr.bf16.mxu0 %v787
        %1229 = vmatpush1.bf16.msra.mxu0 %v786
        %1230 = vmatprep.subr.bf16.mxu0 0
        %1231 = vmatpush1.bf16.msra.mxu0 0
        %1232 = vmatprep.subr.bf16.mxu0 0
        %1233 = vmatpush1.bf16.msra.mxu0 0
        %1234 = vmatprep.subr.bf16.mxu0 0
        %1235 = vmatpush1.bf16.msra.mxu0 0
        %1236 = vmatprep.subr.bf16.mxu0 0
        %1237 = vmatpush1.bf16.msra.mxu0 0
        %1238 = vmatprep.subr.bf16.mxu0 0
        %1239 = vmatpush1.bf16.msra.mxu0 0
        %1240 = vmatprep.subr.bf16.mxu0 0
        %1241 = vmatpush1.bf16.msra.mxu0 0
        %1242 = vmatprep.subr.bf16.mxu0 0
        %1243 = vmatpush1.bf16.msra.mxu0 0
        %1244 = vmatprep.subr.bf16.mxu0 0
        %1245 = vmatpush1.bf16.msra.mxu0 0
        %1246 = vmatprep.mubr.bf16.mxu0 0
        %1247 = vmatmul.mubr.bf16.gmra.mrb[0].mxu0 %v1165
        %v1248 = vpop.f32.mrb[0].mxu0
        %v1249 = vadd.f32 0.0, %v1248
        %v1250 = vpop.f32.mrb[0].mxu0
        %v1251 = vadd.f32 0.0, %v1250
        %v1252 = vpop.f32.mrb[0].mxu0
        %v1253 = vpop.f32.mrb[0].mxu0
        %1254 = vdwg.mxu0
        %v1255 = vadd.f32 %v1169, %v1208
        %v1256 = vadd.f32 %v1170, %v1210
        %v1257 = vadd.f32 %v1171, %v1249
        %v1258 = vadd.f32 %v1172, %v1251
        %v1259 = vxor.u32 %v1255, 2147483648
        %v1260 = vmul.f32 %v1259, 1.442695
        %v1261 = vpow.pop %v1260
        %v1262 = vadd.f32 %v1261, 1.0
        %v1263 = vrcp.pop %v1262
        %v1264 = vmul.f32 1.0, %v1263
        %v1265 = vxor.u32 %v1256, 2147483648
        %v1266 = vmul.f32 %v1265, 1.442695
        %v1267 = vpow.pop %v1266
        %v1268 = vadd.f32 %v1267, 1.0
        %v1269 = vrcp.pop %v1268
        %v1270 = vmul.f32 1.0, %v1269
        %v1271 = vtanh.pop %v1257
        %v1272 = vxor.u32 %v1258, 2147483648
        %v1273 = vmul.f32 %v1272, 1.442695
        %v1274 = vpow.pop %v1273
        %v1275 = vadd.f32 %v1274, 1.0
        %v1276 = vrcp.pop %v1275
        %v1277 = vmul.f32 1.0, %v1276
        %v1278 = vmul.f32 %v1270, %v1162
        %v1279 = vmul.f32 %v1264, %v1271
        %v1280 = vadd.f32 %v1278, %v1279
        %v1281 = vtanh.pop %v1280
        %v1282 = vmul.f32 %v1277, %v1281
        %v1283 = vpack.c.bf16 %v1282, %v1282
        %s1284 = scalar_lea.vmem %s260, 12
        %1285 = vst [vmem:[%s1284] sm:$0xf] %v1283
        %1286 = vst [vmem:[#allocation3] sm:$0xff] %v1282
        %1287 = vst [vmem:[#allocation4] sm:$0xff] %v1280
        %s1288 = smul.u32 4, %s22
        %p1289 = scmp.lt.s32.totalorder %s1288, 7
        %s1290 = scalar_select %p1289, %s1288, 7
        %p1291 = scmp.lt.s32.totalorder %s21, 0
        %s1292 = scalar_select %p1291, %s21, 0
        %s1293 = sadd.s32 %s1292, %s1290
        %s1294 = smul.addr %s1293, 4
        %s1295 = scalar_lea.vmem %s4, %s1294
        // Predicated region
        $region49: #{lstm_atten_emb_forward.3} parent=35 // pred_check
          %p1296 = pneg %p140
        $region50: #{lstm_atten_emb_forward.3} parent=35 // pred_check_branch
          %1298 = sbr.rel (%p1296) target = $region52
        $region51: #{lstm_atten_emb_forward.3} parent=35 // pred_region
          %s1299 = smul.u32 4, %s22
        $region52: #{lstm_atten_emb_forward.3} parent=35 // pred_fallthru
          _
      $region36: #{lstm_atten_emb_forward.3} parent=5 // pred_fallthru
        _
      %p1300 = scmp.le.s32.totalorder 2, %s12
      // Predicated region
      $region53: #{lstm_atten_emb_forward.3} parent=5 // pred_check
        %p1301 = pneg %p1300
      $region54: #{lstm_atten_emb_forward.3} parent=5 // pred_check_branch
        %1303 = sbr.rel (%p1301) target = $region56
      $region55: #{lstm_atten_emb_forward.3} parent=5 // pred_region
        %s1304 = ssub.s32 %s12, 2
        // Predicated region
        $region57: #{lstm_atten_emb_forward.3} parent=55 // pred_check
          %p1305 = pneg %p146
        $region58: #{lstm_atten_emb_forward.3} parent=55 // pred_check_branch
          %1307 = sbr.rel (%p1305) target = $region60
        $region59: #{lstm_atten_emb_forward.3} parent=55 // pred_region
          %s1308 = smul.u32 4, %s24
          %p1309 = scmp.lt.s32.totalorder %s1308, 7
          %s1310 = scalar_select %p1309, %s1308, 7
          %p1311 = scmp.lt.s32.totalorder %s23, 0
          %s1312 = scalar_select %p1311, %s23, 0
          %s1313 = sadd.s32 %s1312, %s1310
          %s1314 = smul.addr %s1313, 4
          %s1315 = scalar_lea.vmem %s4, %s1314
        $region60: #{lstm_atten_emb_forward.3} parent=55 // pred_fallthru
          _
      $region56: #{lstm_atten_emb_forward.3} parent=5 // pred_fallthru
        _
    $region6: #{lstm_atten_emb_forward.3} parent=1 // loop_footer
      %s16 = sadd.s32 1, %s12
    $region7: #{lstm_atten_emb_forward.3} parent=1 // loop_footer_branch
      %11 = sbr.rel target = $region3
    $region8: #{lstm_atten_emb_forward.3} parent=1 // loop_exit
      _
    %1316 = vsyncpa [#allocation6], 1
    %s1317 = scalar_lea.sflag [#allocation6], 1
    %1318 = vsyncpa %s1317, 1
    %1319 = vsyncpa [#allocation8], 1

</llo_original>
